<compile_context>
chip_gen: v7x
topology: tpu7x:2x2x1
jax: 0.10.0
libtpu: 0.0.40
codegen_flags: <defaults>
</compile_context>

<pallas_src>
import functools

import jax
import jax.numpy as jnp
import numpy as np
from jax import lax
from jax.experimental import pallas as pl
from jax.experimental.pallas import tpu as pltpu

EPS = 1e-5
NEG_SLOPE = 0.1
K = 4          # conv kernel size
KK = K * K     # 16 filter taps
STRIDE = 2
PAD = 1
LANES = 128    # lane padding of the final (layer-3) channel dim


def _leaky(x):
    return jnp.where(x >= 0.0, x, NEG_SLOPE * x)


# ---------------------------------------------------------------------------
# Single fused kernel: conv1+bias+lrelu -> conv2+bn+lrelu -> conv3+bn+lrelu
# ---------------------------------------------------------------------------
def _fused_disc_kernel(p1_ref, w1_ref, w2_ref, w3_ref, aff_ref, o_ref,
                       a1_pad, a2_pad, p2_scr, p3_scr, *,
                       n, c1, c2, h1, wd1, h2, wd2, h3, wd3):
    hp1, wp1 = h1 + 2 * PAD, wd1 + 2 * PAD
    hp2, wp2 = h2 + 2 * PAD, wd2 + 2 * PAD

    # ---- layer 1: conv1 (+bias folded into the augmented K column) + LeakyReLU.
    # p1 rows live at *padded* spatial positions; the padding rows are all-zero
    # (including the bias column) so they stay exactly 0 after LeakyReLU and
    # double as the zero padding for layer-2's gather.
    y1 = jnp.dot(p1_ref[...], w1_ref[...], preferred_element_type=jnp.float32)
    a1_pad[...] = _leaky(y1)                             # (n*hp1*wp1, c1) f32

    # ---- layer-2 im2col: strided row gathers (stride 2 along w) from the
    # padded activation scratch into a lane-dense (m2, KK*c1) patch matrix.
    for i in range(K):
        for j in range(K):
            t = i * K + j
            for b in range(n):
                for ho in range(h2):
                    src = (b * hp1 + STRIDE * ho + i) * wp1 + j
                    dst = (b * h2 + ho) * wd2
                    p2_scr[dst:dst + wd2, t * c1:(t + 1) * c1] = (
                        a1_pad[pl.ds(src, wd2, stride=STRIDE), :])

    # ---- layer 2: ONE wide matmul (m2,128)@(128,c2) + BatchNorm + LeakyReLU.
    y2 = jnp.dot(p2_scr[...].astype(jnp.bfloat16), w2_ref[...],
                 preferred_element_type=jnp.float32)
    mean2 = jnp.mean(y2, axis=0, keepdims=True)
    var2 = jnp.mean(jnp.square(y2 - mean2), axis=0, keepdims=True)
    a2 = _leaky((y2 - mean2) * lax.rsqrt(var2 + EPS)
                * aff_ref[0:1, :c2] + aff_ref[1:2, :c2])  # (m2, c2) f32

    # ---- zero-padded layer-2 activation scratch (interior copy only).
    a2_pad[...] = jnp.zeros(a2_pad.shape, a2_pad.dtype)
    for b in range(n):
        for h in range(h2):
            src = (b * h2 + h) * wd2
            dst = (b * hp2 + h + PAD) * wp2 + PAD
            a2_pad[dst:dst + wd2, :] = a2[src:src + wd2, :]

    # ---- layer-3 im2col into a (m3, KK*c2 = 256) patch matrix.
    for i in range(K):
        for j in range(K):
            t = i * K + j
            for b in range(n):
                for ho in range(h3):
                    src = (b * hp2 + STRIDE * ho + i) * wp2 + j
                    dst = (b * h3 + ho) * wd3
                    p3_scr[dst:dst + wd3, t * c2:(t + 1) * c2] = (
                        a2_pad[pl.ds(src, wd3, stride=STRIDE), :])

    # ---- layer 3: ONE matmul (m3,256)@(256,128) + BatchNorm + LeakyReLU.
    # Output channels are zero-padded to 128 lanes; padded columns (zero weights,
    # zero gamma/beta) stay exactly 0, so the store is a clean lane-dense slab.
    y3 = jnp.dot(p3_scr[...].astype(jnp.bfloat16), w3_ref[...],
                 preferred_element_type=jnp.float32)
    mean3 = jnp.mean(y3, axis=0, keepdims=True)
    var3 = jnp.mean(jnp.square(y3 - mean3), axis=0, keepdims=True)
    y3 = (y3 - mean3) * lax.rsqrt(var3 + EPS) * aff_ref[2:3, :] + aff_ref[3:4, :]
    o_ref[...] = _leaky(y3)


# ---------------------------------------------------------------------------
# Wrapper: one XLA patch-extraction op + weight/param packing + one pallas_call
# ---------------------------------------------------------------------------
def discriminator_forward(x, params):
    (w1, b1), (w2, g2, be2), (w3, g3, be3) = params
    n, cin, h0, w0 = x.shape
    c1, c2, c3 = w1.shape[0], w2.shape[0], w3.shape[0]

    def osz(s):
        return (s + 2 * PAD - K) // STRIDE + 1

    h1, wd1 = osz(h0), osz(w0)
    h2, wd2 = osz(h1), osz(wd1)
    h3, wd3 = osz(h2), osz(wd2)
    m2, m3 = n * h2 * wd2, n * h3 * wd3
    hp1, wp1 = h1 + 2 * PAD, wd1 + 2 * PAD
    hp2, wp2 = h2 + 2 * PAD, wd2 + 2 * PAD
    k1 = cin * KK

    # Layer-1 im2col in one XLA op; patch feature order is (cin, kh, kw),
    # matching the OIHW weight reshape below.  A constant-1 column is appended
    # (bias fold) and the patches are placed on the zero-padded spatial grid.
    pat = lax.conv_general_dilated_patches(
        x, filter_shape=(K, K), window_strides=(STRIDE, STRIDE),
        padding=((PAD, PAD), (PAD, PAD)))                 # (n, k1, h1, wd1)
    p1 = pat.transpose(0, 2, 3, 1)                        # (n, h1, wd1, k1)
    p1 = jnp.concatenate([p1, jnp.ones((n, h1, wd1, 1), p1.dtype)], axis=-1)
    p1 = jnp.pad(p1, ((0, 0), (PAD, PAD), (PAD, PAD), (0, 0)))
    p1aug = p1.reshape(n * hp1 * wp1, k1 + 1).astype(jnp.bfloat16)

    # Packed weights (bf16): bias row appended to w1; taps concatenated along K
    # for w2/w3 (K order = (kh, kw, cin), matching the in-kernel scratch layout).
    w1aug = jnp.concatenate([w1.reshape(c1, k1).T, b1[None, :]],
                            axis=0).astype(jnp.bfloat16)              # (k1+1, c1)
    w2cat = w2.transpose(2, 3, 1, 0).reshape(KK * c1, c2).astype(jnp.bfloat16)
    w3cat = jnp.pad(w3.transpose(2, 3, 1, 0).reshape(KK * c2, c3),
                    ((0, 0), (0, LANES - c3))).astype(jnp.bfloat16)   # (256, 128)

    # gamma / beta packed into one small lane-dense f32 operand (padding stays 0).
    aff = jnp.zeros((8, LANES), jnp.float32)
    aff = aff.at[0, :c2].set(g2)
    aff = aff.at[1, :c2].set(be2)
    aff = aff.at[2, :c3].set(g3)
    aff = aff.at[3, :c3].set(be3)

    kern = functools.partial(
        _fused_disc_kernel, n=n, c1=c1, c2=c2,
        h1=h1, wd1=wd1, h2=h2, wd2=wd2, h3=h3, wd3=wd3)

    out = pl.pallas_call(
        kern,
        out_shape=jax.ShapeDtypeStruct((m3, LANES), jnp.float32),
        grid=(1,),
        in_specs=[
            pl.BlockSpec((n * hp1 * wp1, k1 + 1), lambda i: (0, 0)),
            pl.BlockSpec((k1 + 1, c1), lambda i: (0, 0)),
            pl.BlockSpec((KK * c1, c2), lambda i: (0, 0)),
            pl.BlockSpec((KK * c2, LANES), lambda i: (0, 0)),
            pl.BlockSpec((8, LANES), lambda i: (0, 0)),
        ],
        out_specs=pl.BlockSpec((m3, LANES), lambda i: (0, 0)),
        scratch_shapes=[
            pltpu.VMEM((n * hp1 * wp1, c1), jnp.float32),   # padded act, layer 1
            pltpu.VMEM((n * hp2 * wp2, c2), jnp.float32),   # padded act, layer 2
            pltpu.VMEM((m2, KK * c1), jnp.float32),         # im2col, layer 2
            pltpu.VMEM((m3, KK * c2), jnp.float32),         # im2col, layer 3
        ],
        compiler_params=pltpu.CompilerParams(
            dimension_semantics=("arbitrary",)),
    )(p1aug, w1aug, w2cat, w3cat, aff)

    # Slice off the lane padding; back to NCHW only at the boundary.
    out = out[:, :c3].reshape(n, h3, wd3, c3).transpose(0, 3, 1, 2)
    return out


# ---------------------------------------------------------------------------
# Pure-JAX reference (correctness check).
# ---------------------------------------------------------------------------
def _reference_forward(x, params):
    def conv(x, w):
        return lax.conv_general_dilated(
            x, w, (STRIDE, STRIDE), ((PAD, PAD), (PAD, PAD)),
            dimension_numbers=("NCHW", "OIHW", "NCHW"))

    def bn(x, g, b):
        mean = jnp.mean(x, axis=(0, 2, 3), keepdims=True)
        var = jnp.mean(jnp.square(x - mean), axis=(0, 2, 3), keepdims=True)
        xn = (x - mean) / jnp.sqrt(var + EPS)
        return xn * g.reshape(1, -1, 1, 1) + b.reshape(1, -1, 1, 1)

    (w1, b1), (w2, g2, be2), (w3, g3, be3) = params
    x = _leaky(conv(x, w1) + b1.reshape(1, -1, 1, 1))
    x = _leaky(bn(conv(x, w2), g2, be2))
    x = _leaky(bn(conv(x, w3), g3, be3))
    return x


def _init_params(key):
    k1, k2, k3, kb = jax.random.split(key, 4)
    w1 = 0.1 * jax.random.normal(k1, (8, 3, 4, 4), jnp.float32)
    b1 = 0.01 * jax.random.normal(kb, (8,), jnp.float32)
    w2 = 0.1 * jax.random.normal(k2, (16, 8, 4, 4), jnp.float32)
    g2 = jnp.ones((16,), jnp.float32)    # BatchNorm2d default init
    be2 = jnp.zeros((16,), jnp.float32)
    w3 = 0.1 * jax.random.normal(k3, (32, 16, 4, 4), jnp.float32)
    g3 = jnp.ones((32,), jnp.float32)
    be3 = jnp.zeros((32,), jnp.float32)
    return ((w1, b1), (w2, g2, be2), (w3, g3, be3))


if __name__ == "__main__":
    key = jax.random.PRNGKey(0)
    kx, kp = jax.random.split(key)
    # Small input consistent with the module: batch=2, 3 channels, 16x16 spatial.
    x = jax.random.normal(kx, (2, 3, 16, 16), jnp.float32)
    params = _init_params(kp)

    fwd = jax.jit(discriminator_forward)
    out = jax.block_until_ready(fwd(x, params))
    assert out.shape == (2, 32, 2, 2), out.shape

    ref = jax.block_until_ready(jax.jit(_reference_forward)(x, params))
    # Tolerance accounts for bf16 matmul operands (same rounding the reference's
    # default-precision f32 convs apply internally on the MXU).
    np.testing.assert_allclose(np.asarray(out), np.asarray(ref),
                               rtol=2e-2, atol=2e-2)

    print("KERNEL_OK")
</pallas_src>

<mosaic_0001>
module attributes {stable_mosaic.version = 11 : i64} {
  func.func @_fused_disc_kernel(%arg0: i32, %arg1: memref<200x49xbf16, #tpu.memory_space<vmem>>, %arg2: memref<49x8xbf16, #tpu.memory_space<vmem>>, %arg3: memref<128x16xbf16, #tpu.memory_space<vmem>>, %arg4: memref<256x128xbf16, #tpu.memory_space<vmem>>, %arg5: memref<8x128xf32, #tpu.memory_space<vmem>>, %arg6: memref<8x128xf32, #tpu.memory_space<vmem>>, %arg7: memref<200x8xf32, #tpu.memory_space<vmem>>, %arg8: memref<72x16xf32, #tpu.memory_space<vmem>>, %arg9: memref<32x128xf32, #tpu.memory_space<vmem>>, %arg10: memref<8x256xf32, #tpu.memory_space<vmem>>) attributes {dimension_semantics = [#tpu.dimension_semantics<arbitrary>], iteration_bounds = array<i64: 1>, scalar_prefetch = 0 : i64, scratch_operands = 4 : i64, tpu.core_type = #tpu.core_type<tc>, window_params = [{pipeline_mode = #tpu.pipeline_mode<synchronous>, transform_indices = @transform_0, window_bounds = array<i64: 200, 49>}, {pipeline_mode = #tpu.pipeline_mode<synchronous>, transform_indices = @transform_1, window_bounds = array<i64: 49, 8>}, {pipeline_mode = #tpu.pipeline_mode<synchronous>, transform_indices = @transform_2, window_bounds = array<i64: 128, 16>}, {pipeline_mode = #tpu.pipeline_mode<synchronous>, transform_indices = @transform_3, window_bounds = array<i64: 256, 128>}, {pipeline_mode = #tpu.pipeline_mode<synchronous>, transform_indices = @transform_4, window_bounds = array<i64: 8, 128>}, {pipeline_mode = #tpu.pipeline_mode<synchronous>, transform_indices = @transform_5, window_bounds = array<i64: 8, 128>}]} {
    %c0 = arith.constant 0 : index
    %c0_0 = arith.constant 0 : index
    %0 = vector.load %arg1[%c0, %c0_0] : memref<200x49xbf16, #tpu.memory_space<vmem>>, vector<200x49xbf16>
    %c0_1 = arith.constant 0 : index
    %c0_2 = arith.constant 0 : index
    %1 = vector.load %arg2[%c0_1, %c0_2] : memref<49x8xbf16, #tpu.memory_space<vmem>>, vector<49x8xbf16>
    %cst = arith.constant dense<0.000000e+00> : vector<200x8xf32>
    %2 = tpu.matmul %0, %1, %cst {dimension_numbers = #tpu.dot_dimension_numbers<[1], [0], [0], [1], [0, 0, 1, 1], [], []>} : vector<200x49xbf16>, vector<49x8xbf16>, vector<200x8xf32> -> vector<200x8xf32>
    %cst_3 = arith.constant 0.000000e+00 : f32
    %3 = vector.broadcast %cst_3 : f32 to vector<200x8xf32>
    %4 = arith.cmpf oge, %2, %3 : vector<200x8xf32>
    %cst_4 = arith.constant 1.000000e-01 : f32
    %5 = vector.broadcast %cst_4 : f32 to vector<200x8xf32>
    %6 = arith.mulf %5, %2 : vector<200x8xf32>
    %7 = arith.select %4, %2, %6 : vector<200x8xi1>, vector<200x8xf32>
    %c0_5 = arith.constant 0 : index
    %c0_6 = arith.constant 0 : index
    %8 = vector.load %arg7[%c0_5, %c0_6] : memref<200x8xf32, #tpu.memory_space<vmem>>, vector<200x8xf32>
    tpu.vector_store %arg7[%c0_5, %c0_6], %7 {strides = array<i32>} : memref<200x8xf32, #tpu.memory_space<vmem>>, vector<200x8xf32>,
    %c0_7 = arith.constant 0 : index
    %c0_8 = arith.constant 0 : index
    %9 = tpu.strided_load %arg7[%c0_7, %c0_8] {strides = array<i32: 2, 1>} : memref<200x8xf32, #tpu.memory_space<vmem>>, vector<4x8xf32>
    %c0_9 = arith.constant 0 : index
    %c0_10 = arith.constant 0 : index
    %10 = vector.load %arg9[%c0_9, %c0_10] : memref<32x128xf32, #tpu.memory_space<vmem>>, vector<4x8xf32>
    tpu.vector_store %arg9[%c0_9, %c0_10], %9 {strides = array<i32>} : memref<32x128xf32, #tpu.memory_space<vmem>>, vector<4x8xf32>,
    %c20 = arith.constant 20 : index
    %c0_11 = arith.constant 0 : index
    %11 = tpu.strided_load %arg7[%c20, %c0_11] {strides = array<i32: 2, 1>} : memref<200x8xf32, #tpu.memory_space<vmem>>, vector<4x8xf32>
    %c4 = arith.constant 4 : index
    %c0_12 = arith.constant 0 : index
    %12 = vector.load %arg9[%c4, %c0_12] : memref<32x128xf32, #tpu.memory_space<vmem>>, vector<4x8xf32>
    tpu.vector_store %arg9[%c4, %c0_12], %11 {strides = array<i32>} : memref<32x128xf32, #tpu.memory_space<vmem>>, vector<4x8xf32>,
    %c40 = arith.constant 40 : index
    %c0_13 = arith.constant 0 : index
    %13 = tpu.strided_load %arg7[%c40, %c0_13] {strides = array<i32: 2, 1>} : memref<200x8xf32, #tpu.memory_space<vmem>>, vector<4x8xf32>
    %c8 = arith.constant 8 : index
    %c0_14 = arith.constant 0 : index
    %14 = vector.load %arg9[%c8, %c0_14] : memref<32x128xf32, #tpu.memory_space<vmem>>, vector<4x8xf32>
    tpu.vector_store %arg9[%c8, %c0_14], %13 {strides = array<i32>} : memref<32x128xf32, #tpu.memory_space<vmem>>, vector<4x8xf32>,
    %c60 = arith.constant 60 : index
    %c0_15 = arith.constant 0 : index
    %15 = tpu.strided_load %arg7[%c60, %c0_15] {strides = array<i32: 2, 1>} : memref<200x8xf32, #tpu.memory_space<vmem>>, vector<4x8xf32>
    %c12 = arith.constant 12 : index
    %c0_16 = arith.constant 0 : index
    %16 = vector.load %arg9[%c12, %c0_16] : memref<32x128xf32, #tpu.memory_space<vmem>>, vector<4x8xf32>
    tpu.vector_store %arg9[%c12, %c0_16], %15 {strides = array<i32>} : memref<32x128xf32, #tpu.memory_space<vmem>>, vector<4x8xf32>,
    %c100 = arith.constant 100 : index
    %c0_17 = arith.constant 0 : index
    %17 = tpu.strided_load %arg7[%c100, %c0_17] {strides = array<i32: 2, 1>} : memref<200x8xf32, #tpu.memory_space<vmem>>, vector<4x8xf32>
    %c16 = arith.constant 16 : index
    %c0_18 = arith.constant 0 : index
    %18 = vector.load %arg9[%c16, %c0_18] : memref<32x128xf32, #tpu.memory_space<vmem>>, vector<4x8xf32>
    tpu.vector_store %arg9[%c16, %c0_18], %17 {strides = array<i32>} : memref<32x128xf32, #tpu.memory_space<vmem>>, vector<4x8xf32>,
    %c120 = arith.constant 120 : index
    %c0_19 = arith.constant 0 : index
    %19 = tpu.strided_load %arg7[%c120, %c0_19] {strides = array<i32: 2, 1>} : memref<200x8xf32, #tpu.memory_space<vmem>>, vector<4x8xf32>
    %c20_20 = arith.constant 20 : index
    %c0_21 = arith.constant 0 : index
    %20 = vector.load %arg9[%c20_20, %c0_21] : memref<32x128xf32, #tpu.memory_space<vmem>>, vector<4x8xf32>
    tpu.vector_store %arg9[%c20_20, %c0_21], %19 {strides = array<i32>} : memref<32x128xf32, #tpu.memory_space<vmem>>, vector<4x8xf32>,
    %c140 = arith.constant 140 : index
    %c0_22 = arith.constant 0 : index
    %21 = tpu.strided_load %arg7[%c140, %c0_22] {strides = array<i32: 2, 1>} : memref<200x8xf32, #tpu.memory_space<vmem>>, vector<4x8xf32>
    %c24 = arith.constant 24 : index
    %c0_23 = arith.constant 0 : index
    %22 = vector.load %arg9[%c24, %c0_23] : memref<32x128xf32, #tpu.memory_space<vmem>>, vector<4x8xf32>
    tpu.vector_store %arg9[%c24, %c0_23], %21 {strides = array<i32>} : memref<32x128xf32, #tpu.memory_space<vmem>>, vector<4x8xf32>,
    %c160 = arith.constant 160 : index
    %c0_24 = arith.constant 0 : index
    %23 = tpu.strided_load %arg7[%c160, %c0_24] {strides = array<i32: 2, 1>} : memref<200x8xf32, #tpu.memory_space<vmem>>, vector<4x8xf32>
    %c28 = arith.constant 28 : index
    %c0_25 = arith.constant 0 : index
    %24 = vector.load %arg9[%c28, %c0_25] : memref<32x128xf32, #tpu.memory_space<vmem>>, vector<4x8xf32>
    tpu.vector_store %arg9[%c28, %c0_25], %23 {strides = array<i32>} : memref<32x128xf32, #tpu.memory_space<vmem>>, vector<4x8xf32>,
    %c1 = arith.constant 1 : index
    %c0_26 = arith.constant 0 : index
    %25 = tpu.strided_load %arg7[%c1, %c0_26] {strides = array<i32: 2, 1>} : memref<200x8xf32, #tpu.memory_space<vmem>>, vector<4x8xf32>
    %c0_27 = arith.constant 0 : index
    %c8_28 = arith.constant 8 : index
    %26 = vector.load %arg9[%c0_27, %c8_28] : memref<32x128xf32, #tpu.memory_space<vmem>>, vector<4x8xf32>
    tpu.vector_store %arg9[%c0_27, %c8_28], %25 {strides = array<i32>} : memref<32x128xf32, #tpu.memory_space<vmem>>, vector<4x8xf32>,
    %c21 = arith.constant 21 : index
    %c0_29 = arith.constant 0 : index
    %27 = tpu.strided_load %arg7[%c21, %c0_29] {strides = array<i32: 2, 1>} : memref<200x8xf32, #tpu.memory_space<vmem>>, vector<4x8xf32>
    %c4_30 = arith.constant 4 : index
    %c8_31 = arith.constant 8 : index
    %28 = vector.load %arg9[%c4_30, %c8_31] : memref<32x128xf32, #tpu.memory_space<vmem>>, vector<4x8xf32>
    tpu.vector_store %arg9[%c4_30, %c8_31], %27 {strides = array<i32>} : memref<32x128xf32, #tpu.memory_space<vmem>>, vector<4x8xf32>,
    %c41 = arith.constant 41 : index
    %c0_32 = arith.constant 0 : index
    %29 = tpu.strided_load %arg7[%c41, %c0_32] {strides = array<i32: 2, 1>} : memref<200x8xf32, #tpu.memory_space<vmem>>, vector<4x8xf32>
    %c8_33 = arith.constant 8 : index
    %c8_34 = arith.constant 8 : index
    %30 = vector.load %arg9[%c8_33, %c8_34] : memref<32x128xf32, #tpu.memory_space<vmem>>, vector<4x8xf32>
    tpu.vector_store %arg9[%c8_33, %c8_34], %29 {strides = array<i32>} : memref<32x128xf32, #tpu.memory_space<vmem>>, vector<4x8xf32>,
    %c61 = arith.constant 61 : index
    %c0_35 = arith.constant 0 : index
    %31 = tpu.strided_load %arg7[%c61, %c0_35] {strides = array<i32: 2, 1>} : memref<200x8xf32, #tpu.memory_space<vmem>>, vector<4x8xf32>
    %c12_36 = arith.constant 12 : index
    %c8_37 = arith.constant 8 : index
    %32 = vector.load %arg9[%c12_36, %c8_37] : memref<32x128xf32, #tpu.memory_space<vmem>>, vector<4x8xf32>
    tpu.vector_store %arg9[%c12_36, %c8_37], %31 {strides = array<i32>} : memref<32x128xf32, #tpu.memory_space<vmem>>, vector<4x8xf32>,
    %c101 = arith.constant 101 : index
    %c0_38 = arith.constant 0 : index
    %33 = tpu.strided_load %arg7[%c101, %c0_38] {strides = array<i32: 2, 1>} : memref<200x8xf32, #tpu.memory_space<vmem>>, vector<4x8xf32>
    %c16_39 = arith.constant 16 : index
    %c8_40 = arith.constant 8 : index
    %34 = vector.load %arg9[%c16_39, %c8_40] : memref<32x128xf32, #tpu.memory_space<vmem>>, vector<4x8xf32>
    tpu.vector_store %arg9[%c16_39, %c8_40], %33 {strides = array<i32>} : memref<32x128xf32, #tpu.memory_space<vmem>>, vector<4x8xf32>,
    %c121 = arith.constant 121 : index
    %c0_41 = arith.constant 0 : index
    %35 = tpu.strided_load %arg7[%c121, %c0_41] {strides = array<i32: 2, 1>} : memref<200x8xf32, #tpu.memory_space<vmem>>, vector<4x8xf32>
    %c20_42 = arith.constant 20 : index
    %c8_43 = arith.constant 8 : index
    %36 = vector.load %arg9[%c20_42, %c8_43] : memref<32x128xf32, #tpu.memory_space<vmem>>, vector<4x8xf32>
    tpu.vector_store %arg9[%c20_42, %c8_43], %35 {strides = array<i32>} : memref<32x128xf32, #tpu.memory_space<vmem>>, vector<4x8xf32>,
    %c141 = arith.constant 141 : index
    %c0_44 = arith.constant 0 : index
    %37 = tpu.strided_load %arg7[%c141, %c0_44] {strides = array<i32: 2, 1>} : memref<200x8xf32, #tpu.memory_space<vmem>>, vector<4x8xf32>
    %c24_45 = arith.constant 24 : index
    %c8_46 = arith.constant 8 : index
    %38 = vector.load %arg9[%c24_45, %c8_46] : memref<32x128xf32, #tpu.memory_space<vmem>>, vector<4x8xf32>
    tpu.vector_store %arg9[%c24_45, %c8_46], %37 {strides = array<i32>} : memref<32x128xf32, #tpu.memory_space<vmem>>, vector<4x8xf32>,
    %c161 = arith.constant 161 : index
    %c0_47 = arith.constant 0 : index
    %39 = tpu.strided_load %arg7[%c161, %c0_47] {strides = array<i32: 2, 1>} : memref<200x8xf32, #tpu.memory_space<vmem>>, vector<4x8xf32>
    %c28_48 = arith.constant 28 : index
    %c8_49 = arith.constant 8 : index
    %40 = vector.load %arg9[%c28_48, %c8_49] : memref<32x128xf32, #tpu.memory_space<vmem>>, vector<4x8xf32>
    tpu.vector_store %arg9[%c28_48, %c8_49], %39 {strides = array<i32>} : memref<32x128xf32, #tpu.memory_space<vmem>>, vector<4x8xf32>,
    %c2 = arith.constant 2 : index
    %c0_50 = arith.constant 0 : index
    %41 = tpu.strided_load %arg7[%c2, %c0_50] {strides = array<i32: 2, 1>} : memref<200x8xf32, #tpu.memory_space<vmem>>, vector<4x8xf32>
    %c0_51 = arith.constant 0 : index
    %c16_52 = arith.constant 16 : index
    %42 = vector.load %arg9[%c0_51, %c16_52] : memref<32x128xf32, #tpu.memory_space<vmem>>, vector<4x8xf32>
    tpu.vector_store %arg9[%c0_51, %c16_52], %41 {strides = array<i32>} : memref<32x128xf32, #tpu.memory_space<vmem>>, vector<4x8xf32>,
    %c22 = arith.constant 22 : index
    %c0_53 = arith.constant 0 : index
    %43 = tpu.strided_load %arg7[%c22, %c0_53] {strides = array<i32: 2, 1>} : memref<200x8xf32, #tpu.memory_space<vmem>>, vector<4x8xf32>
    %c4_54 = arith.constant 4 : index
    %c16_55 = arith.constant 16 : index
    %44 = vector.load %arg9[%c4_54, %c16_55] : memref<32x128xf32, #tpu.memory_space<vmem>>, vector<4x8xf32>
    tpu.vector_store %arg9[%c4_54, %c16_55], %43 {strides = array<i32>} : memref<32x128xf32, #tpu.memory_space<vmem>>, vector<4x8xf32>,
    %c42 = arith.constant 42 : index
    %c0_56 = arith.constant 0 : index
    %45 = tpu.strided_load %arg7[%c42, %c0_56] {strides = array<i32: 2, 1>} : memref<200x8xf32, #tpu.memory_space<vmem>>, vector<4x8xf32>
    %c8_57 = arith.constant 8 : index
    %c16_58 = arith.constant 16 : index
    %46 = vector.load %arg9[%c8_57, %c16_58] : memref<32x128xf32, #tpu.memory_space<vmem>>, vector<4x8xf32>
    tpu.vector_store %arg9[%c8_57, %c16_58], %45 {strides = array<i32>} : memref<32x128xf32, #tpu.memory_space<vmem>>, vector<4x8xf32>,
    %c62 = arith.constant 62 : index
    %c0_59 = arith.constant 0 : index
    %47 = tpu.strided_load %arg7[%c62, %c0_59] {strides = array<i32: 2, 1>} : memref<200x8xf32, #tpu.memory_space<vmem>>, vector<4x8xf32>
    %c12_60 = arith.constant 12 : index
    %c16_61 = arith.constant 16 : index
    %48 = vector.load %arg9[%c12_60, %c16_61] : memref<32x128xf32, #tpu.memory_space<vmem>>, vector<4x8xf32>
    tpu.vector_store %arg9[%c12_60, %c16_61], %47 {strides = array<i32>} : memref<32x128xf32, #tpu.memory_space<vmem>>, vector<4x8xf32>,
    %c102 = arith.constant 102 : index
    %c0_62 = arith.constant 0 : index
    %49 = tpu.strided_load %arg7[%c102, %c0_62] {strides = array<i32: 2, 1>} : memref<200x8xf32, #tpu.memory_space<vmem>>, vector<4x8xf32>
    %c16_63 = arith.constant 16 : index
    %c16_64 = arith.constant 16 : index
    %50 = vector.load %arg9[%c16_63, %c16_64] : memref<32x128xf32, #tpu.memory_space<vmem>>, vector<4x8xf32>
    tpu.vector_store %arg9[%c16_63, %c16_64], %49 {strides = array<i32>} : memref<32x128xf32, #tpu.memory_space<vmem>>, vector<4x8xf32>,
    %c122 = arith.constant 122 : index
    %c0_65 = arith.constant 0 : index
    %51 = tpu.strided_load %arg7[%c122, %c0_65] {strides = array<i32: 2, 1>} : memref<200x8xf32, #tpu.memory_space<vmem>>, vector<4x8xf32>
    %c20_66 = arith.constant 20 : index
    %c16_67 = arith.constant 16 : index
    %52 = vector.load %arg9[%c20_66, %c16_67] : memref<32x128xf32, #tpu.memory_space<vmem>>, vector<4x8xf32>
    tpu.vector_store %arg9[%c20_66, %c16_67], %51 {strides = array<i32>} : memref<32x128xf32, #tpu.memory_space<vmem>>, vector<4x8xf32>,
    %c142 = arith.constant 142 : index
    %c0_68 = arith.constant 0 : index
    %53 = tpu.strided_load %arg7[%c142, %c0_68] {strides = array<i32: 2, 1>} : memref<200x8xf32, #tpu.memory_space<vmem>>, vector<4x8xf32>
    %c24_69 = arith.constant 24 : index
    %c16_70 = arith.constant 16 : index
    %54 = vector.load %arg9[%c24_69, %c16_70] : memref<32x128xf32, #tpu.memory_space<vmem>>, vector<4x8xf32>
    tpu.vector_store %arg9[%c24_69, %c16_70], %53 {strides = array<i32>} : memref<32x128xf32, #tpu.memory_space<vmem>>, vector<4x8xf32>,
    %c162 = arith.constant 162 : index
    %c0_71 = arith.constant 0 : index
    %55 = tpu.strided_load %arg7[%c162, %c0_71] {strides = array<i32: 2, 1>} : memref<200x8xf32, #tpu.memory_space<vmem>>, vector<4x8xf32>
    %c28_72 = arith.constant 28 : index
    %c16_73 = arith.constant 16 : index
    %56 = vector.load %arg9[%c28_72, %c16_73] : memref<32x128xf32, #tpu.memory_space<vmem>>, vector<4x8xf32>
    tpu.vector_store %arg9[%c28_72, %c16_73], %55 {strides = array<i32>} : memref<32x128xf32, #tpu.memory_space<vmem>>, vector<4x8xf32>,
    %c3 = arith.constant 3 : index
    %c0_74 = arith.constant 0 : index
    %57 = tpu.strided_load %arg7[%c3, %c0_74] {strides = array<i32: 2, 1>} : memref<200x8xf32, #tpu.memory_space<vmem>>, vector<4x8xf32>
    %c0_75 = arith.constant 0 : index
    %c24_76 = arith.constant 24 : index
    %58 = vector.load %arg9[%c0_75, %c24_76] : memref<32x128xf32, #tpu.memory_space<vmem>>, vector<4x8xf32>
    tpu.vector_store %arg9[%c0_75, %c24_76], %57 {strides = array<i32>} : memref<32x128xf32, #tpu.memory_space<vmem>>, vector<4x8xf32>,
    %c23 = arith.constant 23 : index
    %c0_77 = arith.constant 0 : index
    %59 = tpu.strided_load %arg7[%c23, %c0_77] {strides = array<i32: 2, 1>} : memref<200x8xf32, #tpu.memory_space<vmem>>, vector<4x8xf32>
    %c4_78 = arith.constant 4 : index
    %c24_79 = arith.constant 24 : index
    %60 = vector.load %arg9[%c4_78, %c24_79] : memref<32x128xf32, #tpu.memory_space<vmem>>, vector<4x8xf32>
    tpu.vector_store %arg9[%c4_78, %c24_79], %59 {strides = array<i32>} : memref<32x128xf32, #tpu.memory_space<vmem>>, vector<4x8xf32>,
    %c43 = arith.constant 43 : index
    %c0_80 = arith.constant 0 : index
    %61 = tpu.strided_load %arg7[%c43, %c0_80] {strides = array<i32: 2, 1>} : memref<200x8xf32, #tpu.memory_space<vmem>>, vector<4x8xf32>
    %c8_81 = arith.constant 8 : index
    %c24_82 = arith.constant 24 : index
    %62 = vector.load %arg9[%c8_81, %c24_82] : memref<32x128xf32, #tpu.memory_space<vmem>>, vector<4x8xf32>
    tpu.vector_store %arg9[%c8_81, %c24_82], %61 {strides = array<i32>} : memref<32x128xf32, #tpu.memory_space<vmem>>, vector<4x8xf32>,
    %c63 = arith.constant 63 : index
    %c0_83 = arith.constant 0 : index
    %63 = tpu.strided_load %arg7[%c63, %c0_83] {strides = array<i32: 2, 1>} : memref<200x8xf32, #tpu.memory_space<vmem>>, vector<4x8xf32>
    %c12_84 = arith.constant 12 : index
    %c24_85 = arith.constant 24 : index
    %64 = vector.load %arg9[%c12_84, %c24_85] : memref<32x128xf32, #tpu.memory_space<vmem>>, vector<4x8xf32>
    tpu.vector_store %arg9[%c12_84, %c24_85], %63 {strides = array<i32>} : memref<32x128xf32, #tpu.memory_space<vmem>>, vector<4x8xf32>,
    %c103 = arith.constant 103 : index
    %c0_86 = arith.constant 0 : index
    %65 = tpu.strided_load %arg7[%c103, %c0_86] {strides = array<i32: 2, 1>} : memref<200x8xf32, #tpu.memory_space<vmem>>, vector<4x8xf32>
    %c16_87 = arith.constant 16 : index
    %c24_88 = arith.constant 24 : index
    %66 = vector.load %arg9[%c16_87, %c24_88] : memref<32x128xf32, #tpu.memory_space<vmem>>, vector<4x8xf32>
    tpu.vector_store %arg9[%c16_87, %c24_88], %65 {strides = array<i32>} : memref<32x128xf32, #tpu.memory_space<vmem>>, vector<4x8xf32>,
    %c123 = arith.constant 123 : index
    %c0_89 = arith.constant 0 : index
    %67 = tpu.strided_load %arg7[%c123, %c0_89] {strides = array<i32: 2, 1>} : memref<200x8xf32, #tpu.memory_space<vmem>>, vector<4x8xf32>
    %c20_90 = arith.constant 20 : index
    %c24_91 = arith.constant 24 : index
    %68 = vector.load %arg9[%c20_90, %c24_91] : memref<32x128xf32, #tpu.memory_space<vmem>>, vector<4x8xf32>
    tpu.vector_store %arg9[%c20_90, %c24_91], %67 {strides = array<i32>} : memref<32x128xf32, #tpu.memory_space<vmem>>, vector<4x8xf32>,
    %c143 = arith.constant 143 : index
    %c0_92 = arith.constant 0 : index
    %69 = tpu.strided_load %arg7[%c143, %c0_92] {strides = array<i32: 2, 1>} : memref<200x8xf32, #tpu.memory_space<vmem>>, vector<4x8xf32>
    %c24_93 = arith.constant 24 : index
    %c24_94 = arith.constant 24 : index
    %70 = vector.load %arg9[%c24_93, %c24_94] : memref<32x128xf32, #tpu.memory_space<vmem>>, vector<4x8xf32>
    tpu.vector_store %arg9[%c24_93, %c24_94], %69 {strides = array<i32>} : memref<32x128xf32, #tpu.memory_space<vmem>>, vector<4x8xf32>,
    %c163 = arith.constant 163 : index
    %c0_95 = arith.constant 0 : index
    %71 = tpu.strided_load %arg7[%c163, %c0_95] {strides = array<i32: 2, 1>} : memref<200x8xf32, #tpu.memory_space<vmem>>, vector<4x8xf32>
    %c28_96 = arith.constant 28 : index
    %c24_97 = arith.constant 24 : index
    %72 = vector.load %arg9[%c28_96, %c24_97] : memref<32x128xf32, #tpu.memory_space<vmem>>, vector<4x8xf32>
    tpu.vector_store %arg9[%c28_96, %c24_97], %71 {strides = array<i32>} : memref<32x128xf32, #tpu.memory_space<vmem>>, vector<4x8xf32>,
    %c10 = arith.constant 10 : index
    %c0_98 = arith.constant 0 : index
    %73 = tpu.strided_load %arg7[%c10, %c0_98] {strides = array<i32: 2, 1>} : memref<200x8xf32, #tpu.memory_space<vmem>>, vector<4x8xf32>
    %c0_99 = arith.constant 0 : index
    %c32 = arith.constant 32 : index
    %74 = vector.load %arg9[%c0_99, %c32] : memref<32x128xf32, #tpu.memory_space<vmem>>, vector<4x8xf32>
    tpu.vector_store %arg9[%c0_99, %c32], %73 {strides = array<i32>} : memref<32x128xf32, #tpu.memory_space<vmem>>, vector<4x8xf32>,
    %c30 = arith.constant 30 : index
    %c0_100 = arith.constant 0 : index
    %75 = tpu.strided_load %arg7[%c30, %c0_100] {strides = array<i32: 2, 1>} : memref<200x8xf32, #tpu.memory_space<vmem>>, vector<4x8xf32>
    %c4_101 = arith.constant 4 : index
    %c32_102 = arith.constant 32 : index
    %76 = vector.load %arg9[%c4_101, %c32_102] : memref<32x128xf32, #tpu.memory_space<vmem>>, vector<4x8xf32>
    tpu.vector_store %arg9[%c4_101, %c32_102], %75 {strides = array<i32>} : memref<32x128xf32, #tpu.memory_space<vmem>>, vector<4x8xf32>,
    %c50 = arith.constant 50 : index
    %c0_103 = arith.constant 0 : index
    %77 = tpu.strided_load %arg7[%c50, %c0_103] {strides = array<i32: 2, 1>} : memref<200x8xf32, #tpu.memory_space<vmem>>, vector<4x8xf32>
    %c8_104 = arith.constant 8 : index
    %c32_105 = arith.constant 32 : index
    %78 = vector.load %arg9[%c8_104, %c32_105] : memref<32x128xf32, #tpu.memory_space<vmem>>, vector<4x8xf32>
    tpu.vector_store %arg9[%c8_104, %c32_105], %77 {strides = array<i32>} : memref<32x128xf32, #tpu.memory_space<vmem>>, vector<4x8xf32>,
    %c70 = arith.constant 70 : index
    %c0_106 = arith.constant 0 : index
    %79 = tpu.strided_load %arg7[%c70, %c0_106] {strides = array<i32: 2, 1>} : memref<200x8xf32, #tpu.memory_space<vmem>>, vector<4x8xf32>
    %c12_107 = arith.constant 12 : index
    %c32_108 = arith.constant 32 : index
    %80 = vector.load %arg9[%c12_107, %c32_108] : memref<32x128xf32, #tpu.memory_space<vmem>>, vector<4x8xf32>
    tpu.vector_store %arg9[%c12_107, %c32_108], %79 {strides = array<i32>} : memref<32x128xf32, #tpu.memory_space<vmem>>, vector<4x8xf32>,
    %c110 = arith.constant 110 : index
    %c0_109 = arith.constant 0 : index
    %81 = tpu.strided_load %arg7[%c110, %c0_109] {strides = array<i32: 2, 1>} : memref<200x8xf32, #tpu.memory_space<vmem>>, vector<4x8xf32>
    %c16_110 = arith.constant 16 : index
    %c32_111 = arith.constant 32 : index
    %82 = vector.load %arg9[%c16_110, %c32_111] : memref<32x128xf32, #tpu.memory_space<vmem>>, vector<4x8xf32>
    tpu.vector_store %arg9[%c16_110, %c32_111], %81 {strides = array<i32>} : memref<32x128xf32, #tpu.memory_space<vmem>>, vector<4x8xf32>,
    %c130 = arith.constant 130 : index
    %c0_112 = arith.constant 0 : index
    %83 = tpu.strided_load %arg7[%c130, %c0_112] {strides = array<i32: 2, 1>} : memref<200x8xf32, #tpu.memory_space<vmem>>, vector<4x8xf32>
    %c20_113 = arith.constant 20 : index
    %c32_114 = arith.constant 32 : index
    %84 = vector.load %arg9[%c20_113, %c32_114] : memref<32x128xf32, #tpu.memory_space<vmem>>, vector<4x8xf32>
    tpu.vector_store %arg9[%c20_113, %c32_114], %83 {strides = array<i32>} : memref<32x128xf32, #tpu.memory_space<vmem>>, vector<4x8xf32>,
    %c150 = arith.constant 150 : index
    %c0_115 = arith.constant 0 : index
    %85 = tpu.strided_load %arg7[%c150, %c0_115] {strides = array<i32: 2, 1>} : memref<200x8xf32, #tpu.memory_space<vmem>>, vector<4x8xf32>
    %c24_116 = arith.constant 24 : index
    %c32_117 = arith.constant 32 : index
    %86 = vector.load %arg9[%c24_116, %c32_117] : memref<32x128xf32, #tpu.memory_space<vmem>>, vector<4x8xf32>
    tpu.vector_store %arg9[%c24_116, %c32_117], %85 {strides = array<i32>} : memref<32x128xf32, #tpu.memory_space<vmem>>, vector<4x8xf32>,
    %c170 = arith.constant 170 : index
    %c0_118 = arith.constant 0 : index
    %87 = tpu.strided_load %arg7[%c170, %c0_118] {strides = array<i32: 2, 1>} : memref<200x8xf32, #tpu.memory_space<vmem>>, vector<4x8xf32>
    %c28_119 = arith.constant 28 : index
    %c32_120 = arith.constant 32 : index
    %88 = vector.load %arg9[%c28_119, %c32_120] : memref<32x128xf32, #tpu.memory_space<vmem>>, vector<4x8xf32>
    tpu.vector_store %arg9[%c28_119, %c32_120], %87 {strides = array<i32>} : memref<32x128xf32, #tpu.memory_space<vmem>>, vector<4x8xf32>,
    %c11 = arith.constant 11 : index
    %c0_121 = arith.constant 0 : index
    %89 = tpu.strided_load %arg7[%c11, %c0_121] {strides = array<i32: 2, 1>} : memref<200x8xf32, #tpu.memory_space<vmem>>, vector<4x8xf32>
    %c0_122 = arith.constant 0 : index
    %c40_123 = arith.constant 40 : index
    %90 = vector.load %arg9[%c0_122, %c40_123] : memref<32x128xf32, #tpu.memory_space<vmem>>, vector<4x8xf32>
    tpu.vector_store %arg9[%c0_122, %c40_123], %89 {strides = array<i32>} : memref<32x128xf32, #tpu.memory_space<vmem>>, vector<4x8xf32>,
    %c31 = arith.constant 31 : index
    %c0_124 = arith.constant 0 : index
    %91 = tpu.strided_load %arg7[%c31, %c0_124] {strides = array<i32: 2, 1>} : memref<200x8xf32, #tpu.memory_space<vmem>>, vector<4x8xf32>
    %c4_125 = arith.constant 4 : index
    %c40_126 = arith.constant 40 : index
    %92 = vector.load %arg9[%c4_125, %c40_126] : memref<32x128xf32, #tpu.memory_space<vmem>>, vector<4x8xf32>
    tpu.vector_store %arg9[%c4_125, %c40_126], %91 {strides = array<i32>} : memref<32x128xf32, #tpu.memory_space<vmem>>, vector<4x8xf32>,
    %c51 = arith.constant 51 : index
    %c0_127 = arith.constant 0 : index
    %93 = tpu.strided_load %arg7[%c51, %c0_127] {strides = array<i32: 2, 1>} : memref<200x8xf32, #tpu.memory_space<vmem>>, vector<4x8xf32>
    %c8_128 = arith.constant 8 : index
    %c40_129 = arith.constant 40 : index
    %94 = vector.load %arg9[%c8_128, %c40_129] : memref<32x128xf32, #tpu.memory_space<vmem>>, vector<4x8xf32>
    tpu.vector_store %arg9[%c8_128, %c40_129], %93 {strides = array<i32>} : memref<32x128xf32, #tpu.memory_space<vmem>>, vector<4x8xf32>,
    %c71 = arith.constant 71 : index
    %c0_130 = arith.constant 0 : index
    %95 = tpu.strided_load %arg7[%c71, %c0_130] {strides = array<i32: 2, 1>} : memref<200x8xf32, #tpu.memory_space<vmem>>, vector<4x8xf32>
    %c12_131 = arith.constant 12 : index
    %c40_132 = arith.constant 40 : index
    %96 = vector.load %arg9[%c12_131, %c40_132] : memref<32x128xf32, #tpu.memory_space<vmem>>, vector<4x8xf32>
    tpu.vector_store %arg9[%c12_131, %c40_132], %95 {strides = array<i32>} : memref<32x128xf32, #tpu.memory_space<vmem>>, vector<4x8xf32>,
    %c111 = arith.constant 111 : index
    %c0_133 = arith.constant 0 : index
    %97 = tpu.strided_load %arg7[%c111, %c0_133] {strides = array<i32: 2, 1>} : memref<200x8xf32, #tpu.memory_space<vmem>>, vector<4x8xf32>
    %c16_134 = arith.constant 16 : index
    %c40_135 = arith.constant 40 : index
    %98 = vector.load %arg9[%c16_134, %c40_135] : memref<32x128xf32, #tpu.memory_space<vmem>>, vector<4x8xf32>
    tpu.vector_store %arg9[%c16_134, %c40_135], %97 {strides = array<i32>} : memref<32x128xf32, #tpu.memory_space<vmem>>, vector<4x8xf32>,
    %c131 = arith.constant 131 : index
    %c0_136 = arith.constant 0 : index
    %99 = tpu.strided_load %arg7[%c131, %c0_136] {strides = array<i32: 2, 1>} : memref<200x8xf32, #tpu.memory_space<vmem>>, vector<4x8xf32>
    %c20_137 = arith.constant 20 : index
    %c40_138 = arith.constant 40 : index
    %100 = vector.load %arg9[%c20_137, %c40_138] : memref<32x128xf32, #tpu.memory_space<vmem>>, vector<4x8xf32>
    tpu.vector_store %arg9[%c20_137, %c40_138], %99 {strides = array<i32>} : memref<32x128xf32, #tpu.memory_space<vmem>>, vector<4x8xf32>,
    %c151 = arith.constant 151 : index
    %c0_139 = arith.constant 0 : index
    %101 = tpu.strided_load %arg7[%c151, %c0_139] {strides = array<i32: 2, 1>} : memref<200x8xf32, #tpu.memory_space<vmem>>, vector<4x8xf32>
    %c24_140 = arith.constant 24 : index
    %c40_141 = arith.constant 40 : index
    %102 = vector.load %arg9[%c24_140, %c40_141] : memref<32x128xf32, #tpu.memory_space<vmem>>, vector<4x8xf32>
    tpu.vector_store %arg9[%c24_140, %c40_141], %101 {strides = array<i32>} : memref<32x128xf32, #tpu.memory_space<vmem>>, vector<4x8xf32>,
    %c171 = arith.constant 171 : index
    %c0_142 = arith.constant 0 : index
    %103 = tpu.strided_load %arg7[%c171, %c0_142] {strides = array<i32: 2, 1>} : memref<200x8xf32, #tpu.memory_space<vmem>>, vector<4x8xf32>
    %c28_143 = arith.constant 28 : index
    %c40_144 = arith.constant 40 : index
    %104 = vector.load %arg9[%c28_143, %c40_144] : memref<32x128xf32, #tpu.memory_space<vmem>>, vector<4x8xf32>
    tpu.vector_store %arg9[%c28_143, %c40_144], %103 {strides = array<i32>} : memref<32x128xf32, #tpu.memory_space<vmem>>, vector<4x8xf32>,
    %c12_145 = arith.constant 12 : index
    %c0_146 = arith.constant 0 : index
    %105 = tpu.strided_load %arg7[%c12_145, %c0_146] {strides = array<i32: 2, 1>} : memref<200x8xf32, #tpu.memory_space<vmem>>, vector<4x8xf32>
    %c0_147 = arith.constant 0 : index
    %c48 = arith.constant 48 : index
    %106 = vector.load %arg9[%c0_147, %c48] : memref<32x128xf32, #tpu.memory_space<vmem>>, vector<4x8xf32>
    tpu.vector_store %arg9[%c0_147, %c48], %105 {strides = array<i32>} : memref<32x128xf32, #tpu.memory_space<vmem>>, vector<4x8xf32>,
    %c32_148 = arith.constant 32 : index
    %c0_149 = arith.constant 0 : index
    %107 = tpu.strided_load %arg7[%c32_148, %c0_149] {strides = array<i32: 2, 1>} : memref<200x8xf32, #tpu.memory_space<vmem>>, vector<4x8xf32>
    %c4_150 = arith.constant 4 : index
    %c48_151 = arith.constant 48 : index
    %108 = vector.load %arg9[%c4_150, %c48_151] : memref<32x128xf32, #tpu.memory_space<vmem>>, vector<4x8xf32>
    tpu.vector_store %arg9[%c4_150, %c48_151], %107 {strides = array<i32>} : memref<32x128xf32, #tpu.memory_space<vmem>>, vector<4x8xf32>,
    %c52 = arith.constant 52 : index
    %c0_152 = arith.constant 0 : index
    %109 = tpu.strided_load %arg7[%c52, %c0_152] {strides = array<i32: 2, 1>} : memref<200x8xf32, #tpu.memory_space<vmem>>, vector<4x8xf32>
    %c8_153 = arith.constant 8 : index
    %c48_154 = arith.constant 48 : index
    %110 = vector.load %arg9[%c8_153, %c48_154] : memref<32x128xf32, #tpu.memory_space<vmem>>, vector<4x8xf32>
    tpu.vector_store %arg9[%c8_153, %c48_154], %109 {strides = array<i32>} : memref<32x128xf32, #tpu.memory_space<vmem>>, vector<4x8xf32>,
    %c72 = arith.constant 72 : index
    %c0_155 = arith.constant 0 : index
    %111 = tpu.strided_load %arg7[%c72, %c0_155] {strides = array<i32: 2, 1>} : memref<200x8xf32, #tpu.memory_space<vmem>>, vector<4x8xf32>
    %c12_156 = arith.constant 12 : index
    %c48_157 = arith.constant 48 : index
    %112 = vector.load %arg9[%c12_156, %c48_157] : memref<32x128xf32, #tpu.memory_space<vmem>>, vector<4x8xf32>
    tpu.vector_store %arg9[%c12_156, %c48_157], %111 {strides = array<i32>} : memref<32x128xf32, #tpu.memory_space<vmem>>, vector<4x8xf32>,
    %c112 = arith.constant 112 : index
    %c0_158 = arith.constant 0 : index
    %113 = tpu.strided_load %arg7[%c112, %c0_158] {strides = array<i32: 2, 1>} : memref<200x8xf32, #tpu.memory_space<vmem>>, vector<4x8xf32>
    %c16_159 = arith.constant 16 : index
    %c48_160 = arith.constant 48 : index
    %114 = vector.load %arg9[%c16_159, %c48_160] : memref<32x128xf32, #tpu.memory_space<vmem>>, vector<4x8xf32>
    tpu.vector_store %arg9[%c16_159, %c48_160], %113 {strides = array<i32>} : memref<32x128xf32, #tpu.memory_space<vmem>>, vector<4x8xf32>,
    %c132 = arith.constant 132 : index
    %c0_161 = arith.constant 0 : index
    %115 = tpu.strided_load %arg7[%c132, %c0_161] {strides = array<i32: 2, 1>} : memref<200x8xf32, #tpu.memory_space<vmem>>, vector<4x8xf32>
    %c20_162 = arith.constant 20 : index
    %c48_163 = arith.constant 48 : index
    %116 = vector.load %arg9[%c20_162, %c48_163] : memref<32x128xf32, #tpu.memory_space<vmem>>, vector<4x8xf32>
    tpu.vector_store %arg9[%c20_162, %c48_163], %115 {strides = array<i32>} : memref<32x128xf32, #tpu.memory_space<vmem>>, vector<4x8xf32>,
    %c152 = arith.constant 152 : index
    %c0_164 = arith.constant 0 : index
    %117 = tpu.strided_load %arg7[%c152, %c0_164] {strides = array<i32: 2, 1>} : memref<200x8xf32, #tpu.memory_space<vmem>>, vector<4x8xf32>
    %c24_165 = arith.constant 24 : index
    %c48_166 = arith.constant 48 : index
    %118 = vector.load %arg9[%c24_165, %c48_166] : memref<32x128xf32, #tpu.memory_space<vmem>>, vector<4x8xf32>
    tpu.vector_store %arg9[%c24_165, %c48_166], %117 {strides = array<i32>} : memref<32x128xf32, #tpu.memory_space<vmem>>, vector<4x8xf32>,
    %c172 = arith.constant 172 : index
    %c0_167 = arith.constant 0 : index
    %119 = tpu.strided_load %arg7[%c172, %c0_167] {strides = array<i32: 2, 1>} : memref<200x8xf32, #tpu.memory_space<vmem>>, vector<4x8xf32>
    %c28_168 = arith.constant 28 : index
    %c48_169 = arith.constant 48 : index
    %120 = vector.load %arg9[%c28_168, %c48_169] : memref<32x128xf32, #tpu.memory_space<vmem>>, vector<4x8xf32>
    tpu.vector_store %arg9[%c28_168, %c48_169], %119 {strides = array<i32>} : memref<32x128xf32, #tpu.memory_space<vmem>>, vector<4x8xf32>,
    %c13 = arith.constant 13 : index
    %c0_170 = arith.constant 0 : index
    %121 = tpu.strided_load %arg7[%c13, %c0_170] {strides = array<i32: 2, 1>} : memref<200x8xf32, #tpu.memory_space<vmem>>, vector<4x8xf32>
    %c0_171 = arith.constant 0 : index
    %c56 = arith.constant 56 : index
    %122 = vector.load %arg9[%c0_171, %c56] : memref<32x128xf32, #tpu.memory_space<vmem>>, vector<4x8xf32>
    tpu.vector_store %arg9[%c0_171, %c56], %121 {strides = array<i32>} : memref<32x128xf32, #tpu.memory_space<vmem>>, vector<4x8xf32>,
    %c33 = arith.constant 33 : index
    %c0_172 = arith.constant 0 : index
    %123 = tpu.strided_load %arg7[%c33, %c0_172] {strides = array<i32: 2, 1>} : memref<200x8xf32, #tpu.memory_space<vmem>>, vector<4x8xf32>
    %c4_173 = arith.constant 4 : index
    %c56_174 = arith.constant 56 : index
    %124 = vector.load %arg9[%c4_173, %c56_174] : memref<32x128xf32, #tpu.memory_space<vmem>>, vector<4x8xf32>
    tpu.vector_store %arg9[%c4_173, %c56_174], %123 {strides = array<i32>} : memref<32x128xf32, #tpu.memory_space<vmem>>, vector<4x8xf32>,
    %c53 = arith.constant 53 : index
    %c0_175 = arith.constant 0 : index
    %125 = tpu.strided_load %arg7[%c53, %c0_175] {strides = array<i32: 2, 1>} : memref<200x8xf32, #tpu.memory_space<vmem>>, vector<4x8xf32>
    %c8_176 = arith.constant 8 : index
    %c56_177 = arith.constant 56 : index
    %126 = vector.load %arg9[%c8_176, %c56_177] : memref<32x128xf32, #tpu.memory_space<vmem>>, vector<4x8xf32>
    tpu.vector_store %arg9[%c8_176, %c56_177], %125 {strides = array<i32>} : memref<32x128xf32, #tpu.memory_space<vmem>>, vector<4x8xf32>,
    %c73 = arith.constant 73 : index
    %c0_178 = arith.constant 0 : index
    %127 = tpu.strided_load %arg7[%c73, %c0_178] {strides = array<i32: 2, 1>} : memref<200x8xf32, #tpu.memory_space<vmem>>, vector<4x8xf32>
    %c12_179 = arith.constant 12 : index
    %c56_180 = arith.constant 56 : index
    %128 = vector.load %arg9[%c12_179, %c56_180] : memref<32x128xf32, #tpu.memory_space<vmem>>, vector<4x8xf32>
    tpu.vector_store %arg9[%c12_179, %c56_180], %127 {strides = array<i32>} : memref<32x128xf32, #tpu.memory_space<vmem>>, vector<4x8xf32>,
    %c113 = arith.constant 113 : index
    %c0_181 = arith.constant 0 : index
    %129 = tpu.strided_load %arg7[%c113, %c0_181] {strides = array<i32: 2, 1>} : memref<200x8xf32, #tpu.memory_space<vmem>>, vector<4x8xf32>
    %c16_182 = arith.constant 16 : index
    %c56_183 = arith.constant 56 : index
    %130 = vector.load %arg9[%c16_182, %c56_183] : memref<32x128xf32, #tpu.memory_space<vmem>>, vector<4x8xf32>
    tpu.vector_store %arg9[%c16_182, %c56_183], %129 {strides = array<i32>} : memref<32x128xf32, #tpu.memory_space<vmem>>, vector<4x8xf32>,
    %c133 = arith.constant 133 : index
    %c0_184 = arith.constant 0 : index
    %131 = tpu.strided_load %arg7[%c133, %c0_184] {strides = array<i32: 2, 1>} : memref<200x8xf32, #tpu.memory_space<vmem>>, vector<4x8xf32>
    %c20_185 = arith.constant 20 : index
    %c56_186 = arith.constant 56 : index
    %132 = vector.load %arg9[%c20_185, %c56_186] : memref<32x128xf32, #tpu.memory_space<vmem>>, vector<4x8xf32>
    tpu.vector_store %arg9[%c20_185, %c56_186], %131 {strides = array<i32>} : memref<32x128xf32, #tpu.memory_space<vmem>>, vector<4x8xf32>,
    %c153 = arith.constant 153 : index
    %c0_187 = arith.constant 0 : index
    %133 = tpu.strided_load %arg7[%c153, %c0_187] {strides = array<i32: 2, 1>} : memref<200x8xf32, #tpu.memory_space<vmem>>, vector<4x8xf32>
    %c24_188 = arith.constant 24 : index
    %c56_189 = arith.constant 56 : index
    %134 = vector.load %arg9[%c24_188, %c56_189] : memref<32x128xf32, #tpu.memory_space<vmem>>, vector<4x8xf32>
    tpu.vector_store %arg9[%c24_188, %c56_189], %133 {strides = array<i32>} : memref<32x128xf32, #tpu.memory_space<vmem>>, vector<4x8xf32>,
    %c173 = arith.constant 173 : index
    %c0_190 = arith.constant 0 : index
    %135 = tpu.strided_load %arg7[%c173, %c0_190] {strides = array<i32: 2, 1>} : memref<200x8xf32, #tpu.memory_space<vmem>>, vector<4x8xf32>
    %c28_191 = arith.constant 28 : index
    %c56_192 = arith.constant 56 : index
    %136 = vector.load %arg9[%c28_191, %c56_192] : memref<32x128xf32, #tpu.memory_space<vmem>>, vector<4x8xf32>
    tpu.vector_store %arg9[%c28_191, %c56_192], %135 {strides = array<i32>} : memref<32x128xf32, #tpu.memory_space<vmem>>, vector<4x8xf32>,
    %c20_193 = arith.constant 20 : index
    %c0_194 = arith.constant 0 : index
    %137 = tpu.strided_load %arg7[%c20_193, %c0_194] {strides = array<i32: 2, 1>} : memref<200x8xf32, #tpu.memory_space<vmem>>, vector<4x8xf32>
    %c0_195 = arith.constant 0 : index
    %c64 = arith.constant 64 : index
    %138 = vector.load %arg9[%c0_195, %c64] : memref<32x128xf32, #tpu.memory_space<vmem>>, vector<4x8xf32>
    tpu.vector_store %arg9[%c0_195, %c64], %137 {strides = array<i32>} : memref<32x128xf32, #tpu.memory_space<vmem>>, vector<4x8xf32>,
    %c40_196 = arith.constant 40 : index
    %c0_197 = arith.constant 0 : index
    %139 = tpu.strided_load %arg7[%c40_196, %c0_197] {strides = array<i32: 2, 1>} : memref<200x8xf32, #tpu.memory_space<vmem>>, vector<4x8xf32>
    %c4_198 = arith.constant 4 : index
    %c64_199 = arith.constant 64 : index
    %140 = vector.load %arg9[%c4_198, %c64_199] : memref<32x128xf32, #tpu.memory_space<vmem>>, vector<4x8xf32>
    tpu.vector_store %arg9[%c4_198, %c64_199], %139 {strides = array<i32>} : memref<32x128xf32, #tpu.memory_space<vmem>>, vector<4x8xf32>,
    %c60_200 = arith.constant 60 : index
    %c0_201 = arith.constant 0 : index
    %141 = tpu.strided_load %arg7[%c60_200, %c0_201] {strides = array<i32: 2, 1>} : memref<200x8xf32, #tpu.memory_space<vmem>>, vector<4x8xf32>
    %c8_202 = arith.constant 8 : index
    %c64_203 = arith.constant 64 : index
    %142 = vector.load %arg9[%c8_202, %c64_203] : memref<32x128xf32, #tpu.memory_space<vmem>>, vector<4x8xf32>
    tpu.vector_store %arg9[%c8_202, %c64_203], %141 {strides = array<i32>} : memref<32x128xf32, #tpu.memory_space<vmem>>, vector<4x8xf32>,
    %c80 = arith.constant 80 : index
    %c0_204 = arith.constant 0 : index
    %143 = tpu.strided_load %arg7[%c80, %c0_204] {strides = array<i32: 2, 1>} : memref<200x8xf32, #tpu.memory_space<vmem>>, vector<4x8xf32>
    %c12_205 = arith.constant 12 : index
    %c64_206 = arith.constant 64 : index
    %144 = vector.load %arg9[%c12_205, %c64_206] : memref<32x128xf32, #tpu.memory_space<vmem>>, vector<4x8xf32>
    tpu.vector_store %arg9[%c12_205, %c64_206], %143 {strides = array<i32>} : memref<32x128xf32, #tpu.memory_space<vmem>>, vector<4x8xf32>,
    %c120_207 = arith.constant 120 : index
    %c0_208 = arith.constant 0 : index
    %145 = tpu.strided_load %arg7[%c120_207, %c0_208] {strides = array<i32: 2, 1>} : memref<200x8xf32, #tpu.memory_space<vmem>>, vector<4x8xf32>
    %c16_209 = arith.constant 16 : index
    %c64_210 = arith.constant 64 : index
    %146 = vector.load %arg9[%c16_209, %c64_210] : memref<32x128xf32, #tpu.memory_space<vmem>>, vector<4x8xf32>
    tpu.vector_store %arg9[%c16_209, %c64_210], %145 {strides = array<i32>} : memref<32x128xf32, #tpu.memory_space<vmem>>, vector<4x8xf32>,
    %c140_211 = arith.constant 140 : index
    %c0_212 = arith.constant 0 : index
    %147 = tpu.strided_load %arg7[%c140_211, %c0_212] {strides = array<i32: 2, 1>} : memref<200x8xf32, #tpu.memory_space<vmem>>, vector<4x8xf32>
    %c20_213 = arith.constant 20 : index
    %c64_214 = arith.constant 64 : index
    %148 = vector.load %arg9[%c20_213, %c64_214] : memref<32x128xf32, #tpu.memory_space<vmem>>, vector<4x8xf32>
    tpu.vector_store %arg9[%c20_213, %c64_214], %147 {strides = array<i32>} : memref<32x128xf32, #tpu.memory_space<vmem>>, vector<4x8xf32>,
    %c160_215 = arith.constant 160 : index
    %c0_216 = arith.constant 0 : index
    %149 = tpu.strided_load %arg7[%c160_215, %c0_216] {strides = array<i32: 2, 1>} : memref<200x8xf32, #tpu.memory_space<vmem>>, vector<4x8xf32>
    %c24_217 = arith.constant 24 : index
    %c64_218 = arith.constant 64 : index
    %150 = vector.load %arg9[%c24_217, %c64_218] : memref<32x128xf32, #tpu.memory_space<vmem>>, vector<4x8xf32>
    tpu.vector_store %arg9[%c24_217, %c64_218], %149 {strides = array<i32>} : memref<32x128xf32, #tpu.memory_space<vmem>>, vector<4x8xf32>,
    %c180 = arith.constant 180 : index
    %c0_219 = arith.constant 0 : index
    %151 = tpu.strided_load %arg7[%c180, %c0_219] {strides = array<i32: 2, 1>} : memref<200x8xf32, #tpu.memory_space<vmem>>, vector<4x8xf32>
    %c28_220 = arith.constant 28 : index
    %c64_221 = arith.constant 64 : index
    %152 = vector.load %arg9[%c28_220, %c64_221] : memref<32x128xf32, #tpu.memory_space<vmem>>, vector<4x8xf32>
    tpu.vector_store %arg9[%c28_220, %c64_221], %151 {strides = array<i32>} : memref<32x128xf32, #tpu.memory_space<vmem>>, vector<4x8xf32>,
    %c21_222 = arith.constant 21 : index
    %c0_223 = arith.constant 0 : index
    %153 = tpu.strided_load %arg7[%c21_222, %c0_223] {strides = array<i32: 2, 1>} : memref<200x8xf32, #tpu.memory_space<vmem>>, vector<4x8xf32>
    %c0_224 = arith.constant 0 : index
    %c72_225 = arith.constant 72 : index
    %154 = vector.load %arg9[%c0_224, %c72_225] : memref<32x128xf32, #tpu.memory_space<vmem>>, vector<4x8xf32>
    tpu.vector_store %arg9[%c0_224, %c72_225], %153 {strides = array<i32>} : memref<32x128xf32, #tpu.memory_space<vmem>>, vector<4x8xf32>,
    %c41_226 = arith.constant 41 : index
    %c0_227 = arith.constant 0 : index
    %155 = tpu.strided_load %arg7[%c41_226, %c0_227] {strides = array<i32: 2, 1>} : memref<200x8xf32, #tpu.memory_space<vmem>>, vector<4x8xf32>
    %c4_228 = arith.constant 4 : index
    %c72_229 = arith.constant 72 : index
    %156 = vector.load %arg9[%c4_228, %c72_229] : memref<32x128xf32, #tpu.memory_space<vmem>>, vector<4x8xf32>
    tpu.vector_store %arg9[%c4_228, %c72_229], %155 {strides = array<i32>} : memref<32x128xf32, #tpu.memory_space<vmem>>, vector<4x8xf32>,
    %c61_230 = arith.constant 61 : index
    %c0_231 = arith.constant 0 : index
    %157 = tpu.strided_load %arg7[%c61_230, %c0_231] {strides = array<i32: 2, 1>} : memref<200x8xf32, #tpu.memory_space<vmem>>, vector<4x8xf32>
    %c8_232 = arith.constant 8 : index
    %c72_233 = arith.constant 72 : index
    %158 = vector.load %arg9[%c8_232, %c72_233] : memref<32x128xf32, #tpu.memory_space<vmem>>, vector<4x8xf32>
    tpu.vector_store %arg9[%c8_232, %c72_233], %157 {strides = array<i32>} : memref<32x128xf32, #tpu.memory_space<vmem>>, vector<4x8xf32>,
    %c81 = arith.constant 81 : index
    %c0_234 = arith.constant 0 : index
    %159 = tpu.strided_load %arg7[%c81, %c0_234] {strides = array<i32: 2, 1>} : memref<200x8xf32, #tpu.memory_space<vmem>>, vector<4x8xf32>
    %c12_235 = arith.constant 12 : index
    %c72_236 = arith.constant 72 : index
    %160 = vector.load %arg9[%c12_235, %c72_236] : memref<32x128xf32, #tpu.memory_space<vmem>>, vector<4x8xf32>
    tpu.vector_store %arg9[%c12_235, %c72_236], %159 {strides = array<i32>} : memref<32x128xf32, #tpu.memory_space<vmem>>, vector<4x8xf32>,
    %c121_237 = arith.constant 121 : index
    %c0_238 = arith.constant 0 : index
    %161 = tpu.strided_load %arg7[%c121_237, %c0_238] {strides = array<i32: 2, 1>} : memref<200x8xf32, #tpu.memory_space<vmem>>, vector<4x8xf32>
    %c16_239 = arith.constant 16 : index
    %c72_240 = arith.constant 72 : index
    %162 = vector.load %arg9[%c16_239, %c72_240] : memref<32x128xf32, #tpu.memory_space<vmem>>, vector<4x8xf32>
    tpu.vector_store %arg9[%c16_239, %c72_240], %161 {strides = array<i32>} : memref<32x128xf32, #tpu.memory_space<vmem>>, vector<4x8xf32>,
    %c141_241 = arith.constant 141 : index
    %c0_242 = arith.constant 0 : index
    %163 = tpu.strided_load %arg7[%c141_241, %c0_242] {strides = array<i32: 2, 1>} : memref<200x8xf32, #tpu.memory_space<vmem>>, vector<4x8xf32>
    %c20_243 = arith.constant 20 : index
    %c72_244 = arith.constant 72 : index
    %164 = vector.load %arg9[%c20_243, %c72_244] : memref<32x128xf32, #tpu.memory_space<vmem>>, vector<4x8xf32>
    tpu.vector_store %arg9[%c20_243, %c72_244], %163 {strides = array<i32>} : memref<32x128xf32, #tpu.memory_space<vmem>>, vector<4x8xf32>,
    %c161_245 = arith.constant 161 : index
    %c0_246 = arith.constant 0 : index
    %165 = tpu.strided_load %arg7[%c161_245, %c0_246] {strides = array<i32: 2, 1>} : memref<200x8xf32, #tpu.memory_space<vmem>>, vector<4x8xf32>
    %c24_247 = arith.constant 24 : index
    %c72_248 = arith.constant 72 : index
    %166 = vector.load %arg9[%c24_247, %c72_248] : memref<32x128xf32, #tpu.memory_space<vmem>>, vector<4x8xf32>
    tpu.vector_store %arg9[%c24_247, %c72_248], %165 {strides = array<i32>} : memref<32x128xf32, #tpu.memory_space<vmem>>, vector<4x8xf32>,
    %c181 = arith.constant 181 : index
    %c0_249 = arith.constant 0 : index
    %167 = tpu.strided_load %arg7[%c181, %c0_249] {strides = array<i32: 2, 1>} : memref<200x8xf32, #tpu.memory_space<vmem>>, vector<4x8xf32>
    %c28_250 = arith.constant 28 : index
    %c72_251 = arith.constant 72 : index
    %168 = vector.load %arg9[%c28_250, %c72_251] : memref<32x128xf32, #tpu.memory_space<vmem>>, vector<4x8xf32>
    tpu.vector_store %arg9[%c28_250, %c72_251], %167 {strides = array<i32>} : memref<32x128xf32, #tpu.memory_space<vmem>>, vector<4x8xf32>,
    %c22_252 = arith.constant 22 : index
    %c0_253 = arith.constant 0 : index
    %169 = tpu.strided_load %arg7[%c22_252, %c0_253] {strides = array<i32: 2, 1>} : memref<200x8xf32, #tpu.memory_space<vmem>>, vector<4x8xf32>
    %c0_254 = arith.constant 0 : index
    %c80_255 = arith.constant 80 : index
    %170 = vector.load %arg9[%c0_254, %c80_255] : memref<32x128xf32, #tpu.memory_space<vmem>>, vector<4x8xf32>
    tpu.vector_store %arg9[%c0_254, %c80_255], %169 {strides = array<i32>} : memref<32x128xf32, #tpu.memory_space<vmem>>, vector<4x8xf32>,
    %c42_256 = arith.constant 42 : index
    %c0_257 = arith.constant 0 : index
    %171 = tpu.strided_load %arg7[%c42_256, %c0_257] {strides = array<i32: 2, 1>} : memref<200x8xf32, #tpu.memory_space<vmem>>, vector<4x8xf32>
    %c4_258 = arith.constant 4 : index
    %c80_259 = arith.constant 80 : index
    %172 = vector.load %arg9[%c4_258, %c80_259] : memref<32x128xf32, #tpu.memory_space<vmem>>, vector<4x8xf32>
    tpu.vector_store %arg9[%c4_258, %c80_259], %171 {strides = array<i32>} : memref<32x128xf32, #tpu.memory_space<vmem>>, vector<4x8xf32>,
    %c62_260 = arith.constant 62 : index
    %c0_261 = arith.constant 0 : index
    %173 = tpu.strided_load %arg7[%c62_260, %c0_261] {strides = array<i32: 2, 1>} : memref<200x8xf32, #tpu.memory_space<vmem>>, vector<4x8xf32>
    %c8_262 = arith.constant 8 : index
    %c80_263 = arith.constant 80 : index
    %174 = vector.load %arg9[%c8_262, %c80_263] : memref<32x128xf32, #tpu.memory_space<vmem>>, vector<4x8xf32>
    tpu.vector_store %arg9[%c8_262, %c80_263], %173 {strides = array<i32>} : memref<32x128xf32, #tpu.memory_space<vmem>>, vector<4x8xf32>,
    %c82 = arith.constant 82 : index
    %c0_264 = arith.constant 0 : index
    %175 = tpu.strided_load %arg7[%c82, %c0_264] {strides = array<i32: 2, 1>} : memref<200x8xf32, #tpu.memory_space<vmem>>, vector<4x8xf32>
    %c12_265 = arith.constant 12 : index
    %c80_266 = arith.constant 80 : index
    %176 = vector.load %arg9[%c12_265, %c80_266] : memref<32x128xf32, #tpu.memory_space<vmem>>, vector<4x8xf32>
    tpu.vector_store %arg9[%c12_265, %c80_266], %175 {strides = array<i32>} : memref<32x128xf32, #tpu.memory_space<vmem>>, vector<4x8xf32>,
    %c122_267 = arith.constant 122 : index
    %c0_268 = arith.constant 0 : index
    %177 = tpu.strided_load %arg7[%c122_267, %c0_268] {strides = array<i32: 2, 1>} : memref<200x8xf32, #tpu.memory_space<vmem>>, vector<4x8xf32>
    %c16_269 = arith.constant 16 : index
    %c80_270 = arith.constant 80 : index
    %178 = vector.load %arg9[%c16_269, %c80_270] : memref<32x128xf32, #tpu.memory_space<vmem>>, vector<4x8xf32>
    tpu.vector_store %arg9[%c16_269, %c80_270], %177 {strides = array<i32>} : memref<32x128xf32, #tpu.memory_space<vmem>>, vector<4x8xf32>,
    %c142_271 = arith.constant 142 : index
    %c0_272 = arith.constant 0 : index
    %179 = tpu.strided_load %arg7[%c142_271, %c0_272] {strides = array<i32: 2, 1>} : memref<200x8xf32, #tpu.memory_space<vmem>>, vector<4x8xf32>
    %c20_273 = arith.constant 20 : index
    %c80_274 = arith.constant 80 : index
    %180 = vector.load %arg9[%c20_273, %c80_274] : memref<32x128xf32, #tpu.memory_space<vmem>>, vector<4x8xf32>
    tpu.vector_store %arg9[%c20_273, %c80_274], %179 {strides = array<i32>} : memref<32x128xf32, #tpu.memory_space<vmem>>, vector<4x8xf32>,
    %c162_275 = arith.constant 162 : index
    %c0_276 = arith.constant 0 : index
    %181 = tpu.strided_load %arg7[%c162_275, %c0_276] {strides = array<i32: 2, 1>} : memref<200x8xf32, #tpu.memory_space<vmem>>, vector<4x8xf32>
    %c24_277 = arith.constant 24 : index
    %c80_278 = arith.constant 80 : index
    %182 = vector.load %arg9[%c24_277, %c80_278] : memref<32x128xf32, #tpu.memory_space<vmem>>, vector<4x8xf32>
    tpu.vector_store %arg9[%c24_277, %c80_278], %181 {strides = array<i32>} : memref<32x128xf32, #tpu.memory_space<vmem>>, vector<4x8xf32>,
    %c182 = arith.constant 182 : index
    %c0_279 = arith.constant 0 : index
    %183 = tpu.strided_load %arg7[%c182, %c0_279] {strides = array<i32: 2, 1>} : memref<200x8xf32, #tpu.memory_space<vmem>>, vector<4x8xf32>
    %c28_280 = arith.constant 28 : index
    %c80_281 = arith.constant 80 : index
    %184 = vector.load %arg9[%c28_280, %c80_281] : memref<32x128xf32, #tpu.memory_space<vmem>>, vector<4x8xf32>
    tpu.vector_store %arg9[%c28_280, %c80_281], %183 {strides = array<i32>} : memref<32x128xf32, #tpu.memory_space<vmem>>, vector<4x8xf32>,
    %c23_282 = arith.constant 23 : index
    %c0_283 = arith.constant 0 : index
    %185 = tpu.strided_load %arg7[%c23_282, %c0_283] {strides = array<i32: 2, 1>} : memref<200x8xf32, #tpu.memory_space<vmem>>, vector<4x8xf32>
    %c0_284 = arith.constant 0 : index
    %c88 = arith.constant 88 : index
    %186 = vector.load %arg9[%c0_284, %c88] : memref<32x128xf32, #tpu.memory_space<vmem>>, vector<4x8xf32>
    tpu.vector_store %arg9[%c0_284, %c88], %185 {strides = array<i32>} : memref<32x128xf32, #tpu.memory_space<vmem>>, vector<4x8xf32>,
    %c43_285 = arith.constant 43 : index
    %c0_286 = arith.constant 0 : index
    %187 = tpu.strided_load %arg7[%c43_285, %c0_286] {strides = array<i32: 2, 1>} : memref<200x8xf32, #tpu.memory_space<vmem>>, vector<4x8xf32>
    %c4_287 = arith.constant 4 : index
    %c88_288 = arith.constant 88 : index
    %188 = vector.load %arg9[%c4_287, %c88_288] : memref<32x128xf32, #tpu.memory_space<vmem>>, vector<4x8xf32>
    tpu.vector_store %arg9[%c4_287, %c88_288], %187 {strides = array<i32>} : memref<32x128xf32, #tpu.memory_space<vmem>>, vector<4x8xf32>,
    %c63_289 = arith.constant 63 : index
    %c0_290 = arith.constant 0 : index
    %189 = tpu.strided_load %arg7[%c63_289, %c0_290] {strides = array<i32: 2, 1>} : memref<200x8xf32, #tpu.memory_space<vmem>>, vector<4x8xf32>
    %c8_291 = arith.constant 8 : index
    %c88_292 = arith.constant 88 : index
    %190 = vector.load %arg9[%c8_291, %c88_292] : memref<32x128xf32, #tpu.memory_space<vmem>>, vector<4x8xf32>
    tpu.vector_store %arg9[%c8_291, %c88_292], %189 {strides = array<i32>} : memref<32x128xf32, #tpu.memory_space<vmem>>, vector<4x8xf32>,
    %c83 = arith.constant 83 : index
    %c0_293 = arith.constant 0 : index
    %191 = tpu.strided_load %arg7[%c83, %c0_293] {strides = array<i32: 2, 1>} : memref<200x8xf32, #tpu.memory_space<vmem>>, vector<4x8xf32>
    %c12_294 = arith.constant 12 : index
    %c88_295 = arith.constant 88 : index
    %192 = vector.load %arg9[%c12_294, %c88_295] : memref<32x128xf32, #tpu.memory_space<vmem>>, vector<4x8xf32>
    tpu.vector_store %arg9[%c12_294, %c88_295], %191 {strides = array<i32>} : memref<32x128xf32, #tpu.memory_space<vmem>>, vector<4x8xf32>,
    %c123_296 = arith.constant 123 : index
    %c0_297 = arith.constant 0 : index
    %193 = tpu.strided_load %arg7[%c123_296, %c0_297] {strides = array<i32: 2, 1>} : memref<200x8xf32, #tpu.memory_space<vmem>>, vector<4x8xf32>
    %c16_298 = arith.constant 16 : index
    %c88_299 = arith.constant 88 : index
    %194 = vector.load %arg9[%c16_298, %c88_299] : memref<32x128xf32, #tpu.memory_space<vmem>>, vector<4x8xf32>
    tpu.vector_store %arg9[%c16_298, %c88_299], %193 {strides = array<i32>} : memref<32x128xf32, #tpu.memory_space<vmem>>, vector<4x8xf32>,
    %c143_300 = arith.constant 143 : index
    %c0_301 = arith.constant 0 : index
    %195 = tpu.strided_load %arg7[%c143_300, %c0_301] {strides = array<i32: 2, 1>} : memref<200x8xf32, #tpu.memory_space<vmem>>, vector<4x8xf32>
    %c20_302 = arith.constant 20 : index
    %c88_303 = arith.constant 88 : index
    %196 = vector.load %arg9[%c20_302, %c88_303] : memref<32x128xf32, #tpu.memory_space<vmem>>, vector<4x8xf32>
    tpu.vector_store %arg9[%c20_302, %c88_303], %195 {strides = array<i32>} : memref<32x128xf32, #tpu.memory_space<vmem>>, vector<4x8xf32>,
    %c163_304 = arith.constant 163 : index
    %c0_305 = arith.constant 0 : index
    %197 = tpu.strided_load %arg7[%c163_304, %c0_305] {strides = array<i32: 2, 1>} : memref<200x8xf32, #tpu.memory_space<vmem>>, vector<4x8xf32>
    %c24_306 = arith.constant 24 : index
    %c88_307 = arith.constant 88 : index
    %198 = vector.load %arg9[%c24_306, %c88_307] : memref<32x128xf32, #tpu.memory_space<vmem>>, vector<4x8xf32>
    tpu.vector_store %arg9[%c24_306, %c88_307], %197 {strides = array<i32>} : memref<32x128xf32, #tpu.memory_space<vmem>>, vector<4x8xf32>,
    %c183 = arith.constant 183 : index
    %c0_308 = arith.constant 0 : index
    %199 = tpu.strided_load %arg7[%c183, %c0_308] {strides = array<i32: 2, 1>} : memref<200x8xf32, #tpu.memory_space<vmem>>, vector<4x8xf32>
    %c28_309 = arith.constant 28 : index
    %c88_310 = arith.constant 88 : index
    %200 = vector.load %arg9[%c28_309, %c88_310] : memref<32x128xf32, #tpu.memory_space<vmem>>, vector<4x8xf32>
    tpu.vector_store %arg9[%c28_309, %c88_310], %199 {strides = array<i32>} : memref<32x128xf32, #tpu.memory_space<vmem>>, vector<4x8xf32>,
    %c30_311 = arith.constant 30 : index
    %c0_312 = arith.constant 0 : index
    %201 = tpu.strided_load %arg7[%c30_311, %c0_312] {strides = array<i32: 2, 1>} : memref<200x8xf32, #tpu.memory_space<vmem>>, vector<4x8xf32>
    %c0_313 = arith.constant 0 : index
    %c96 = arith.constant 96 : index
    %202 = vector.load %arg9[%c0_313, %c96] : memref<32x128xf32, #tpu.memory_space<vmem>>, vector<4x8xf32>
    tpu.vector_store %arg9[%c0_313, %c96], %201 {strides = array<i32>} : memref<32x128xf32, #tpu.memory_space<vmem>>, vector<4x8xf32>,
    %c50_314 = arith.constant 50 : index
    %c0_315 = arith.constant 0 : index
    %203 = tpu.strided_load %arg7[%c50_314, %c0_315] {strides = array<i32: 2, 1>} : memref<200x8xf32, #tpu.memory_space<vmem>>, vector<4x8xf32>
    %c4_316 = arith.constant 4 : index
    %c96_317 = arith.constant 96 : index
    %204 = vector.load %arg9[%c4_316, %c96_317] : memref<32x128xf32, #tpu.memory_space<vmem>>, vector<4x8xf32>
    tpu.vector_store %arg9[%c4_316, %c96_317], %203 {strides = array<i32>} : memref<32x128xf32, #tpu.memory_space<vmem>>, vector<4x8xf32>,
    %c70_318 = arith.constant 70 : index
    %c0_319 = arith.constant 0 : index
    %205 = tpu.strided_load %arg7[%c70_318, %c0_319] {strides = array<i32: 2, 1>} : memref<200x8xf32, #tpu.memory_space<vmem>>, vector<4x8xf32>
    %c8_320 = arith.constant 8 : index
    %c96_321 = arith.constant 96 : index
    %206 = vector.load %arg9[%c8_320, %c96_321] : memref<32x128xf32, #tpu.memory_space<vmem>>, vector<4x8xf32>
    tpu.vector_store %arg9[%c8_320, %c96_321], %205 {strides = array<i32>} : memref<32x128xf32, #tpu.memory_space<vmem>>, vector<4x8xf32>,
    %c90 = arith.constant 90 : index
    %c0_322 = arith.constant 0 : index
    %207 = tpu.strided_load %arg7[%c90, %c0_322] {strides = array<i32: 2, 1>} : memref<200x8xf32, #tpu.memory_space<vmem>>, vector<4x8xf32>
    %c12_323 = arith.constant 12 : index
    %c96_324 = arith.constant 96 : index
    %208 = vector.load %arg9[%c12_323, %c96_324] : memref<32x128xf32, #tpu.memory_space<vmem>>, vector<4x8xf32>
    tpu.vector_store %arg9[%c12_323, %c96_324], %207 {strides = array<i32>} : memref<32x128xf32, #tpu.memory_space<vmem>>, vector<4x8xf32>,
    %c130_325 = arith.constant 130 : index
    %c0_326 = arith.constant 0 : index
    %209 = tpu.strided_load %arg7[%c130_325, %c0_326] {strides = array<i32: 2, 1>} : memref<200x8xf32, #tpu.memory_space<vmem>>, vector<4x8xf32>
    %c16_327 = arith.constant 16 : index
    %c96_328 = arith.constant 96 : index
    %210 = vector.load %arg9[%c16_327, %c96_328] : memref<32x128xf32, #tpu.memory_space<vmem>>, vector<4x8xf32>
    tpu.vector_store %arg9[%c16_327, %c96_328], %209 {strides = array<i32>} : memref<32x128xf32, #tpu.memory_space<vmem>>, vector<4x8xf32>,
    %c150_329 = arith.constant 150 : index
    %c0_330 = arith.constant 0 : index
    %211 = tpu.strided_load %arg7[%c150_329, %c0_330] {strides = array<i32: 2, 1>} : memref<200x8xf32, #tpu.memory_space<vmem>>, vector<4x8xf32>
    %c20_331 = arith.constant 20 : index
    %c96_332 = arith.constant 96 : index
    %212 = vector.load %arg9[%c20_331, %c96_332] : memref<32x128xf32, #tpu.memory_space<vmem>>, vector<4x8xf32>
    tpu.vector_store %arg9[%c20_331, %c96_332], %211 {strides = array<i32>} : memref<32x128xf32, #tpu.memory_space<vmem>>, vector<4x8xf32>,
    %c170_333 = arith.constant 170 : index
    %c0_334 = arith.constant 0 : index
    %213 = tpu.strided_load %arg7[%c170_333, %c0_334] {strides = array<i32: 2, 1>} : memref<200x8xf32, #tpu.memory_space<vmem>>, vector<4x8xf32>
    %c24_335 = arith.constant 24 : index
    %c96_336 = arith.constant 96 : index
    %214 = vector.load %arg9[%c24_335, %c96_336] : memref<32x128xf32, #tpu.memory_space<vmem>>, vector<4x8xf32>
    tpu.vector_store %arg9[%c24_335, %c96_336], %213 {strides = array<i32>} : memref<32x128xf32, #tpu.memory_space<vmem>>, vector<4x8xf32>,
    %c190 = arith.constant 190 : index
    %c0_337 = arith.constant 0 : index
    %215 = tpu.strided_load %arg7[%c190, %c0_337] {strides = array<i32: 2, 1>} : memref<200x8xf32, #tpu.memory_space<vmem>>, vector<4x8xf32>
    %c28_338 = arith.constant 28 : index
    %c96_339 = arith.constant 96 : index
    %216 = vector.load %arg9[%c28_338, %c96_339] : memref<32x128xf32, #tpu.memory_space<vmem>>, vector<4x8xf32>
    tpu.vector_store %arg9[%c28_338, %c96_339], %215 {strides = array<i32>} : memref<32x128xf32, #tpu.memory_space<vmem>>, vector<4x8xf32>,
    %c31_340 = arith.constant 31 : index
    %c0_341 = arith.constant 0 : index
    %217 = tpu.strided_load %arg7[%c31_340, %c0_341] {strides = array<i32: 2, 1>} : memref<200x8xf32, #tpu.memory_space<vmem>>, vector<4x8xf32>
    %c0_342 = arith.constant 0 : index
    %c104 = arith.constant 104 : index
    %218 = vector.load %arg9[%c0_342, %c104] : memref<32x128xf32, #tpu.memory_space<vmem>>, vector<4x8xf32>
    tpu.vector_store %arg9[%c0_342, %c104], %217 {strides = array<i32>} : memref<32x128xf32, #tpu.memory_space<vmem>>, vector<4x8xf32>,
    %c51_343 = arith.constant 51 : index
    %c0_344 = arith.constant 0 : index
    %219 = tpu.strided_load %arg7[%c51_343, %c0_344] {strides = array<i32: 2, 1>} : memref<200x8xf32, #tpu.memory_space<vmem>>, vector<4x8xf32>
    %c4_345 = arith.constant 4 : index
    %c104_346 = arith.constant 104 : index
    %220 = vector.load %arg9[%c4_345, %c104_346] : memref<32x128xf32, #tpu.memory_space<vmem>>, vector<4x8xf32>
    tpu.vector_store %arg9[%c4_345, %c104_346], %219 {strides = array<i32>} : memref<32x128xf32, #tpu.memory_space<vmem>>, vector<4x8xf32>,
    %c71_347 = arith.constant 71 : index
    %c0_348 = arith.constant 0 : index
    %221 = tpu.strided_load %arg7[%c71_347, %c0_348] {strides = array<i32: 2, 1>} : memref<200x8xf32, #tpu.memory_space<vmem>>, vector<4x8xf32>
    %c8_349 = arith.constant 8 : index
    %c104_350 = arith.constant 104 : index
    %222 = vector.load %arg9[%c8_349, %c104_350] : memref<32x128xf32, #tpu.memory_space<vmem>>, vector<4x8xf32>
    tpu.vector_store %arg9[%c8_349, %c104_350], %221 {strides = array<i32>} : memref<32x128xf32, #tpu.memory_space<vmem>>, vector<4x8xf32>,
    %c91 = arith.constant 91 : index
    %c0_351 = arith.constant 0 : index
    %223 = tpu.strided_load %arg7[%c91, %c0_351] {strides = array<i32: 2, 1>} : memref<200x8xf32, #tpu.memory_space<vmem>>, vector<4x8xf32>
    %c12_352 = arith.constant 12 : index
    %c104_353 = arith.constant 104 : index
    %224 = vector.load %arg9[%c12_352, %c104_353] : memref<32x128xf32, #tpu.memory_space<vmem>>, vector<4x8xf32>
    tpu.vector_store %arg9[%c12_352, %c104_353], %223 {strides = array<i32>} : memref<32x128xf32, #tpu.memory_space<vmem>>, vector<4x8xf32>,
    %c131_354 = arith.constant 131 : index
    %c0_355 = arith.constant 0 : index
    %225 = tpu.strided_load %arg7[%c131_354, %c0_355] {strides = array<i32: 2, 1>} : memref<200x8xf32, #tpu.memory_space<vmem>>, vector<4x8xf32>
    %c16_356 = arith.constant 16 : index
    %c104_357 = arith.constant 104 : index
    %226 = vector.load %arg9[%c16_356, %c104_357] : memref<32x128xf32, #tpu.memory_space<vmem>>, vector<4x8xf32>
    tpu.vector_store %arg9[%c16_356, %c104_357], %225 {strides = array<i32>} : memref<32x128xf32, #tpu.memory_space<vmem>>, vector<4x8xf32>,
    %c151_358 = arith.constant 151 : index
    %c0_359 = arith.constant 0 : index
    %227 = tpu.strided_load %arg7[%c151_358, %c0_359] {strides = array<i32: 2, 1>} : memref<200x8xf32, #tpu.memory_space<vmem>>, vector<4x8xf32>
    %c20_360 = arith.constant 20 : index
    %c104_361 = arith.constant 104 : index
    %228 = vector.load %arg9[%c20_360, %c104_361] : memref<32x128xf32, #tpu.memory_space<vmem>>, vector<4x8xf32>
    tpu.vector_store %arg9[%c20_360, %c104_361], %227 {strides = array<i32>} : memref<32x128xf32, #tpu.memory_space<vmem>>, vector<4x8xf32>,
    %c171_362 = arith.constant 171 : index
    %c0_363 = arith.constant 0 : index
    %229 = tpu.strided_load %arg7[%c171_362, %c0_363] {strides = array<i32: 2, 1>} : memref<200x8xf32, #tpu.memory_space<vmem>>, vector<4x8xf32>
    %c24_364 = arith.constant 24 : index
    %c104_365 = arith.constant 104 : index
    %230 = vector.load %arg9[%c24_364, %c104_365] : memref<32x128xf32, #tpu.memory_space<vmem>>, vector<4x8xf32>
    tpu.vector_store %arg9[%c24_364, %c104_365], %229 {strides = array<i32>} : memref<32x128xf32, #tpu.memory_space<vmem>>, vector<4x8xf32>,
    %c191 = arith.constant 191 : index
    %c0_366 = arith.constant 0 : index
    %231 = tpu.strided_load %arg7[%c191, %c0_366] {strides = array<i32: 2, 1>} : memref<200x8xf32, #tpu.memory_space<vmem>>, vector<4x8xf32>
    %c28_367 = arith.constant 28 : index
    %c104_368 = arith.constant 104 : index
    %232 = vector.load %arg9[%c28_367, %c104_368] : memref<32x128xf32, #tpu.memory_space<vmem>>, vector<4x8xf32>
    tpu.vector_store %arg9[%c28_367, %c104_368], %231 {strides = array<i32>} : memref<32x128xf32, #tpu.memory_space<vmem>>, vector<4x8xf32>,
    %c32_369 = arith.constant 32 : index
    %c0_370 = arith.constant 0 : index
    %233 = tpu.strided_load %arg7[%c32_369, %c0_370] {strides = array<i32: 2, 1>} : memref<200x8xf32, #tpu.memory_space<vmem>>, vector<4x8xf32>
    %c0_371 = arith.constant 0 : index
    %c112_372 = arith.constant 112 : index
    %234 = vector.load %arg9[%c0_371, %c112_372] : memref<32x128xf32, #tpu.memory_space<vmem>>, vector<4x8xf32>
    tpu.vector_store %arg9[%c0_371, %c112_372], %233 {strides = array<i32>} : memref<32x128xf32, #tpu.memory_space<vmem>>, vector<4x8xf32>,
    %c52_373 = arith.constant 52 : index
    %c0_374 = arith.constant 0 : index
    %235 = tpu.strided_load %arg7[%c52_373, %c0_374] {strides = array<i32: 2, 1>} : memref<200x8xf32, #tpu.memory_space<vmem>>, vector<4x8xf32>
    %c4_375 = arith.constant 4 : index
    %c112_376 = arith.constant 112 : index
    %236 = vector.load %arg9[%c4_375, %c112_376] : memref<32x128xf32, #tpu.memory_space<vmem>>, vector<4x8xf32>
    tpu.vector_store %arg9[%c4_375, %c112_376], %235 {strides = array<i32>} : memref<32x128xf32, #tpu.memory_space<vmem>>, vector<4x8xf32>,
    %c72_377 = arith.constant 72 : index
    %c0_378 = arith.constant 0 : index
    %237 = tpu.strided_load %arg7[%c72_377, %c0_378] {strides = array<i32: 2, 1>} : memref<200x8xf32, #tpu.memory_space<vmem>>, vector<4x8xf32>
    %c8_379 = arith.constant 8 : index
    %c112_380 = arith.constant 112 : index
    %238 = vector.load %arg9[%c8_379, %c112_380] : memref<32x128xf32, #tpu.memory_space<vmem>>, vector<4x8xf32>
    tpu.vector_store %arg9[%c8_379, %c112_380], %237 {strides = array<i32>} : memref<32x128xf32, #tpu.memory_space<vmem>>, vector<4x8xf32>,
    %c92 = arith.constant 92 : index
    %c0_381 = arith.constant 0 : index
    %239 = tpu.strided_load %arg7[%c92, %c0_381] {strides = array<i32: 2, 1>} : memref<200x8xf32, #tpu.memory_space<vmem>>, vector<4x8xf32>
    %c12_382 = arith.constant 12 : index
    %c112_383 = arith.constant 112 : index
    %240 = vector.load %arg9[%c12_382, %c112_383] : memref<32x128xf32, #tpu.memory_space<vmem>>, vector<4x8xf32>
    tpu.vector_store %arg9[%c12_382, %c112_383], %239 {strides = array<i32>} : memref<32x128xf32, #tpu.memory_space<vmem>>, vector<4x8xf32>,
    %c132_384 = arith.constant 132 : index
    %c0_385 = arith.constant 0 : index
    %241 = tpu.strided_load %arg7[%c132_384, %c0_385] {strides = array<i32: 2, 1>} : memref<200x8xf32, #tpu.memory_space<vmem>>, vector<4x8xf32>
    %c16_386 = arith.constant 16 : index
    %c112_387 = arith.constant 112 : index
    %242 = vector.load %arg9[%c16_386, %c112_387] : memref<32x128xf32, #tpu.memory_space<vmem>>, vector<4x8xf32>
    tpu.vector_store %arg9[%c16_386, %c112_387], %241 {strides = array<i32>} : memref<32x128xf32, #tpu.memory_space<vmem>>, vector<4x8xf32>,
    %c152_388 = arith.constant 152 : index
    %c0_389 = arith.constant 0 : index
    %243 = tpu.strided_load %arg7[%c152_388, %c0_389] {strides = array<i32: 2, 1>} : memref<200x8xf32, #tpu.memory_space<vmem>>, vector<4x8xf32>
    %c20_390 = arith.constant 20 : index
    %c112_391 = arith.constant 112 : index
    %244 = vector.load %arg9[%c20_390, %c112_391] : memref<32x128xf32, #tpu.memory_space<vmem>>, vector<4x8xf32>
    tpu.vector_store %arg9[%c20_390, %c112_391], %243 {strides = array<i32>} : memref<32x128xf32, #tpu.memory_space<vmem>>, vector<4x8xf32>,
    %c172_392 = arith.constant 172 : index
    %c0_393 = arith.constant 0 : index
    %245 = tpu.strided_load %arg7[%c172_392, %c0_393] {strides = array<i32: 2, 1>} : memref<200x8xf32, #tpu.memory_space<vmem>>, vector<4x8xf32>
    %c24_394 = arith.constant 24 : index
    %c112_395 = arith.constant 112 : index
    %246 = vector.load %arg9[%c24_394, %c112_395] : memref<32x128xf32, #tpu.memory_space<vmem>>, vector<4x8xf32>
    tpu.vector_store %arg9[%c24_394, %c112_395], %245 {strides = array<i32>} : memref<32x128xf32, #tpu.memory_space<vmem>>, vector<4x8xf32>,
    %c192 = arith.constant 192 : index
    %c0_396 = arith.constant 0 : index
    %247 = tpu.strided_load %arg7[%c192, %c0_396] {strides = array<i32: 2, 1>} : memref<200x8xf32, #tpu.memory_space<vmem>>, vector<4x8xf32>
    %c28_397 = arith.constant 28 : index
    %c112_398 = arith.constant 112 : index
    %248 = vector.load %arg9[%c28_397, %c112_398] : memref<32x128xf32, #tpu.memory_space<vmem>>, vector<4x8xf32>
    tpu.vector_store %arg9[%c28_397, %c112_398], %247 {strides = array<i32>} : memref<32x128xf32, #tpu.memory_space<vmem>>, vector<4x8xf32>,
    %c33_399 = arith.constant 33 : index
    %c0_400 = arith.constant 0 : index
    %249 = tpu.strided_load %arg7[%c33_399, %c0_400] {strides = array<i32: 2, 1>} : memref<200x8xf32, #tpu.memory_space<vmem>>, vector<4x8xf32>
    %c0_401 = arith.constant 0 : index
    %c120_402 = arith.constant 120 : index
    %250 = vector.load %arg9[%c0_401, %c120_402] : memref<32x128xf32, #tpu.memory_space<vmem>>, vector<4x8xf32>
    tpu.vector_store %arg9[%c0_401, %c120_402], %249 {strides = array<i32>} : memref<32x128xf32, #tpu.memory_space<vmem>>, vector<4x8xf32>,
    %c53_403 = arith.constant 53 : index
    %c0_404 = arith.constant 0 : index
    %251 = tpu.strided_load %arg7[%c53_403, %c0_404] {strides = array<i32: 2, 1>} : memref<200x8xf32, #tpu.memory_space<vmem>>, vector<4x8xf32>
    %c4_405 = arith.constant 4 : index
    %c120_406 = arith.constant 120 : index
    %252 = vector.load %arg9[%c4_405, %c120_406] : memref<32x128xf32, #tpu.memory_space<vmem>>, vector<4x8xf32>
    tpu.vector_store %arg9[%c4_405, %c120_406], %251 {strides = array<i32>} : memref<32x128xf32, #tpu.memory_space<vmem>>, vector<4x8xf32>,
    %c73_407 = arith.constant 73 : index
    %c0_408 = arith.constant 0 : index
    %253 = tpu.strided_load %arg7[%c73_407, %c0_408] {strides = array<i32: 2, 1>} : memref<200x8xf32, #tpu.memory_space<vmem>>, vector<4x8xf32>
    %c8_409 = arith.constant 8 : index
    %c120_410 = arith.constant 120 : index
    %254 = vector.load %arg9[%c8_409, %c120_410] : memref<32x128xf32, #tpu.memory_space<vmem>>, vector<4x8xf32>
    tpu.vector_store %arg9[%c8_409, %c120_410], %253 {strides = array<i32>} : memref<32x128xf32, #tpu.memory_space<vmem>>, vector<4x8xf32>,
    %c93 = arith.constant 93 : index
    %c0_411 = arith.constant 0 : index
    %255 = tpu.strided_load %arg7[%c93, %c0_411] {strides = array<i32: 2, 1>} : memref<200x8xf32, #tpu.memory_space<vmem>>, vector<4x8xf32>
    %c12_412 = arith.constant 12 : index
    %c120_413 = arith.constant 120 : index
    %256 = vector.load %arg9[%c12_412, %c120_413] : memref<32x128xf32, #tpu.memory_space<vmem>>, vector<4x8xf32>
    tpu.vector_store %arg9[%c12_412, %c120_413], %255 {strides = array<i32>} : memref<32x128xf32, #tpu.memory_space<vmem>>, vector<4x8xf32>,
    %c133_414 = arith.constant 133 : index
    %c0_415 = arith.constant 0 : index
    %257 = tpu.strided_load %arg7[%c133_414, %c0_415] {strides = array<i32: 2, 1>} : memref<200x8xf32, #tpu.memory_space<vmem>>, vector<4x8xf32>
    %c16_416 = arith.constant 16 : index
    %c120_417 = arith.constant 120 : index
    %258 = vector.load %arg9[%c16_416, %c120_417] : memref<32x128xf32, #tpu.memory_space<vmem>>, vector<4x8xf32>
    tpu.vector_store %arg9[%c16_416, %c120_417], %257 {strides = array<i32>} : memref<32x128xf32, #tpu.memory_space<vmem>>, vector<4x8xf32>,
    %c153_418 = arith.constant 153 : index
    %c0_419 = arith.constant 0 : index
    %259 = tpu.strided_load %arg7[%c153_418, %c0_419] {strides = array<i32: 2, 1>} : memref<200x8xf32, #tpu.memory_space<vmem>>, vector<4x8xf32>
    %c20_420 = arith.constant 20 : index
    %c120_421 = arith.constant 120 : index
    %260 = vector.load %arg9[%c20_420, %c120_421] : memref<32x128xf32, #tpu.memory_space<vmem>>, vector<4x8xf32>
    tpu.vector_store %arg9[%c20_420, %c120_421], %259 {strides = array<i32>} : memref<32x128xf32, #tpu.memory_space<vmem>>, vector<4x8xf32>,
    %c173_422 = arith.constant 173 : index
    %c0_423 = arith.constant 0 : index
    %261 = tpu.strided_load %arg7[%c173_422, %c0_423] {strides = array<i32: 2, 1>} : memref<200x8xf32, #tpu.memory_space<vmem>>, vector<4x8xf32>
    %c24_424 = arith.constant 24 : index
    %c120_425 = arith.constant 120 : index
    %262 = vector.load %arg9[%c24_424, %c120_425] : memref<32x128xf32, #tpu.memory_space<vmem>>, vector<4x8xf32>
    tpu.vector_store %arg9[%c24_424, %c120_425], %261 {strides = array<i32>} : memref<32x128xf32, #tpu.memory_space<vmem>>, vector<4x8xf32>,
    %c193 = arith.constant 193 : index
    %c0_426 = arith.constant 0 : index
    %263 = tpu.strided_load %arg7[%c193, %c0_426] {strides = array<i32: 2, 1>} : memref<200x8xf32, #tpu.memory_space<vmem>>, vector<4x8xf32>
    %c28_427 = arith.constant 28 : index
    %c120_428 = arith.constant 120 : index
    %264 = vector.load %arg9[%c28_427, %c120_428] : memref<32x128xf32, #tpu.memory_space<vmem>>, vector<4x8xf32>
    tpu.vector_store %arg9[%c28_427, %c120_428], %263 {strides = array<i32>} : memref<32x128xf32, #tpu.memory_space<vmem>>, vector<4x8xf32>,
    %c0_429 = arith.constant 0 : index
    %c0_430 = arith.constant 0 : index
    %265 = vector.load %arg9[%c0_429, %c0_430] : memref<32x128xf32, #tpu.memory_space<vmem>>, vector<32x128xf32>
    %266 = arith.truncf %265 : vector<32x128xf32> to vector<32x128xbf16>
    %c0_431 = arith.constant 0 : index
    %c0_432 = arith.constant 0 : index
    %267 = vector.load %arg3[%c0_431, %c0_432] : memref<128x16xbf16, #tpu.memory_space<vmem>>, vector<128x16xbf16>
    %cst_433 = arith.constant dense<0.000000e+00> : vector<32x16xf32>
    %268 = tpu.matmul %266, %267, %cst_433 {dimension_numbers = #tpu.dot_dimension_numbers<[1], [0], [0], [1], [0, 0, 1, 1], [], []>} : vector<32x128xbf16>, vector<128x16xbf16>, vector<32x16xf32> -> vector<32x16xf32>
    %cst_434 = arith.constant dense<0.000000e+00> : vector<16xf32>
    %269 = vector.multi_reduction <add>, %268, %cst_434 [0] : vector<32x16xf32> to vector<16xf32>
    %270 = vector.shape_cast %269 : vector<16xf32> to vector<1x16xf32>
    %cst_435 = arith.constant 3.200000e+01 : f32
    %271 = vector.broadcast %cst_435 : f32 to vector<1x16xf32>
    %272 = arith.divf %270, %271 : vector<1x16xf32>
    %273 = vector.broadcast %272 : vector<1x16xf32> to vector<32x16xf32>
    %274 = arith.subf %268, %273 : vector<32x16xf32>
    %275 = arith.mulf %274, %274 : vector<32x16xf32>
    %cst_436 = arith.constant dense<0.000000e+00> : vector<16xf32>
    %276 = vector.multi_reduction <add>, %275, %cst_436 [0] : vector<32x16xf32> to vector<16xf32>
    %277 = vector.shape_cast %276 : vector<16xf32> to vector<1x16xf32>
    %cst_437 = arith.constant 3.200000e+01 : f32
    %278 = vector.broadcast %cst_437 : f32 to vector<1x16xf32>
    %279 = arith.divf %277, %278 : vector<1x16xf32>
    %280 = vector.broadcast %272 : vector<1x16xf32> to vector<32x16xf32>
    %281 = arith.subf %268, %280 : vector<32x16xf32>
    %cst_438 = arith.constant 9.99999974E-6 : f32
    %282 = vector.broadcast %cst_438 : f32 to vector<1x16xf32>
    %283 = arith.addf %279, %282 : vector<1x16xf32>
    %284 = math.rsqrt %283 : vector<1x16xf32>
    %285 = vector.broadcast %284 : vector<1x16xf32> to vector<32x16xf32>
    %286 = arith.mulf %281, %285 : vector<32x16xf32>
    %c0_439 = arith.constant 0 : index
    %c0_440 = arith.constant 0 : index
    %287 = vector.load %arg5[%c0_439, %c0_440] : memref<8x128xf32, #tpu.memory_space<vmem>>, vector<1x16xf32>
    %288 = vector.broadcast %287 : vector<1x16xf32> to vector<32x16xf32>
    %289 = arith.mulf %286, %288 : vector<32x16xf32>
    %c1_441 = arith.constant 1 : index
    %c0_442 = arith.constant 0 : index
    %290 = vector.load %arg5[%c1_441, %c0_442] : memref<8x128xf32, #tpu.memory_space<vmem>>, vector<1x16xf32>
    %291 = vector.broadcast %290 : vector<1x16xf32> to vector<32x16xf32>
    %292 = arith.addf %289, %291 : vector<32x16xf32>
    %cst_443 = arith.constant 0.000000e+00 : f32
    %293 = vector.broadcast %cst_443 : f32 to vector<32x16xf32>
    %294 = arith.cmpf oge, %292, %293 : vector<32x16xf32>
    %cst_444 = arith.constant 1.000000e-01 : f32
    %295 = vector.broadcast %cst_444 : f32 to vector<32x16xf32>
    %296 = arith.mulf %295, %292 : vector<32x16xf32>
    %297 = arith.select %294, %292, %296 : vector<32x16xi1>, vector<32x16xf32>
    %cst_445 = arith.constant 0.000000e+00 : f32
    %298 = vector.broadcast %cst_445 : f32 to vector<72x16xf32>
    %c0_446 = arith.constant 0 : index
    %c0_447 = arith.constant 0 : index
    %299 = vector.load %arg8[%c0_446, %c0_447] : memref<72x16xf32, #tpu.memory_space<vmem>>, vector<72x16xf32>
    tpu.vector_store %arg8[%c0_446, %c0_447], %298 {strides = array<i32>} : memref<72x16xf32, #tpu.memory_space<vmem>>, vector<72x16xf32>,
    %300 = vector.extract_strided_slice %297 {offsets = [0, 0], sizes = [4, 16], strides = [1, 1]} : vector<32x16xf32> to vector<4x16xf32>
    %c7 = arith.constant 7 : index
    %c0_448 = arith.constant 0 : index
    %301 = vector.load %arg8[%c7, %c0_448] : memref<72x16xf32, #tpu.memory_space<vmem>>, vector<4x16xf32>
    tpu.vector_store %arg8[%c7, %c0_448], %300 {strides = array<i32>} : memref<72x16xf32, #tpu.memory_space<vmem>>, vector<4x16xf32>,
    %302 = vector.extract_strided_slice %297 {offsets = [4, 0], sizes = [4, 16], strides = [1, 1]} : vector<32x16xf32> to vector<4x16xf32>
    %c13_449 = arith.constant 13 : index
    %c0_450 = arith.constant 0 : index
    %303 = vector.load %arg8[%c13_449, %c0_450] : memref<72x16xf32, #tpu.memory_space<vmem>>, vector<4x16xf32>
    tpu.vector_store %arg8[%c13_449, %c0_450], %302 {strides = array<i32>} : memref<72x16xf32, #tpu.memory_space<vmem>>, vector<4x16xf32>,
    %304 = vector.extract_strided_slice %297 {offsets = [8, 0], sizes = [4, 16], strides = [1, 1]} : vector<32x16xf32> to vector<4x16xf32>
    %c19 = arith.constant 19 : index
    %c0_451 = arith.constant 0 : index
    %305 = vector.load %arg8[%c19, %c0_451] : memref<72x16xf32, #tpu.memory_space<vmem>>, vector<4x16xf32>
    tpu.vector_store %arg8[%c19, %c0_451], %304 {strides = array<i32>} : memref<72x16xf32, #tpu.memory_space<vmem>>, vector<4x16xf32>,
    %306 = vector.extract_strided_slice %297 {offsets = [12, 0], sizes = [4, 16], strides = [1, 1]} : vector<32x16xf32> to vector<4x16xf32>
    %c25 = arith.constant 25 : index
    %c0_452 = arith.constant 0 : index
    %307 = vector.load %arg8[%c25, %c0_452] : memref<72x16xf32, #tpu.memory_space<vmem>>, vector<4x16xf32>
    tpu.vector_store %arg8[%c25, %c0_452], %306 {strides = array<i32>} : memref<72x16xf32, #tpu.memory_space<vmem>>, vector<4x16xf32>,
    %308 = vector.extract_strided_slice %297 {offsets = [16, 0], sizes = [4, 16], strides = [1, 1]} : vector<32x16xf32> to vector<4x16xf32>
    %c43_453 = arith.constant 43 : index
    %c0_454 = arith.constant 0 : index
    %309 = vector.load %arg8[%c43_453, %c0_454] : memref<72x16xf32, #tpu.memory_space<vmem>>, vector<4x16xf32>
    tpu.vector_store %arg8[%c43_453, %c0_454], %308 {strides = array<i32>} : memref<72x16xf32, #tpu.memory_space<vmem>>, vector<4x16xf32>,
    %310 = vector.extract_strided_slice %297 {offsets = [20, 0], sizes = [4, 16], strides = [1, 1]} : vector<32x16xf32> to vector<4x16xf32>
    %c49 = arith.constant 49 : index
    %c0_455 = arith.constant 0 : index
    %311 = vector.load %arg8[%c49, %c0_455] : memref<72x16xf32, #tpu.memory_space<vmem>>, vector<4x16xf32>
    tpu.vector_store %arg8[%c49, %c0_455], %310 {strides = array<i32>} : memref<72x16xf32, #tpu.memory_space<vmem>>, vector<4x16xf32>,
    %312 = vector.extract_strided_slice %297 {offsets = [24, 0], sizes = [4, 16], strides = [1, 1]} : vector<32x16xf32> to vector<4x16xf32>
    %c55 = arith.constant 55 : index
    %c0_456 = arith.constant 0 : index
    %313 = vector.load %arg8[%c55, %c0_456] : memref<72x16xf32, #tpu.memory_space<vmem>>, vector<4x16xf32>
    tpu.vector_store %arg8[%c55, %c0_456], %312 {strides = array<i32>} : memref<72x16xf32, #tpu.memory_space<vmem>>, vector<4x16xf32>,
    %314 = vector.extract_strided_slice %297 {offsets = [28, 0], sizes = [4, 16], strides = [1, 1]} : vector<32x16xf32> to vector<4x16xf32>
    %c61_457 = arith.constant 61 : index
    %c0_458 = arith.constant 0 : index
    %315 = vector.load %arg8[%c61_457, %c0_458] : memref<72x16xf32, #tpu.memory_space<vmem>>, vector<4x16xf32>
    tpu.vector_store %arg8[%c61_457, %c0_458], %314 {strides = array<i32>} : memref<72x16xf32, #tpu.memory_space<vmem>>, vector<4x16xf32>,
    %c0_459 = arith.constant 0 : index
    %c0_460 = arith.constant 0 : index
    %316 = tpu.strided_load %arg8[%c0_459, %c0_460] {strides = array<i32: 2, 1>} : memref<72x16xf32, #tpu.memory_space<vmem>>, vector<2x16xf32>
    %c0_461 = arith.constant 0 : index
    %c0_462 = arith.constant 0 : index
    %317 = vector.load %arg10[%c0_461, %c0_462] : memref<8x256xf32, #tpu.memory_space<vmem>>, vector<2x16xf32>
    tpu.vector_store %arg10[%c0_461, %c0_462], %316 {strides = array<i32>} : memref<8x256xf32, #tpu.memory_space<vmem>>, vector<2x16xf32>,
    %c12_463 = arith.constant 12 : index
    %c0_464 = arith.constant 0 : index
    %318 = tpu.strided_load %arg8[%c12_463, %c0_464] {strides = array<i32: 2, 1>} : memref<72x16xf32, #tpu.memory_space<vmem>>, vector<2x16xf32>
    %c2_465 = arith.constant 2 : index
    %c0_466 = arith.constant 0 : index
    %319 = vector.load %arg10[%c2_465, %c0_466] : memref<8x256xf32, #tpu.memory_space<vmem>>, vector<2x16xf32>
    tpu.vector_store %arg10[%c2_465, %c0_466], %318 {strides = array<i32>} : memref<8x256xf32, #tpu.memory_space<vmem>>, vector<2x16xf32>,
    %c36 = arith.constant 36 : index
    %c0_467 = arith.constant 0 : index
    %320 = tpu.strided_load %arg8[%c36, %c0_467] {strides = array<i32: 2, 1>} : memref<72x16xf32, #tpu.memory_space<vmem>>, vector<2x16xf32>
    %c4_468 = arith.constant 4 : index
    %c0_469 = arith.constant 0 : index
    %321 = vector.load %arg10[%c4_468, %c0_469] : memref<8x256xf32, #tpu.memory_space<vmem>>, vector<2x16xf32>
    tpu.vector_store %arg10[%c4_468, %c0_469], %320 {strides = array<i32>} : memref<8x256xf32, #tpu.memory_space<vmem>>, vector<2x16xf32>,
    %c48_470 = arith.constant 48 : index
    %c0_471 = arith.constant 0 : index
    %322 = tpu.strided_load %arg8[%c48_470, %c0_471] {strides = array<i32: 2, 1>} : memref<72x16xf32, #tpu.memory_space<vmem>>, vector<2x16xf32>
    %c6 = arith.constant 6 : index
    %c0_472 = arith.constant 0 : index
    %323 = vector.load %arg10[%c6, %c0_472] : memref<8x256xf32, #tpu.memory_space<vmem>>, vector<2x16xf32>
    tpu.vector_store %arg10[%c6, %c0_472], %322 {strides = array<i32>} : memref<8x256xf32, #tpu.memory_space<vmem>>, vector<2x16xf32>,
    %c1_473 = arith.constant 1 : index
    %c0_474 = arith.constant 0 : index
    %324 = tpu.strided_load %arg8[%c1_473, %c0_474] {strides = array<i32: 2, 1>} : memref<72x16xf32, #tpu.memory_space<vmem>>, vector<2x16xf32>
    %c0_475 = arith.constant 0 : index
    %c16_476 = arith.constant 16 : index
    %325 = vector.load %arg10[%c0_475, %c16_476] : memref<8x256xf32, #tpu.memory_space<vmem>>, vector<2x16xf32>
    tpu.vector_store %arg10[%c0_475, %c16_476], %324 {strides = array<i32>} : memref<8x256xf32, #tpu.memory_space<vmem>>, vector<2x16xf32>,
    %c13_477 = arith.constant 13 : index
    %c0_478 = arith.constant 0 : index
    %326 = tpu.strided_load %arg8[%c13_477, %c0_478] {strides = array<i32: 2, 1>} : memref<72x16xf32, #tpu.memory_space<vmem>>, vector<2x16xf32>
    %c2_479 = arith.constant 2 : index
    %c16_480 = arith.constant 16 : index
    %327 = vector.load %arg10[%c2_479, %c16_480] : memref<8x256xf32, #tpu.memory_space<vmem>>, vector<2x16xf32>
    tpu.vector_store %arg10[%c2_479, %c16_480], %326 {strides = array<i32>} : memref<8x256xf32, #tpu.memory_space<vmem>>, vector<2x16xf32>,
    %c37 = arith.constant 37 : index
    %c0_481 = arith.constant 0 : index
    %328 = tpu.strided_load %arg8[%c37, %c0_481] {strides = array<i32: 2, 1>} : memref<72x16xf32, #tpu.memory_space<vmem>>, vector<2x16xf32>
    %c4_482 = arith.constant 4 : index
    %c16_483 = arith.constant 16 : index
    %329 = vector.load %arg10[%c4_482, %c16_483] : memref<8x256xf32, #tpu.memory_space<vmem>>, vector<2x16xf32>
    tpu.vector_store %arg10[%c4_482, %c16_483], %328 {strides = array<i32>} : memref<8x256xf32, #tpu.memory_space<vmem>>, vector<2x16xf32>,
    %c49_484 = arith.constant 49 : index
    %c0_485 = arith.constant 0 : index
    %330 = tpu.strided_load %arg8[%c49_484, %c0_485] {strides = array<i32: 2, 1>} : memref<72x16xf32, #tpu.memory_space<vmem>>, vector<2x16xf32>
    %c6_486 = arith.constant 6 : index
    %c16_487 = arith.constant 16 : index
    %331 = vector.load %arg10[%c6_486, %c16_487] : memref<8x256xf32, #tpu.memory_space<vmem>>, vector<2x16xf32>
    tpu.vector_store %arg10[%c6_486, %c16_487], %330 {strides = array<i32>} : memref<8x256xf32, #tpu.memory_space<vmem>>, vector<2x16xf32>,
    %c2_488 = arith.constant 2 : index
    %c0_489 = arith.constant 0 : index
    %332 = tpu.strided_load %arg8[%c2_488, %c0_489] {strides = array<i32: 2, 1>} : memref<72x16xf32, #tpu.memory_space<vmem>>, vector<2x16xf32>
    %c0_490 = arith.constant 0 : index
    %c32_491 = arith.constant 32 : index
    %333 = vector.load %arg10[%c0_490, %c32_491] : memref<8x256xf32, #tpu.memory_space<vmem>>, vector<2x16xf32>
    tpu.vector_store %arg10[%c0_490, %c32_491], %332 {strides = array<i32>} : memref<8x256xf32, #tpu.memory_space<vmem>>, vector<2x16xf32>,
    %c14 = arith.constant 14 : index
    %c0_492 = arith.constant 0 : index
    %334 = tpu.strided_load %arg8[%c14, %c0_492] {strides = array<i32: 2, 1>} : memref<72x16xf32, #tpu.memory_space<vmem>>, vector<2x16xf32>
    %c2_493 = arith.constant 2 : index
    %c32_494 = arith.constant 32 : index
    %335 = vector.load %arg10[%c2_493, %c32_494] : memref<8x256xf32, #tpu.memory_space<vmem>>, vector<2x16xf32>
    tpu.vector_store %arg10[%c2_493, %c32_494], %334 {strides = array<i32>} : memref<8x256xf32, #tpu.memory_space<vmem>>, vector<2x16xf32>,
    %c38 = arith.constant 38 : index
    %c0_495 = arith.constant 0 : index
    %336 = tpu.strided_load %arg8[%c38, %c0_495] {strides = array<i32: 2, 1>} : memref<72x16xf32, #tpu.memory_space<vmem>>, vector<2x16xf32>
    %c4_496 = arith.constant 4 : index
    %c32_497 = arith.constant 32 : index
    %337 = vector.load %arg10[%c4_496, %c32_497] : memref<8x256xf32, #tpu.memory_space<vmem>>, vector<2x16xf32>
    tpu.vector_store %arg10[%c4_496, %c32_497], %336 {strides = array<i32>} : memref<8x256xf32, #tpu.memory_space<vmem>>, vector<2x16xf32>,
    %c50_498 = arith.constant 50 : index
    %c0_499 = arith.constant 0 : index
    %338 = tpu.strided_load %arg8[%c50_498, %c0_499] {strides = array<i32: 2, 1>} : memref<72x16xf32, #tpu.memory_space<vmem>>, vector<2x16xf32>
    %c6_500 = arith.constant 6 : index
    %c32_501 = arith.constant 32 : index
    %339 = vector.load %arg10[%c6_500, %c32_501] : memref<8x256xf32, #tpu.memory_space<vmem>>, vector<2x16xf32>
    tpu.vector_store %arg10[%c6_500, %c32_501], %338 {strides = array<i32>} : memref<8x256xf32, #tpu.memory_space<vmem>>, vector<2x16xf32>,
    %c3_502 = arith.constant 3 : index
    %c0_503 = arith.constant 0 : index
    %340 = tpu.strided_load %arg8[%c3_502, %c0_503] {strides = array<i32: 2, 1>} : memref<72x16xf32, #tpu.memory_space<vmem>>, vector<2x16xf32>
    %c0_504 = arith.constant 0 : index
    %c48_505 = arith.constant 48 : index
    %341 = vector.load %arg10[%c0_504, %c48_505] : memref<8x256xf32, #tpu.memory_space<vmem>>, vector<2x16xf32>
    tpu.vector_store %arg10[%c0_504, %c48_505], %340 {strides = array<i32>} : memref<8x256xf32, #tpu.memory_space<vmem>>, vector<2x16xf32>,
    %c15 = arith.constant 15 : index
    %c0_506 = arith.constant 0 : index
    %342 = tpu.strided_load %arg8[%c15, %c0_506] {strides = array<i32: 2, 1>} : memref<72x16xf32, #tpu.memory_space<vmem>>, vector<2x16xf32>
    %c2_507 = arith.constant 2 : index
    %c48_508 = arith.constant 48 : index
    %343 = vector.load %arg10[%c2_507, %c48_508] : memref<8x256xf32, #tpu.memory_space<vmem>>, vector<2x16xf32>
    tpu.vector_store %arg10[%c2_507, %c48_508], %342 {strides = array<i32>} : memref<8x256xf32, #tpu.memory_space<vmem>>, vector<2x16xf32>,
    %c39 = arith.constant 39 : index
    %c0_509 = arith.constant 0 : index
    %344 = tpu.strided_load %arg8[%c39, %c0_509] {strides = array<i32: 2, 1>} : memref<72x16xf32, #tpu.memory_space<vmem>>, vector<2x16xf32>
    %c4_510 = arith.constant 4 : index
    %c48_511 = arith.constant 48 : index
    %345 = vector.load %arg10[%c4_510, %c48_511] : memref<8x256xf32, #tpu.memory_space<vmem>>, vector<2x16xf32>
    tpu.vector_store %arg10[%c4_510, %c48_511], %344 {strides = array<i32>} : memref<8x256xf32, #tpu.memory_space<vmem>>, vector<2x16xf32>,
    %c51_512 = arith.constant 51 : index
    %c0_513 = arith.constant 0 : index
    %346 = tpu.strided_load %arg8[%c51_512, %c0_513] {strides = array<i32: 2, 1>} : memref<72x16xf32, #tpu.memory_space<vmem>>, vector<2x16xf32>
    %c6_514 = arith.constant 6 : index
    %c48_515 = arith.constant 48 : index
    %347 = vector.load %arg10[%c6_514, %c48_515] : memref<8x256xf32, #tpu.memory_space<vmem>>, vector<2x16xf32>
    tpu.vector_store %arg10[%c6_514, %c48_515], %346 {strides = array<i32>} : memref<8x256xf32, #tpu.memory_space<vmem>>, vector<2x16xf32>,
    %c6_516 = arith.constant 6 : index
    %c0_517 = arith.constant 0 : index
    %348 = tpu.strided_load %arg8[%c6_516, %c0_517] {strides = array<i32: 2, 1>} : memref<72x16xf32, #tpu.memory_space<vmem>>, vector<2x16xf32>
    %c0_518 = arith.constant 0 : index
    %c64_519 = arith.constant 64 : index
    %349 = vector.load %arg10[%c0_518, %c64_519] : memref<8x256xf32, #tpu.memory_space<vmem>>, vector<2x16xf32>
    tpu.vector_store %arg10[%c0_518, %c64_519], %348 {strides = array<i32>} : memref<8x256xf32, #tpu.memory_space<vmem>>, vector<2x16xf32>,
    %c18 = arith.constant 18 : index
    %c0_520 = arith.constant 0 : index
    %350 = tpu.strided_load %arg8[%c18, %c0_520] {strides = array<i32: 2, 1>} : memref<72x16xf32, #tpu.memory_space<vmem>>, vector<2x16xf32>
    %c2_521 = arith.constant 2 : index
    %c64_522 = arith.constant 64 : index
    %351 = vector.load %arg10[%c2_521, %c64_522] : memref<8x256xf32, #tpu.memory_space<vmem>>, vector<2x16xf32>
    tpu.vector_store %arg10[%c2_521, %c64_522], %350 {strides = array<i32>} : memref<8x256xf32, #tpu.memory_space<vmem>>, vector<2x16xf32>,
    %c42_523 = arith.constant 42 : index
    %c0_524 = arith.constant 0 : index
    %352 = tpu.strided_load %arg8[%c42_523, %c0_524] {strides = array<i32: 2, 1>} : memref<72x16xf32, #tpu.memory_space<vmem>>, vector<2x16xf32>
    %c4_525 = arith.constant 4 : index
    %c64_526 = arith.constant 64 : index
    %353 = vector.load %arg10[%c4_525, %c64_526] : memref<8x256xf32, #tpu.memory_space<vmem>>, vector<2x16xf32>
    tpu.vector_store %arg10[%c4_525, %c64_526], %352 {strides = array<i32>} : memref<8x256xf32, #tpu.memory_space<vmem>>, vector<2x16xf32>,
    %c54 = arith.constant 54 : index
    %c0_527 = arith.constant 0 : index
    %354 = tpu.strided_load %arg8[%c54, %c0_527] {strides = array<i32: 2, 1>} : memref<72x16xf32, #tpu.memory_space<vmem>>, vector<2x16xf32>
    %c6_528 = arith.constant 6 : index
    %c64_529 = arith.constant 64 : index
    %355 = vector.load %arg10[%c6_528, %c64_529] : memref<8x256xf32, #tpu.memory_space<vmem>>, vector<2x16xf32>
    tpu.vector_store %arg10[%c6_528, %c64_529], %354 {strides = array<i32>} : memref<8x256xf32, #tpu.memory_space<vmem>>, vector<2x16xf32>,
    %c7_530 = arith.constant 7 : index
    %c0_531 = arith.constant 0 : index
    %356 = tpu.strided_load %arg8[%c7_530, %c0_531] {strides = array<i32: 2, 1>} : memref<72x16xf32, #tpu.memory_space<vmem>>, vector<2x16xf32>
    %c0_532 = arith.constant 0 : index
    %c80_533 = arith.constant 80 : index
    %357 = vector.load %arg10[%c0_532, %c80_533] : memref<8x256xf32, #tpu.memory_space<vmem>>, vector<2x16xf32>
    tpu.vector_store %arg10[%c0_532, %c80_533], %356 {strides = array<i32>} : memref<8x256xf32, #tpu.memory_space<vmem>>, vector<2x16xf32>,
    %c19_534 = arith.constant 19 : index
    %c0_535 = arith.constant 0 : index
    %358 = tpu.strided_load %arg8[%c19_534, %c0_535] {strides = array<i32: 2, 1>} : memref<72x16xf32, #tpu.memory_space<vmem>>, vector<2x16xf32>
    %c2_536 = arith.constant 2 : index
    %c80_537 = arith.constant 80 : index
    %359 = vector.load %arg10[%c2_536, %c80_537] : memref<8x256xf32, #tpu.memory_space<vmem>>, vector<2x16xf32>
    tpu.vector_store %arg10[%c2_536, %c80_537], %358 {strides = array<i32>} : memref<8x256xf32, #tpu.memory_space<vmem>>, vector<2x16xf32>,
    %c43_538 = arith.constant 43 : index
    %c0_539 = arith.constant 0 : index
    %360 = tpu.strided_load %arg8[%c43_538, %c0_539] {strides = array<i32: 2, 1>} : memref<72x16xf32, #tpu.memory_space<vmem>>, vector<2x16xf32>
    %c4_540 = arith.constant 4 : index
    %c80_541 = arith.constant 80 : index
    %361 = vector.load %arg10[%c4_540, %c80_541] : memref<8x256xf32, #tpu.memory_space<vmem>>, vector<2x16xf32>
    tpu.vector_store %arg10[%c4_540, %c80_541], %360 {strides = array<i32>} : memref<8x256xf32, #tpu.memory_space<vmem>>, vector<2x16xf32>,
    %c55_542 = arith.constant 55 : index
    %c0_543 = arith.constant 0 : index
    %362 = tpu.strided_load %arg8[%c55_542, %c0_543] {strides = array<i32: 2, 1>} : memref<72x16xf32, #tpu.memory_space<vmem>>, vector<2x16xf32>
    %c6_544 = arith.constant 6 : index
    %c80_545 = arith.constant 80 : index
    %363 = vector.load %arg10[%c6_544, %c80_545] : memref<8x256xf32, #tpu.memory_space<vmem>>, vector<2x16xf32>
    tpu.vector_store %arg10[%c6_544, %c80_545], %362 {strides = array<i32>} : memref<8x256xf32, #tpu.memory_space<vmem>>, vector<2x16xf32>,
    %c8_546 = arith.constant 8 : index
    %c0_547 = arith.constant 0 : index
    %364 = tpu.strided_load %arg8[%c8_546, %c0_547] {strides = array<i32: 2, 1>} : memref<72x16xf32, #tpu.memory_space<vmem>>, vector<2x16xf32>
    %c0_548 = arith.constant 0 : index
    %c96_549 = arith.constant 96 : index
    %365 = vector.load %arg10[%c0_548, %c96_549] : memref<8x256xf32, #tpu.memory_space<vmem>>, vector<2x16xf32>
    tpu.vector_store %arg10[%c0_548, %c96_549], %364 {strides = array<i32>} : memref<8x256xf32, #tpu.memory_space<vmem>>, vector<2x16xf32>,
    %c20_550 = arith.constant 20 : index
    %c0_551 = arith.constant 0 : index
    %366 = tpu.strided_load %arg8[%c20_550, %c0_551] {strides = array<i32: 2, 1>} : memref<72x16xf32, #tpu.memory_space<vmem>>, vector<2x16xf32>
    %c2_552 = arith.constant 2 : index
    %c96_553 = arith.constant 96 : index
    %367 = vector.load %arg10[%c2_552, %c96_553] : memref<8x256xf32, #tpu.memory_space<vmem>>, vector<2x16xf32>
    tpu.vector_store %arg10[%c2_552, %c96_553], %366 {strides = array<i32>} : memref<8x256xf32, #tpu.memory_space<vmem>>, vector<2x16xf32>,
    %c44 = arith.constant 44 : index
    %c0_554 = arith.constant 0 : index
    %368 = tpu.strided_load %arg8[%c44, %c0_554] {strides = array<i32: 2, 1>} : memref<72x16xf32, #tpu.memory_space<vmem>>, vector<2x16xf32>
    %c4_555 = arith.constant 4 : index
    %c96_556 = arith.constant 96 : index
    %369 = vector.load %arg10[%c4_555, %c96_556] : memref<8x256xf32, #tpu.memory_space<vmem>>, vector<2x16xf32>
    tpu.vector_store %arg10[%c4_555, %c96_556], %368 {strides = array<i32>} : memref<8x256xf32, #tpu.memory_space<vmem>>, vector<2x16xf32>,
    %c56_557 = arith.constant 56 : index
    %c0_558 = arith.constant 0 : index
    %370 = tpu.strided_load %arg8[%c56_557, %c0_558] {strides = array<i32: 2, 1>} : memref<72x16xf32, #tpu.memory_space<vmem>>, vector<2x16xf32>
    %c6_559 = arith.constant 6 : index
    %c96_560 = arith.constant 96 : index
    %371 = vector.load %arg10[%c6_559, %c96_560] : memref<8x256xf32, #tpu.memory_space<vmem>>, vector<2x16xf32>
    tpu.vector_store %arg10[%c6_559, %c96_560], %370 {strides = array<i32>} : memref<8x256xf32, #tpu.memory_space<vmem>>, vector<2x16xf32>,
    %c9 = arith.constant 9 : index
    %c0_561 = arith.constant 0 : index
    %372 = tpu.strided_load %arg8[%c9, %c0_561] {strides = array<i32: 2, 1>} : memref<72x16xf32, #tpu.memory_space<vmem>>, vector<2x16xf32>
    %c0_562 = arith.constant 0 : index
    %c112_563 = arith.constant 112 : index
    %373 = vector.load %arg10[%c0_562, %c112_563] : memref<8x256xf32, #tpu.memory_space<vmem>>, vector<2x16xf32>
    tpu.vector_store %arg10[%c0_562, %c112_563], %372 {strides = array<i32>} : memref<8x256xf32, #tpu.memory_space<vmem>>, vector<2x16xf32>,
    %c21_564 = arith.constant 21 : index
    %c0_565 = arith.constant 0 : index
    %374 = tpu.strided_load %arg8[%c21_564, %c0_565] {strides = array<i32: 2, 1>} : memref<72x16xf32, #tpu.memory_space<vmem>>, vector<2x16xf32>
    %c2_566 = arith.constant 2 : index
    %c112_567 = arith.constant 112 : index
    %375 = vector.load %arg10[%c2_566, %c112_567] : memref<8x256xf32, #tpu.memory_space<vmem>>, vector<2x16xf32>
    tpu.vector_store %arg10[%c2_566, %c112_567], %374 {strides = array<i32>} : memref<8x256xf32, #tpu.memory_space<vmem>>, vector<2x16xf32>,
    %c45 = arith.constant 45 : index
    %c0_568 = arith.constant 0 : index
    %376 = tpu.strided_load %arg8[%c45, %c0_568] {strides = array<i32: 2, 1>} : memref<72x16xf32, #tpu.memory_space<vmem>>, vector<2x16xf32>
    %c4_569 = arith.constant 4 : index
    %c112_570 = arith.constant 112 : index
    %377 = vector.load %arg10[%c4_569, %c112_570] : memref<8x256xf32, #tpu.memory_space<vmem>>, vector<2x16xf32>
    tpu.vector_store %arg10[%c4_569, %c112_570], %376 {strides = array<i32>} : memref<8x256xf32, #tpu.memory_space<vmem>>, vector<2x16xf32>,
    %c57 = arith.constant 57 : index
    %c0_571 = arith.constant 0 : index
    %378 = tpu.strided_load %arg8[%c57, %c0_571] {strides = array<i32: 2, 1>} : memref<72x16xf32, #tpu.memory_space<vmem>>, vector<2x16xf32>
    %c6_572 = arith.constant 6 : index
    %c112_573 = arith.constant 112 : index
    %379 = vector.load %arg10[%c6_572, %c112_573] : memref<8x256xf32, #tpu.memory_space<vmem>>, vector<2x16xf32>
    tpu.vector_store %arg10[%c6_572, %c112_573], %378 {strides = array<i32>} : memref<8x256xf32, #tpu.memory_space<vmem>>, vector<2x16xf32>,
    %c12_574 = arith.constant 12 : index
    %c0_575 = arith.constant 0 : index
    %380 = tpu.strided_load %arg8[%c12_574, %c0_575] {strides = array<i32: 2, 1>} : memref<72x16xf32, #tpu.memory_space<vmem>>, vector<2x16xf32>
    %c0_576 = arith.constant 0 : index
    %c128 = arith.constant 128 : index
    %381 = vector.load %arg10[%c0_576, %c128] : memref<8x256xf32, #tpu.memory_space<vmem>>, vector<2x16xf32>
    tpu.vector_store %arg10[%c0_576, %c128], %380 {strides = array<i32>} : memref<8x256xf32, #tpu.memory_space<vmem>>, vector<2x16xf32>,
    %c24_577 = arith.constant 24 : index
    %c0_578 = arith.constant 0 : index
    %382 = tpu.strided_load %arg8[%c24_577, %c0_578] {strides = array<i32: 2, 1>} : memref<72x16xf32, #tpu.memory_space<vmem>>, vector<2x16xf32>
    %c2_579 = arith.constant 2 : index
    %c128_580 = arith.constant 128 : index
    %383 = vector.load %arg10[%c2_579, %c128_580] : memref<8x256xf32, #tpu.memory_space<vmem>>, vector<2x16xf32>
    tpu.vector_store %arg10[%c2_579, %c128_580], %382 {strides = array<i32>} : memref<8x256xf32, #tpu.memory_space<vmem>>, vector<2x16xf32>,
    %c48_581 = arith.constant 48 : index
    %c0_582 = arith.constant 0 : index
    %384 = tpu.strided_load %arg8[%c48_581, %c0_582] {strides = array<i32: 2, 1>} : memref<72x16xf32, #tpu.memory_space<vmem>>, vector<2x16xf32>
    %c4_583 = arith.constant 4 : index
    %c128_584 = arith.constant 128 : index
    %385 = vector.load %arg10[%c4_583, %c128_584] : memref<8x256xf32, #tpu.memory_space<vmem>>, vector<2x16xf32>
    tpu.vector_store %arg10[%c4_583, %c128_584], %384 {strides = array<i32>} : memref<8x256xf32, #tpu.memory_space<vmem>>, vector<2x16xf32>,
    %c60_585 = arith.constant 60 : index
    %c0_586 = arith.constant 0 : index
    %386 = tpu.strided_load %arg8[%c60_585, %c0_586] {strides = array<i32: 2, 1>} : memref<72x16xf32, #tpu.memory_space<vmem>>, vector<2x16xf32>
    %c6_587 = arith.constant 6 : index
    %c128_588 = arith.constant 128 : index
    %387 = vector.load %arg10[%c6_587, %c128_588] : memref<8x256xf32, #tpu.memory_space<vmem>>, vector<2x16xf32>
    tpu.vector_store %arg10[%c6_587, %c128_588], %386 {strides = array<i32>} : memref<8x256xf32, #tpu.memory_space<vmem>>, vector<2x16xf32>,
    %c13_589 = arith.constant 13 : index
    %c0_590 = arith.constant 0 : index
    %388 = tpu.strided_load %arg8[%c13_589, %c0_590] {strides = array<i32: 2, 1>} : memref<72x16xf32, #tpu.memory_space<vmem>>, vector<2x16xf32>
    %c0_591 = arith.constant 0 : index
    %c144 = arith.constant 144 : index
    %389 = vector.load %arg10[%c0_591, %c144] : memref<8x256xf32, #tpu.memory_space<vmem>>, vector<2x16xf32>
    tpu.vector_store %arg10[%c0_591, %c144], %388 {strides = array<i32>} : memref<8x256xf32, #tpu.memory_space<vmem>>, vector<2x16xf32>,
    %c25_592 = arith.constant 25 : index
    %c0_593 = arith.constant 0 : index
    %390 = tpu.strided_load %arg8[%c25_592, %c0_593] {strides = array<i32: 2, 1>} : memref<72x16xf32, #tpu.memory_space<vmem>>, vector<2x16xf32>
    %c2_594 = arith.constant 2 : index
    %c144_595 = arith.constant 144 : index
    %391 = vector.load %arg10[%c2_594, %c144_595] : memref<8x256xf32, #tpu.memory_space<vmem>>, vector<2x16xf32>
    tpu.vector_store %arg10[%c2_594, %c144_595], %390 {strides = array<i32>} : memref<8x256xf32, #tpu.memory_space<vmem>>, vector<2x16xf32>,
    %c49_596 = arith.constant 49 : index
    %c0_597 = arith.constant 0 : index
    %392 = tpu.strided_load %arg8[%c49_596, %c0_597] {strides = array<i32: 2, 1>} : memref<72x16xf32, #tpu.memory_space<vmem>>, vector<2x16xf32>
    %c4_598 = arith.constant 4 : index
    %c144_599 = arith.constant 144 : index
    %393 = vector.load %arg10[%c4_598, %c144_599] : memref<8x256xf32, #tpu.memory_space<vmem>>, vector<2x16xf32>
    tpu.vector_store %arg10[%c4_598, %c144_599], %392 {strides = array<i32>} : memref<8x256xf32, #tpu.memory_space<vmem>>, vector<2x16xf32>,
    %c61_600 = arith.constant 61 : index
    %c0_601 = arith.constant 0 : index
    %394 = tpu.strided_load %arg8[%c61_600, %c0_601] {strides = array<i32: 2, 1>} : memref<72x16xf32, #tpu.memory_space<vmem>>, vector<2x16xf32>
    %c6_602 = arith.constant 6 : index
    %c144_603 = arith.constant 144 : index
    %395 = vector.load %arg10[%c6_602, %c144_603] : memref<8x256xf32, #tpu.memory_space<vmem>>, vector<2x16xf32>
    tpu.vector_store %arg10[%c6_602, %c144_603], %394 {strides = array<i32>} : memref<8x256xf32, #tpu.memory_space<vmem>>, vector<2x16xf32>,
    %c14_604 = arith.constant 14 : index
    %c0_605 = arith.constant 0 : index
    %396 = tpu.strided_load %arg8[%c14_604, %c0_605] {strides = array<i32: 2, 1>} : memref<72x16xf32, #tpu.memory_space<vmem>>, vector<2x16xf32>
    %c0_606 = arith.constant 0 : index
    %c160_607 = arith.constant 160 : index
    %397 = vector.load %arg10[%c0_606, %c160_607] : memref<8x256xf32, #tpu.memory_space<vmem>>, vector<2x16xf32>
    tpu.vector_store %arg10[%c0_606, %c160_607], %396 {strides = array<i32>} : memref<8x256xf32, #tpu.memory_space<vmem>>, vector<2x16xf32>,
    %c26 = arith.constant 26 : index
    %c0_608 = arith.constant 0 : index
    %398 = tpu.strided_load %arg8[%c26, %c0_608] {strides = array<i32: 2, 1>} : memref<72x16xf32, #tpu.memory_space<vmem>>, vector<2x16xf32>
    %c2_609 = arith.constant 2 : index
    %c160_610 = arith.constant 160 : index
    %399 = vector.load %arg10[%c2_609, %c160_610] : memref<8x256xf32, #tpu.memory_space<vmem>>, vector<2x16xf32>
    tpu.vector_store %arg10[%c2_609, %c160_610], %398 {strides = array<i32>} : memref<8x256xf32, #tpu.memory_space<vmem>>, vector<2x16xf32>,
    %c50_611 = arith.constant 50 : index
    %c0_612 = arith.constant 0 : index
    %400 = tpu.strided_load %arg8[%c50_611, %c0_612] {strides = array<i32: 2, 1>} : memref<72x16xf32, #tpu.memory_space<vmem>>, vector<2x16xf32>
    %c4_613 = arith.constant 4 : index
    %c160_614 = arith.constant 160 : index
    %401 = vector.load %arg10[%c4_613, %c160_614] : memref<8x256xf32, #tpu.memory_space<vmem>>, vector<2x16xf32>
    tpu.vector_store %arg10[%c4_613, %c160_614], %400 {strides = array<i32>} : memref<8x256xf32, #tpu.memory_space<vmem>>, vector<2x16xf32>,
    %c62_615 = arith.constant 62 : index
    %c0_616 = arith.constant 0 : index
    %402 = tpu.strided_load %arg8[%c62_615, %c0_616] {strides = array<i32: 2, 1>} : memref<72x16xf32, #tpu.memory_space<vmem>>, vector<2x16xf32>
    %c6_617 = arith.constant 6 : index
    %c160_618 = arith.constant 160 : index
    %403 = vector.load %arg10[%c6_617, %c160_618] : memref<8x256xf32, #tpu.memory_space<vmem>>, vector<2x16xf32>
    tpu.vector_store %arg10[%c6_617, %c160_618], %402 {strides = array<i32>} : memref<8x256xf32, #tpu.memory_space<vmem>>, vector<2x16xf32>,
    %c15_619 = arith.constant 15 : index
    %c0_620 = arith.constant 0 : index
    %404 = tpu.strided_load %arg8[%c15_619, %c0_620] {strides = array<i32: 2, 1>} : memref<72x16xf32, #tpu.memory_space<vmem>>, vector<2x16xf32>
    %c0_621 = arith.constant 0 : index
    %c176 = arith.constant 176 : index
    %405 = vector.load %arg10[%c0_621, %c176] : memref<8x256xf32, #tpu.memory_space<vmem>>, vector<2x16xf32>
    tpu.vector_store %arg10[%c0_621, %c176], %404 {strides = array<i32>} : memref<8x256xf32, #tpu.memory_space<vmem>>, vector<2x16xf32>,
    %c27 = arith.constant 27 : index
    %c0_622 = arith.constant 0 : index
    %406 = tpu.strided_load %arg8[%c27, %c0_622] {strides = array<i32: 2, 1>} : memref<72x16xf32, #tpu.memory_space<vmem>>, vector<2x16xf32>
    %c2_623 = arith.constant 2 : index
    %c176_624 = arith.constant 176 : index
    %407 = vector.load %arg10[%c2_623, %c176_624] : memref<8x256xf32, #tpu.memory_space<vmem>>, vector<2x16xf32>
    tpu.vector_store %arg10[%c2_623, %c176_624], %406 {strides = array<i32>} : memref<8x256xf32, #tpu.memory_space<vmem>>, vector<2x16xf32>,
    %c51_625 = arith.constant 51 : index
    %c0_626 = arith.constant 0 : index
    %408 = tpu.strided_load %arg8[%c51_625, %c0_626] {strides = array<i32: 2, 1>} : memref<72x16xf32, #tpu.memory_space<vmem>>, vector<2x16xf32>
    %c4_627 = arith.constant 4 : index
    %c176_628 = arith.constant 176 : index
    %409 = vector.load %arg10[%c4_627, %c176_628] : memref<8x256xf32, #tpu.memory_space<vmem>>, vector<2x16xf32>
    tpu.vector_store %arg10[%c4_627, %c176_628], %408 {strides = array<i32>} : memref<8x256xf32, #tpu.memory_space<vmem>>, vector<2x16xf32>,
    %c63_629 = arith.constant 63 : index
    %c0_630 = arith.constant 0 : index
    %410 = tpu.strided_load %arg8[%c63_629, %c0_630] {strides = array<i32: 2, 1>} : memref<72x16xf32, #tpu.memory_space<vmem>>, vector<2x16xf32>
    %c6_631 = arith.constant 6 : index
    %c176_632 = arith.constant 176 : index
    %411 = vector.load %arg10[%c6_631, %c176_632] : memref<8x256xf32, #tpu.memory_space<vmem>>, vector<2x16xf32>
    tpu.vector_store %arg10[%c6_631, %c176_632], %410 {strides = array<i32>} : memref<8x256xf32, #tpu.memory_space<vmem>>, vector<2x16xf32>,
    %c18_633 = arith.constant 18 : index
    %c0_634 = arith.constant 0 : index
    %412 = tpu.strided_load %arg8[%c18_633, %c0_634] {strides = array<i32: 2, 1>} : memref<72x16xf32, #tpu.memory_space<vmem>>, vector<2x16xf32>
    %c0_635 = arith.constant 0 : index
    %c192_636 = arith.constant 192 : index
    %413 = vector.load %arg10[%c0_635, %c192_636] : memref<8x256xf32, #tpu.memory_space<vmem>>, vector<2x16xf32>
    tpu.vector_store %arg10[%c0_635, %c192_636], %412 {strides = array<i32>} : memref<8x256xf32, #tpu.memory_space<vmem>>, vector<2x16xf32>,
    %c30_637 = arith.constant 30 : index
    %c0_638 = arith.constant 0 : index
    %414 = tpu.strided_load %arg8[%c30_637, %c0_638] {strides = array<i32: 2, 1>} : memref<72x16xf32, #tpu.memory_space<vmem>>, vector<2x16xf32>
    %c2_639 = arith.constant 2 : index
    %c192_640 = arith.constant 192 : index
    %415 = vector.load %arg10[%c2_639, %c192_640] : memref<8x256xf32, #tpu.memory_space<vmem>>, vector<2x16xf32>
    tpu.vector_store %arg10[%c2_639, %c192_640], %414 {strides = array<i32>} : memref<8x256xf32, #tpu.memory_space<vmem>>, vector<2x16xf32>,
    %c54_641 = arith.constant 54 : index
    %c0_642 = arith.constant 0 : index
    %416 = tpu.strided_load %arg8[%c54_641, %c0_642] {strides = array<i32: 2, 1>} : memref<72x16xf32, #tpu.memory_space<vmem>>, vector<2x16xf32>
    %c4_643 = arith.constant 4 : index
    %c192_644 = arith.constant 192 : index
    %417 = vector.load %arg10[%c4_643, %c192_644] : memref<8x256xf32, #tpu.memory_space<vmem>>, vector<2x16xf32>
    tpu.vector_store %arg10[%c4_643, %c192_644], %416 {strides = array<i32>} : memref<8x256xf32, #tpu.memory_space<vmem>>, vector<2x16xf32>,
    %c66 = arith.constant 66 : index
    %c0_645 = arith.constant 0 : index
    %418 = tpu.strided_load %arg8[%c66, %c0_645] {strides = array<i32: 2, 1>} : memref<72x16xf32, #tpu.memory_space<vmem>>, vector<2x16xf32>
    %c6_646 = arith.constant 6 : index
    %c192_647 = arith.constant 192 : index
    %419 = vector.load %arg10[%c6_646, %c192_647] : memref<8x256xf32, #tpu.memory_space<vmem>>, vector<2x16xf32>
    tpu.vector_store %arg10[%c6_646, %c192_647], %418 {strides = array<i32>} : memref<8x256xf32, #tpu.memory_space<vmem>>, vector<2x16xf32>,
    %c19_648 = arith.constant 19 : index
    %c0_649 = arith.constant 0 : index
    %420 = tpu.strided_load %arg8[%c19_648, %c0_649] {strides = array<i32: 2, 1>} : memref<72x16xf32, #tpu.memory_space<vmem>>, vector<2x16xf32>
    %c0_650 = arith.constant 0 : index
    %c208 = arith.constant 208 : index
    %421 = vector.load %arg10[%c0_650, %c208] : memref<8x256xf32, #tpu.memory_space<vmem>>, vector<2x16xf32>
    tpu.vector_store %arg10[%c0_650, %c208], %420 {strides = array<i32>} : memref<8x256xf32, #tpu.memory_space<vmem>>, vector<2x16xf32>,
    %c31_651 = arith.constant 31 : index
    %c0_652 = arith.constant 0 : index
    %422 = tpu.strided_load %arg8[%c31_651, %c0_652] {strides = array<i32: 2, 1>} : memref<72x16xf32, #tpu.memory_space<vmem>>, vector<2x16xf32>
    %c2_653 = arith.constant 2 : index
    %c208_654 = arith.constant 208 : index
    %423 = vector.load %arg10[%c2_653, %c208_654] : memref<8x256xf32, #tpu.memory_space<vmem>>, vector<2x16xf32>
    tpu.vector_store %arg10[%c2_653, %c208_654], %422 {strides = array<i32>} : memref<8x256xf32, #tpu.memory_space<vmem>>, vector<2x16xf32>,
    %c55_655 = arith.constant 55 : index
    %c0_656 = arith.constant 0 : index
    %424 = tpu.strided_load %arg8[%c55_655, %c0_656] {strides = array<i32: 2, 1>} : memref<72x16xf32, #tpu.memory_space<vmem>>, vector<2x16xf32>
    %c4_657 = arith.constant 4 : index
    %c208_658 = arith.constant 208 : index
    %425 = vector.load %arg10[%c4_657, %c208_658] : memref<8x256xf32, #tpu.memory_space<vmem>>, vector<2x16xf32>
    tpu.vector_store %arg10[%c4_657, %c208_658], %424 {strides = array<i32>} : memref<8x256xf32, #tpu.memory_space<vmem>>, vector<2x16xf32>,
    %c67 = arith.constant 67 : index
    %c0_659 = arith.constant 0 : index
    %426 = tpu.strided_load %arg8[%c67, %c0_659] {strides = array<i32: 2, 1>} : memref<72x16xf32, #tpu.memory_space<vmem>>, vector<2x16xf32>
    %c6_660 = arith.constant 6 : index
    %c208_661 = arith.constant 208 : index
    %427 = vector.load %arg10[%c6_660, %c208_661] : memref<8x256xf32, #tpu.memory_space<vmem>>, vector<2x16xf32>
    tpu.vector_store %arg10[%c6_660, %c208_661], %426 {strides = array<i32>} : memref<8x256xf32, #tpu.memory_space<vmem>>, vector<2x16xf32>,
    %c20_662 = arith.constant 20 : index
    %c0_663 = arith.constant 0 : index
    %428 = tpu.strided_load %arg8[%c20_662, %c0_663] {strides = array<i32: 2, 1>} : memref<72x16xf32, #tpu.memory_space<vmem>>, vector<2x16xf32>
    %c0_664 = arith.constant 0 : index
    %c224 = arith.constant 224 : index
    %429 = vector.load %arg10[%c0_664, %c224] : memref<8x256xf32, #tpu.memory_space<vmem>>, vector<2x16xf32>
    tpu.vector_store %arg10[%c0_664, %c224], %428 {strides = array<i32>} : memref<8x256xf32, #tpu.memory_space<vmem>>, vector<2x16xf32>,
    %c32_665 = arith.constant 32 : index
    %c0_666 = arith.constant 0 : index
    %430 = tpu.strided_load %arg8[%c32_665, %c0_666] {strides = array<i32: 2, 1>} : memref<72x16xf32, #tpu.memory_space<vmem>>, vector<2x16xf32>
    %c2_667 = arith.constant 2 : index
    %c224_668 = arith.constant 224 : index
    %431 = vector.load %arg10[%c2_667, %c224_668] : memref<8x256xf32, #tpu.memory_space<vmem>>, vector<2x16xf32>
    tpu.vector_store %arg10[%c2_667, %c224_668], %430 {strides = array<i32>} : memref<8x256xf32, #tpu.memory_space<vmem>>, vector<2x16xf32>,
    %c56_669 = arith.constant 56 : index
    %c0_670 = arith.constant 0 : index
    %432 = tpu.strided_load %arg8[%c56_669, %c0_670] {strides = array<i32: 2, 1>} : memref<72x16xf32, #tpu.memory_space<vmem>>, vector<2x16xf32>
    %c4_671 = arith.constant 4 : index
    %c224_672 = arith.constant 224 : index
    %433 = vector.load %arg10[%c4_671, %c224_672] : memref<8x256xf32, #tpu.memory_space<vmem>>, vector<2x16xf32>
    tpu.vector_store %arg10[%c4_671, %c224_672], %432 {strides = array<i32>} : memref<8x256xf32, #tpu.memory_space<vmem>>, vector<2x16xf32>,
    %c68 = arith.constant 68 : index
    %c0_673 = arith.constant 0 : index
    %434 = tpu.strided_load %arg8[%c68, %c0_673] {strides = array<i32: 2, 1>} : memref<72x16xf32, #tpu.memory_space<vmem>>, vector<2x16xf32>
    %c6_674 = arith.constant 6 : index
    %c224_675 = arith.constant 224 : index
    %435 = vector.load %arg10[%c6_674, %c224_675] : memref<8x256xf32, #tpu.memory_space<vmem>>, vector<2x16xf32>
    tpu.vector_store %arg10[%c6_674, %c224_675], %434 {strides = array<i32>} : memref<8x256xf32, #tpu.memory_space<vmem>>, vector<2x16xf32>,
    %c21_676 = arith.constant 21 : index
    %c0_677 = arith.constant 0 : index
    %436 = tpu.strided_load %arg8[%c21_676, %c0_677] {strides = array<i32: 2, 1>} : memref<72x16xf32, #tpu.memory_space<vmem>>, vector<2x16xf32>
    %c0_678 = arith.constant 0 : index
    %c240 = arith.constant 240 : index
    %437 = vector.load %arg10[%c0_678, %c240] : memref<8x256xf32, #tpu.memory_space<vmem>>, vector<2x16xf32>
    tpu.vector_store %arg10[%c0_678, %c240], %436 {strides = array<i32>} : memref<8x256xf32, #tpu.memory_space<vmem>>, vector<2x16xf32>,
    %c33_679 = arith.constant 33 : index
    %c0_680 = arith.constant 0 : index
    %438 = tpu.strided_load %arg8[%c33_679, %c0_680] {strides = array<i32: 2, 1>} : memref<72x16xf32, #tpu.memory_space<vmem>>, vector<2x16xf32>
    %c2_681 = arith.constant 2 : index
    %c240_682 = arith.constant 240 : index
    %439 = vector.load %arg10[%c2_681, %c240_682] : memref<8x256xf32, #tpu.memory_space<vmem>>, vector<2x16xf32>
    tpu.vector_store %arg10[%c2_681, %c240_682], %438 {strides = array<i32>} : memref<8x256xf32, #tpu.memory_space<vmem>>, vector<2x16xf32>,
    %c57_683 = arith.constant 57 : index
    %c0_684 = arith.constant 0 : index
    %440 = tpu.strided_load %arg8[%c57_683, %c0_684] {strides = array<i32: 2, 1>} : memref<72x16xf32, #tpu.memory_space<vmem>>, vector<2x16xf32>
    %c4_685 = arith.constant 4 : index
    %c240_686 = arith.constant 240 : index
    %441 = vector.load %arg10[%c4_685, %c240_686] : memref<8x256xf32, #tpu.memory_space<vmem>>, vector<2x16xf32>
    tpu.vector_store %arg10[%c4_685, %c240_686], %440 {strides = array<i32>} : memref<8x256xf32, #tpu.memory_space<vmem>>, vector<2x16xf32>,
    %c69 = arith.constant 69 : index
    %c0_687 = arith.constant 0 : index
    %442 = tpu.strided_load %arg8[%c69, %c0_687] {strides = array<i32: 2, 1>} : memref<72x16xf32, #tpu.memory_space<vmem>>, vector<2x16xf32>
    %c6_688 = arith.constant 6 : index
    %c240_689 = arith.constant 240 : index
    %443 = vector.load %arg10[%c6_688, %c240_689] : memref<8x256xf32, #tpu.memory_space<vmem>>, vector<2x16xf32>
    tpu.vector_store %arg10[%c6_688, %c240_689], %442 {strides = array<i32>} : memref<8x256xf32, #tpu.memory_space<vmem>>, vector<2x16xf32>,
    %c0_690 = arith.constant 0 : index
    %c0_691 = arith.constant 0 : index
    %444 = vector.load %arg10[%c0_690, %c0_691] : memref<8x256xf32, #tpu.memory_space<vmem>>, vector<8x256xf32>
    %445 = arith.truncf %444 : vector<8x256xf32> to vector<8x256xbf16>
    %c0_692 = arith.constant 0 : index
    %c0_693 = arith.constant 0 : index
    %446 = vector.load %arg4[%c0_692, %c0_693] : memref<256x128xbf16, #tpu.memory_space<vmem>>, vector<256x128xbf16>
    %cst_694 = arith.constant dense<0.000000e+00> : vector<8x128xf32>
    %447 = tpu.matmul %445, %446, %cst_694 {dimension_numbers = #tpu.dot_dimension_numbers<[1], [0], [0], [1], [0, 0, 1, 1], [], []>} : vector<8x256xbf16>, vector<256x128xbf16>, vector<8x128xf32> -> vector<8x128xf32>
    %cst_695 = arith.constant dense<0.000000e+00> : vector<128xf32>
    %448 = vector.multi_reduction <add>, %447, %cst_695 [0] : vector<8x128xf32> to vector<128xf32>
    %449 = vector.shape_cast %448 : vector<128xf32> to vector<1x128xf32>
    %cst_696 = arith.constant 8.000000e+00 : f32
    %450 = vector.broadcast %cst_696 : f32 to vector<1x128xf32>
    %451 = arith.divf %449, %450 : vector<1x128xf32>
    %452 = vector.broadcast %451 : vector<1x128xf32> to vector<8x128xf32>
    %453 = arith.subf %447, %452 : vector<8x128xf32>
    %454 = arith.mulf %453, %453 : vector<8x128xf32>
    %cst_697 = arith.constant dense<0.000000e+00> : vector<128xf32>
    %455 = vector.multi_reduction <add>, %454, %cst_697 [0] : vector<8x128xf32> to vector<128xf32>
    %456 = vector.shape_cast %455 : vector<128xf32> to vector<1x128xf32>
    %cst_698 = arith.constant 8.000000e+00 : f32
    %457 = vector.broadcast %cst_698 : f32 to vector<1x128xf32>
    %458 = arith.divf %456, %457 : vector<1x128xf32>
    %459 = vector.broadcast %451 : vector<1x128xf32> to vector<8x128xf32>
    %460 = arith.subf %447, %459 : vector<8x128xf32>
    %cst_699 = arith.constant 9.99999974E-6 : f32
    %461 = vector.broadcast %cst_699 : f32 to vector<1x128xf32>
    %462 = arith.addf %458, %461 : vector<1x128xf32>
    %463 = math.rsqrt %462 : vector<1x128xf32>
    %464 = vector.broadcast %463 : vector<1x128xf32> to vector<8x128xf32>
    %465 = arith.mulf %460, %464 : vector<8x128xf32>
    %c2_700 = arith.constant 2 : index
    %c0_701 = arith.constant 0 : index
    %466 = vector.load %arg5[%c2_700, %c0_701] : memref<8x128xf32, #tpu.memory_space<vmem>>, vector<1x128xf32>
    %467 = vector.broadcast %466 : vector<1x128xf32> to vector<8x128xf32>
    %468 = arith.mulf %465, %467 : vector<8x128xf32>
    %c3_702 = arith.constant 3 : index
    %c0_703 = arith.constant 0 : index
    %469 = vector.load %arg5[%c3_702, %c0_703] : memref<8x128xf32, #tpu.memory_space<vmem>>, vector<1x128xf32>
    %470 = vector.broadcast %469 : vector<1x128xf32> to vector<8x128xf32>
    %471 = arith.addf %468, %470 : vector<8x128xf32>
    %cst_704 = arith.constant 0.000000e+00 : f32
    %472 = vector.broadcast %cst_704 : f32 to vector<8x128xf32>
    %473 = arith.cmpf oge, %471, %472 : vector<8x128xf32>
    %cst_705 = arith.constant 1.000000e-01 : f32
    %474 = vector.broadcast %cst_705 : f32 to vector<8x128xf32>
    %475 = arith.mulf %474, %471 : vector<8x128xf32>
    %476 = arith.select %473, %471, %475 : vector<8x128xi1>, vector<8x128xf32>
    %c0_706 = arith.constant 0 : index
    %c0_707 = arith.constant 0 : index
    %477 = vector.load %arg6[%c0_706, %c0_707] : memref<8x128xf32, #tpu.memory_space<vmem>>, vector<8x128xf32>
    tpu.vector_store %arg6[%c0_706, %c0_707], %476 {strides = array<i32>} : memref<8x128xf32, #tpu.memory_space<vmem>>, vector<8x128xf32>,
    return
  }
  func.func @transform_0(%arg0: i32) -> (i32, i32) {
    %c0_i32 = arith.constant 0 : i32
    %c0_i32_0 = arith.constant 0 : i32
    %c0_i32_1 = arith.constant 0 : i32
    return %c0_i32, %c0_i32_0 : i32, i32
  }
  func.func @transform_1(%arg0: i32) -> (i32, i32) {
    %c0_i32 = arith.constant 0 : i32
    %c0_i32_0 = arith.constant 0 : i32
    %c0_i32_1 = arith.constant 0 : i32
    return %c0_i32, %c0_i32_0 : i32, i32
  }
  func.func @transform_2(%arg0: i32) -> (i32, i32) {
    %c0_i32 = arith.constant 0 : i32
    %c0_i32_0 = arith.constant 0 : i32
    %c0_i32_1 = arith.constant 0 : i32
    return %c0_i32, %c0_i32_0 : i32, i32
  }
  func.func @transform_3(%arg0: i32) -> (i32, i32) {
    %c0_i32 = arith.constant 0 : i32
    %c0_i32_0 = arith.constant 0 : i32
    %c0_i32_1 = arith.constant 0 : i32
    return %c0_i32, %c0_i32_0 : i32, i32
  }
  func.func @transform_4(%arg0: i32) -> (i32, i32) {
    %c0_i32 = arith.constant 0 : i32
    %c0_i32_0 = arith.constant 0 : i32
    %c0_i32_1 = arith.constant 0 : i32
    return %c0_i32, %c0_i32_0 : i32, i32
  }
  func.func @transform_5(%arg0: i32) -> (i32, i32) {
    %c0_i32 = arith.constant 0 : i32
    %c0_i32_0 = arith.constant 0 : i32
    %c0_i32_1 = arith.constant 0 : i32
    return %c0_i32, %c0_i32_0 : i32, i32
  }
}

</mosaic_0001>

<llo_original>
// kernel: discriminator_forward.1
$region0: #{discriminator_forward.1}
  #allocation0 [shape = 'u32[]', space=smem, size = 0x4, offset = 0x4, fixed_abs, tag = 'smem constant byte address 0x4 - core index']
  #allocation1 [shape = 'u32[144,128]{1,0:T(1,128)}', space=vmem, size = 0x12000, scoped, tag = 'internal scratch']
  #allocation2 [shape = 'f32[200,8]{1,0:T(8,128)}', space=vmem, size = 0x19000, scoped, tag = 'scratch operand']
  #allocation3 [shape = 'f32[72,16]{1,0:T(8,128)}', space=vmem, size = 0x9000, scoped, tag = 'scratch operand']
  #allocation4 [shape = 'f32[32,128]{1,0:T(8,128)}', space=vmem, size = 0x4000, scoped, tag = 'scratch operand']
  #allocation5 [shape = 'f32[8,256]{1,0:T(8,128)}', space=vmem, size = 0x2000, scoped, tag = 'scratch operand']
  %s0 = inlined_call_operand.vmem [shape: bf16[200,49], index: 0, kind: input, shape index: {}]
  %s1 = inlined_call_operand.vmem [shape: bf16[49,8], index: 1, kind: input, shape index: {}]
  %s2 = inlined_call_operand.vmem [shape: bf16[128,16], index: 2, kind: input, shape index: {}]
  %s3 = inlined_call_operand.vmem [shape: bf16[256,128], index: 3, kind: input, shape index: {}]
  %s4 = inlined_call_operand.vmem [shape: f32[8,128], index: 4, kind: input, shape index: {}]
  %s5 = inlined_call_operand.hbm [shape: f32[8,128], index: 5, kind: output, shape index: {}]
  %s6 = sld [smem:[#allocation0]]
  $region30: #{discriminator_forward.1} parent=0
    _
  %s8 = ssub.s32 1, %s6
  %s9 = scalar_select 0, %s8, %s6
  $region1: #{discriminator_forward.1} parent=0
    #allocation6 [shape = 'u8[4096]{0}', space=vmem, size = 0x1000, scoped, tag = 'output window, operand 0, single buffered']
    #allocation7 [shape = 's32[1]{0}', space=sflag, size = 0x4, scoped, tag = 'scoped memory for discriminator_forward.1']
    %10 = vsyncpa [#allocation7], 0
    // Predicated region
    $region2: #{discriminator_forward.1} parent=1 // pred_check
      _
    $region3: #{discriminator_forward.1} parent=1 // pred_check_branch
      %12 = sbr.rel (0) target = $region5
    $region4: #{discriminator_forward.1} parent=1 // pred_region
      _
    $region5: #{discriminator_forward.1} parent=1 // pred_fallthru
      _
    // Predicated region
    $region6: #{discriminator_forward.1} parent=1 // pred_check
      _
    $region7: #{discriminator_forward.1} parent=1 // pred_check_branch
      %14 = sbr.rel (0) target = $region9
    $region8: #{discriminator_forward.1} parent=1 // pred_region
      _
    $region9: #{discriminator_forward.1} parent=1 // pred_fallthru
      _
    // Predicated region
    $region10: #{discriminator_forward.1} parent=1 // pred_check
      _
    $region11: #{discriminator_forward.1} parent=1 // pred_check_branch
      %16 = sbr.rel (0) target = $region13
    $region12: #{discriminator_forward.1} parent=1 // pred_region
      _
    $region13: #{discriminator_forward.1} parent=1 // pred_fallthru
      _
    // Predicated region
    $region14: #{discriminator_forward.1} parent=1 // pred_check
      _
    $region15: #{discriminator_forward.1} parent=1 // pred_check_branch
      %18 = sbr.rel (0) target = $region17
    $region16: #{discriminator_forward.1} parent=1 // pred_region
      _
    $region17: #{discriminator_forward.1} parent=1 // pred_fallthru
      _
    // Predicated region
    $region18: #{discriminator_forward.1} parent=1 // pred_check
      _
    $region19: #{discriminator_forward.1} parent=1 // pred_check_branch
      %20 = sbr.rel (0) target = $region21
    $region20: #{discriminator_forward.1} parent=1 // pred_region
      _
    $region21: #{discriminator_forward.1} parent=1 // pred_fallthru
      _
    %v22 = vld [vmem:[%s0] sm:$0xf]
    %v23 = vld [vmem:[%s0 + $0x4] sm:$0xf]
    %v24 = vld [vmem:[%s0 + $0x8] sm:$0xf]
    %v25 = vld [vmem:[%s0 + $0xc] sm:$0xf]
    %v26 = vld [vmem:[%s0 + $0x10] sm:$0xf]
    %v27 = vld [vmem:[%s0 + $0x14] sm:$0xf]
    %v28 = vld [vmem:[%s0 + $0x18] sm:$0xf]
    %v29 = vld [vmem:[%s0 + $0x1c] sm:$0xf]
    %v30 = vld [vmem:[%s0 + $0x20] sm:$0xf]
    %v31 = vld [vmem:[%s0 + $0x24] sm:$0xf]
    %v32 = vld [vmem:[%s0 + $0x28] sm:$0xf]
    %v33 = vld [vmem:[%s0 + $0x2c] sm:$0xf]
    %v34 = vld [vmem:[%s0 + $0x30] sm:$0xf]
    %v35 = vld [vmem:[%s0 + $0x34] sm:$0xf]
    %v36 = vld [vmem:[%s0 + $0x38] sm:$0xf]
    %v37 = vld [vmem:[%s0 + $0x3c] sm:$0xf]
    %v38 = vld [vmem:[%s0 + $0x40] sm:$0xf]
    %v39 = vld [vmem:[%s0 + $0x44] sm:$0xf]
    %v40 = vld [vmem:[%s0 + $0x48] sm:$0xf]
    %v41 = vld [vmem:[%s0 + $0x4c] sm:$0xf]
    %v42 = vld [vmem:[%s0 + $0x50] sm:$0xf]
    %v43 = vld [vmem:[%s0 + $0x54] sm:$0xf]
    %v44 = vld [vmem:[%s0 + $0x58] sm:$0xf]
    %v45 = vld [vmem:[%s0 + $0x5c] sm:$0xf]
    %v46 = vld [vmem:[%s0 + $0x60] sm:$0xf]
    %v47 = vld [vmem:[%s1] sm:$0xf]
    %v48 = vld [vmem:[%s1 + $0x4] sm:$0xf]
    %v49 = vld [vmem:[%s1 + $0x8] sm:$0xf]
    %v50 = vld [vmem:[%s1 + $0xc] sm:$0xf]
    %v51 = vld [vmem:[%s1 + $0x10] sm:$0xf]
    %v52 = vld [vmem:[%s1 + $0x14] sm:$0xf]
    %v53 = vld [vmem:[%s1 + $0x18] sm:$0x1]
    %v79 = vunpack.c.l.b16 %v22
    %v80 = vunpack.c.l.b16 %v23
    %v81 = vunpack.c.l.b16 %v24
    %v82 = vunpack.c.l.b16 %v25
    %v83 = vunpack.c.l.b16 %v26
    %v84 = vunpack.c.l.b16 %v27
    %v85 = vunpack.c.l.b16 %v28
    %v86 = vunpack.c.l.b16 %v29
    %v87 = vunpack.c.l.b16 %v30
    %v88 = vunpack.c.l.b16 %v31
    %v89 = vunpack.c.l.b16 %v32
    %v90 = vunpack.c.l.b16 %v33
    %v91 = vunpack.c.l.b16 %v34
    %v92 = vunpack.c.l.b16 %v35
    %v93 = vunpack.c.l.b16 %v36
    %v94 = vunpack.c.l.b16 %v37
    %v95 = vunpack.c.l.b16 %v38
    %v96 = vunpack.c.l.b16 %v39
    %v97 = vunpack.c.l.b16 %v40
    %v98 = vunpack.c.l.b16 %v41
    %v99 = vunpack.c.l.b16 %v42
    %v100 = vunpack.c.l.b16 %v43
    %v101 = vunpack.c.l.b16 %v44
    %v102 = vunpack.c.l.b16 %v45
    %v103 = vunpack.c.l.b16 %v46
    %v104 = vpack.c.b16 %v80, %v79
    %v105 = vpack.c.b16 %v82, %v81
    %v106 = vpack.c.b16 %v84, %v83
    %v107 = vpack.c.b16 %v86, %v85
    %v108 = vpack.c.b16 %v88, %v87
    %v109 = vpack.c.b16 %v90, %v89
    %v110 = vpack.c.b16 %v92, %v91
    %v111 = vpack.c.b16 %v94, %v93
    %v112 = vpack.c.b16 %v96, %v95
    %v113 = vpack.c.b16 %v98, %v97
    %v114 = vpack.c.b16 %v100, %v99
    %v115 = vpack.c.b16 %v102, %v101
    %v116 = vpack.c.b16 %v103, %v103
    %v124 = vunpack.c.l.b16 %v47
    %v125 = vunpack.c.l.b16 %v48
    %v126 = vunpack.c.l.b16 %v49
    %v127 = vunpack.c.l.b16 %v50
    %v128 = vunpack.c.l.b16 %v51
    %v129 = vunpack.c.l.b16 %v52
    %v130 = vunpack.c.l.b16 %v53
    %v131 = vpack.c.b16 %v125, %v124
    %v132 = vpack.c.b16 %v127, %v126
    %v133 = vpack.c.b16 %v129, %v128
    %v134 = vpack.c.b16 %v130, %v130
    %vm138 = vcmask 400384
    %v140 = vsel %vm138, %v104, 0
    %v143 = vsel %vm138, %v105, 0
    %v146 = vsel %vm138, %v106, 0
    %v149 = vsel %vm138, %v107, 0
    %v152 = vsel %vm138, %v108, 0
    %v155 = vsel %vm138, %v109, 0
    %v158 = vsel %vm138, %v110, 0
    %v161 = vsel %vm138, %v111, 0
    %v164 = vsel %vm138, %v112, 0
    %v167 = vsel %vm138, %v113, 0
    %v170 = vsel %vm138, %v114, 0
    %v173 = vsel %vm138, %v115, 0
    %v176 = vsel %vm138, %v116, 0
    %vm178 = vcmask 1040384
    %v179 = vsel 0, 4294967295, 65535
    %v180 = vsel %vm178, %v179, 0
    %v182 = vand.u32 %v134, %v180
    %184 = vmatprep.subr.bf16.mxu0 0
    %185 = vmatpush1.bf16.msra.mxu0 %v131
    %186 = vmatprep.subr.bf16.mxu0 0
    %187 = vmatpush1.bf16.msra.mxu0 %v132
    %188 = vmatprep.subr.bf16.mxu0 0
    %189 = vmatpush1.bf16.msra.mxu0 %v133
    %190 = vmatprep.subr.bf16.mxu0 0
    %191 = vmatpush1.bf16.msra.mxu0 %v182
    %192 = vmatprep.subr.bf16.mxu0 0
    %193 = vmatpush1.bf16.msra.mxu0 0
    %194 = vmatprep.subr.bf16.mxu0 0
    %195 = vmatpush1.bf16.msra.mxu0 0
    %196 = vmatprep.subr.bf16.mxu0 0
    %197 = vmatpush1.bf16.msra.mxu0 0
    %198 = vmatprep.subr.bf16.mxu0 0
    %199 = vmatpush1.bf16.msra.mxu0 0
    %200 = vmatprep.subr.bf16.mxu0 0
    %201 = vmatpush1.bf16.msra.mxu0 0
    %202 = vmatprep.subr.bf16.mxu0 0
    %203 = vmatpush1.bf16.msra.mxu0 0
    %204 = vmatprep.subr.bf16.mxu0 0
    %205 = vmatpush1.bf16.msra.mxu0 0
    %206 = vmatprep.subr.bf16.mxu0 0
    %207 = vmatpush1.bf16.msra.mxu0 0
    %208 = vmatprep.subr.bf16.mxu0 0
    %209 = vmatpush1.bf16.msra.mxu0 0
    %210 = vmatprep.subr.bf16.mxu0 0
    %211 = vmatpush1.bf16.msra.mxu0 0
    %212 = vmatprep.subr.bf16.mxu0 0
    %213 = vmatpush1.bf16.msra.mxu0 0
    %214 = vmatprep.subr.bf16.mxu0 0
    %215 = vmatpush1.bf16.msra.mxu0 0
    %216 = vmatprep.mubr.bf16.mxu0 0
    %217 = vmatmul.mubr.bf16.gmra.mrb[0].mxu0 %v140
    %v218 = vpop.f32.mrb[0].mxu0
    %v219 = vadd.f32 0.0, %v218
    %v220 = vpop.f32.mrb[0].mxu0
    %v221 = vpop.f32.mrb[0].mxu0
    %v222 = vadd.f32 0.0, %v221
    %v223 = vpop.f32.mrb[0].mxu0
    %224 = vmatprep.mubr.bf16.mxu0 0
    %225 = vmatmul.mubr.bf16.gmra.mrb[0].mxu0 %v143
    %v226 = vpop.f32.mrb[0].mxu0
    %v227 = vadd.f32 0.0, %v226
    %v228 = vpop.f32.mrb[0].mxu0
    %v229 = vpop.f32.mrb[0].mxu0
    %v230 = vadd.f32 0.0, %v229
    %v231 = vpop.f32.mrb[0].mxu0
    %232 = vmatprep.mubr.bf16.mxu0 0
    %233 = vmatmul.mubr.bf16.gmra.mrb[0].mxu0 %v146
    %v234 = vpop.f32.mrb[0].mxu0
    %v235 = vadd.f32 0.0, %v234
    %v236 = vpop.f32.mrb[0].mxu0
    %v237 = vpop.f32.mrb[0].mxu0
    %v238 = vadd.f32 0.0, %v237
    %v239 = vpop.f32.mrb[0].mxu0
    %240 = vmatprep.mubr.bf16.mxu0 0
    %241 = vmatmul.mubr.bf16.gmra.mrb[0].mxu0 %v149
    %v242 = vpop.f32.mrb[0].mxu0
    %v243 = vadd.f32 0.0, %v242
    %v244 = vpop.f32.mrb[0].mxu0
    %v245 = vpop.f32.mrb[0].mxu0
    %v246 = vadd.f32 0.0, %v245
    %v247 = vpop.f32.mrb[0].mxu0
    %248 = vmatprep.mubr.bf16.mxu0 0
    %249 = vmatmul.mubr.bf16.gmra.mrb[0].mxu0 %v152
    %v250 = vpop.f32.mrb[0].mxu0
    %v251 = vadd.f32 0.0, %v250
    %v252 = vpop.f32.mrb[0].mxu0
    %v253 = vpop.f32.mrb[0].mxu0
    %v254 = vadd.f32 0.0, %v253
    %v255 = vpop.f32.mrb[0].mxu0
    %256 = vmatprep.mubr.bf16.mxu0 0
    %257 = vmatmul.mubr.bf16.gmra.mrb[0].mxu0 %v155
    %v258 = vpop.f32.mrb[0].mxu0
    %v259 = vadd.f32 0.0, %v258
    %v260 = vpop.f32.mrb[0].mxu0
    %v261 = vpop.f32.mrb[0].mxu0
    %v262 = vadd.f32 0.0, %v261
    %v263 = vpop.f32.mrb[0].mxu0
    %264 = vmatprep.mubr.bf16.mxu0 0
    %265 = vmatmul.mubr.bf16.gmra.mrb[0].mxu0 %v158
    %v266 = vpop.f32.mrb[0].mxu0
    %v267 = vadd.f32 0.0, %v266
    %v268 = vpop.f32.mrb[0].mxu0
    %v269 = vpop.f32.mrb[0].mxu0
    %v270 = vadd.f32 0.0, %v269
    %v271 = vpop.f32.mrb[0].mxu0
    %272 = vmatprep.mubr.bf16.mxu0 0
    %273 = vmatmul.mubr.bf16.gmra.mrb[0].mxu0 %v161
    %v274 = vpop.f32.mrb[0].mxu0
    %v275 = vadd.f32 0.0, %v274
    %v276 = vpop.f32.mrb[0].mxu0
    %v277 = vpop.f32.mrb[0].mxu0
    %v278 = vadd.f32 0.0, %v277
    %v279 = vpop.f32.mrb[0].mxu0
    %280 = vmatprep.mubr.bf16.mxu0 0
    %281 = vmatmul.mubr.bf16.gmra.mrb[0].mxu0 %v164
    %v282 = vpop.f32.mrb[0].mxu0
    %v283 = vadd.f32 0.0, %v282
    %v284 = vpop.f32.mrb[0].mxu0
    %v285 = vpop.f32.mrb[0].mxu0
    %v286 = vadd.f32 0.0, %v285
    %v287 = vpop.f32.mrb[0].mxu0
    %288 = vmatprep.mubr.bf16.mxu0 0
    %289 = vmatmul.mubr.bf16.gmra.mrb[0].mxu0 %v167
    %v290 = vpop.f32.mrb[0].mxu0
    %v291 = vadd.f32 0.0, %v290
    %v292 = vpop.f32.mrb[0].mxu0
    %v293 = vpop.f32.mrb[0].mxu0
    %v294 = vadd.f32 0.0, %v293
    %v295 = vpop.f32.mrb[0].mxu0
    %296 = vmatprep.mubr.bf16.mxu0 0
    %297 = vmatmul.mubr.bf16.gmra.mrb[0].mxu0 %v170
    %v298 = vpop.f32.mrb[0].mxu0
    %v299 = vadd.f32 0.0, %v298
    %v300 = vpop.f32.mrb[0].mxu0
    %v301 = vpop.f32.mrb[0].mxu0
    %v302 = vadd.f32 0.0, %v301
    %v303 = vpop.f32.mrb[0].mxu0
    %304 = vmatprep.mubr.bf16.mxu0 0
    %305 = vmatmul.mubr.bf16.gmra.mrb[0].mxu0 %v173
    %v306 = vpop.f32.mrb[0].mxu0
    %v307 = vadd.f32 0.0, %v306
    %v308 = vpop.f32.mrb[0].mxu0
    %v309 = vpop.f32.mrb[0].mxu0
    %v310 = vadd.f32 0.0, %v309
    %v311 = vpop.f32.mrb[0].mxu0
    %312 = vmatprep.mubr.bf16.mxu0 0
    %313 = vmatmul.mubr.bf16.gmra.mrb[0].mxu0 %v176
    %v314 = vpop.f32.mrb[0].mxu0
    %v315 = vadd.f32 0.0, %v314
    %v316 = vpop.f32.mrb[0].mxu0
    %v317 = vpop.f32.mrb[0].mxu0
    %v318 = vpop.f32.mrb[0].mxu0
    %319 = vdwg.mxu0
    %vm320 = vcmp.ge.f32.partialorder %v219, 0.0
    %vm321 = vcmp.ge.f32.partialorder %v222, 0.0
    %vm322 = vcmp.ge.f32.partialorder %v227, 0.0
    %vm323 = vcmp.ge.f32.partialorder %v230, 0.0
    %vm324 = vcmp.ge.f32.partialorder %v235, 0.0
    %vm325 = vcmp.ge.f32.partialorder %v238, 0.0
    %vm326 = vcmp.ge.f32.partialorder %v243, 0.0
    %vm327 = vcmp.ge.f32.partialorder %v246, 0.0
    %vm328 = vcmp.ge.f32.partialorder %v251, 0.0
    %vm329 = vcmp.ge.f32.partialorder %v254, 0.0
    %vm330 = vcmp.ge.f32.partialorder %v259, 0.0
    %vm331 = vcmp.ge.f32.partialorder %v262, 0.0
    %vm332 = vcmp.ge.f32.partialorder %v267, 0.0
    %vm333 = vcmp.ge.f32.partialorder %v270, 0.0
    %vm334 = vcmp.ge.f32.partialorder %v275, 0.0
    %vm335 = vcmp.ge.f32.partialorder %v278, 0.0
    %vm336 = vcmp.ge.f32.partialorder %v283, 0.0
    %vm337 = vcmp.ge.f32.partialorder %v286, 0.0
    %vm338 = vcmp.ge.f32.partialorder %v291, 0.0
    %vm339 = vcmp.ge.f32.partialorder %v294, 0.0
    %vm340 = vcmp.ge.f32.partialorder %v299, 0.0
    %vm341 = vcmp.ge.f32.partialorder %v302, 0.0
    %vm342 = vcmp.ge.f32.partialorder %v307, 0.0
    %vm343 = vcmp.ge.f32.partialorder %v310, 0.0
    %vm344 = vcmp.ge.f32.partialorder %v315, 0.0
    %v345 = vmul.f32 %v219, 0.1
    %v346 = vmul.f32 %v222, 0.1
    %v347 = vmul.f32 %v227, 0.1
    %v348 = vmul.f32 %v230, 0.1
    %v349 = vmul.f32 %v235, 0.1
    %v350 = vmul.f32 %v238, 0.1
    %v351 = vmul.f32 %v243, 0.1
    %v352 = vmul.f32 %v246, 0.1
    %v353 = vmul.f32 %v251, 0.1
    %v354 = vmul.f32 %v254, 0.1
    %v355 = vmul.f32 %v259, 0.1
    %v356 = vmul.f32 %v262, 0.1
    %v357 = vmul.f32 %v267, 0.1
    %v358 = vmul.f32 %v270, 0.1
    %v359 = vmul.f32 %v275, 0.1
    %v360 = vmul.f32 %v278, 0.1
    %v361 = vmul.f32 %v283, 0.1
    %v362 = vmul.f32 %v286, 0.1
    %v363 = vmul.f32 %v291, 0.1
    %v364 = vmul.f32 %v294, 0.1
    %v365 = vmul.f32 %v299, 0.1
    %v366 = vmul.f32 %v302, 0.1
    %v367 = vmul.f32 %v307, 0.1
    %v368 = vmul.f32 %v310, 0.1
    %v369 = vmul.f32 %v315, 0.1
    %v370 = vsel %vm320, %v219, %v345
    %v371 = vsel %vm321, %v222, %v346
    %v372 = vsel %vm322, %v227, %v347
    %v373 = vsel %vm323, %v230, %v348
    %v374 = vsel %vm324, %v235, %v349
    %v375 = vsel %vm325, %v238, %v350
    %v376 = vsel %vm326, %v243, %v351
    %v377 = vsel %vm327, %v246, %v352
    %v378 = vsel %vm328, %v251, %v353
    %v379 = vsel %vm329, %v254, %v354
    %v380 = vsel %vm330, %v259, %v355
    %v381 = vsel %vm331, %v262, %v356
    %v382 = vsel %vm332, %v267, %v357
    %v383 = vsel %vm333, %v270, %v358
    %v384 = vsel %vm334, %v275, %v359
    %v385 = vsel %vm335, %v278, %v360
    %v386 = vsel %vm336, %v283, %v361
    %v387 = vsel %vm337, %v286, %v362
    %v388 = vsel %vm338, %v291, %v363
    %v389 = vsel %vm339, %v294, %v364
    %v390 = vsel %vm340, %v299, %v365
    %v391 = vsel %vm341, %v302, %v366
    %v392 = vsel %vm342, %v307, %v367
    %v393 = vsel %vm343, %v310, %v368
    %v394 = vsel %vm344, %v315, %v369
    %vm395 = vcmask 64512
    %396 = vst.msk [vmem:[#allocation2] sm:$0xff] %vm395, %v370
    %397 = vst.msk [vmem:[#allocation2 + $0x8] sm:$0xff] %vm395, %v371
    %398 = vst.msk [vmem:[#allocation2 + $0x10] sm:$0xff] %vm395, %v372
    %399 = vst.msk [vmem:[#allocation2 + $0x18] sm:$0xff] %vm395, %v373
    %400 = vst.msk [vmem:[#allocation2 + $0x20] sm:$0xff] %vm395, %v374
    %401 = vst.msk [vmem:[#allocation2 + $0x28] sm:$0xff] %vm395, %v375
    %402 = vst.msk [vmem:[#allocation2 + $0x30] sm:$0xff] %vm395, %v376
    %403 = vst.msk [vmem:[#allocation2 + $0x38] sm:$0xff] %vm395, %v377
    %404 = vst.msk [vmem:[#allocation2 + $0x40] sm:$0xff] %vm395, %v378
    %405 = vst.msk [vmem:[#allocation2 + $0x48] sm:$0xff] %vm395, %v379
    %406 = vst.msk [vmem:[#allocation2 + $0x50] sm:$0xff] %vm395, %v380
    %407 = vst.msk [vmem:[#allocation2 + $0x58] sm:$0xff] %vm395, %v381
    %408 = vst.msk [vmem:[#allocation2 + $0x60] sm:$0xff] %vm395, %v382
    %409 = vst.msk [vmem:[#allocation2 + $0x68] sm:$0xff] %vm395, %v383
    %410 = vst.msk [vmem:[#allocation2 + $0x70] sm:$0xff] %vm395, %v384
    %411 = vst.msk [vmem:[#allocation2 + $0x78] sm:$0xff] %vm395, %v385
    %412 = vst.msk [vmem:[#allocation2 + $0x80] sm:$0xff] %vm395, %v386
    %413 = vst.msk [vmem:[#allocation2 + $0x88] sm:$0xff] %vm395, %v387
    %414 = vst.msk [vmem:[#allocation2 + $0x90] sm:$0xff] %vm395, %v388
    %415 = vst.msk [vmem:[#allocation2 + $0x98] sm:$0xff] %vm395, %v389
    %416 = vst.msk [vmem:[#allocation2 + $0xa0] sm:$0xff] %vm395, %v390
    %417 = vst.msk [vmem:[#allocation2 + $0xa8] sm:$0xff] %vm395, %v391
    %418 = vst.msk [vmem:[#allocation2 + $0xb0] sm:$0xff] %vm395, %v392
    %419 = vst.msk [vmem:[#allocation2 + $0xb8] sm:$0xff] %vm395, %v393
    %420 = vst.msk [vmem:[#allocation2 + $0xc0] sm:$0xff] %vm395, %v394
    %v421 = vld [vmem:[#allocation2] ss:$2 sm:$0xf]
    %vm422 = vcmask 60416
    %423 = vst.msk [vmem:[#allocation4] sm:$0xf] %vm422, %v421
    %s424 = scalar_lea.vmem [#allocation2], 20
    %v425 = vld [vmem:[%s424] ss:$2 sm:$0xf]
    %426 = vst.msk [vmem:[#allocation4 + $0x4] sm:$0xf] %vm422, %v425
    %s427 = scalar_lea.vmem [#allocation2], 40
    %v428 = vld [vmem:[%s427] ss:$2 sm:$0xf]
    %429 = vst.msk [vmem:[#allocation4 + $0x8] sm:$0xf] %vm422, %v428
    %s430 = scalar_lea.vmem [#allocation2], 60
    %v431 = vld [vmem:[%s430] ss:$2 sm:$0xf]
    %432 = vst.msk [vmem:[#allocation4 + $0xc] sm:$0xf] %vm422, %v431
    %s433 = scalar_lea.vmem [#allocation2], 100
    %v434 = vld [vmem:[%s433] ss:$2 sm:$0xf]
    %435 = vst.msk [vmem:[#allocation4 + $0x10] sm:$0xf] %vm422, %v434
    %s436 = scalar_lea.vmem [#allocation2], 120
    %v437 = vld [vmem:[%s436] ss:$2 sm:$0xf]
    %438 = vst.msk [vmem:[#allocation4 + $0x14] sm:$0xf] %vm422, %v437
    %s439 = scalar_lea.vmem [#allocation2], 140
    %v440 = vld [vmem:[%s439] ss:$2 sm:$0xf]
    %441 = vst.msk [vmem:[#allocation4 + $0x18] sm:$0xf] %vm422, %v440
    %s442 = scalar_lea.vmem [#allocation2], 160
    %v443 = vld [vmem:[%s442] ss:$2 sm:$0xf]
    %444 = vst.msk [vmem:[#allocation4 + $0x1c] sm:$0xf] %vm422, %v443
    %s445 = scalar_lea.vmem [#allocation2], 1
    %v446 = vld [vmem:[%s445] ss:$2 sm:$0xf]
    %448 = vrot.lane.b32.xlu0 %v446, 8
    %v449 = vpop.permute.xlu0 %448
    %vm451 = vcmask 126016
    %452 = vst.msk [vmem:[#allocation4] sm:$0xf] %vm451, %v449
    %s453 = scalar_lea.vmem [#allocation2], 21
    %v454 = vld [vmem:[%s453] ss:$2 sm:$0xf]
    %456 = vrot.lane.b32.xlu0 %v454, 8
    %v457 = vpop.permute.xlu0 %456
    %459 = vst.msk [vmem:[#allocation4 + $0x4] sm:$0xf] %vm451, %v457
    %s460 = scalar_lea.vmem [#allocation2], 41
    %v461 = vld [vmem:[%s460] ss:$2 sm:$0xf]
    %463 = vrot.lane.b32.xlu0 %v461, 8
    %v464 = vpop.permute.xlu0 %463
    %466 = vst.msk [vmem:[#allocation4 + $0x8] sm:$0xf] %vm451, %v464
    %s467 = scalar_lea.vmem [#allocation2], 61
    %v468 = vld [vmem:[%s467] ss:$2 sm:$0xf]
    %470 = vrot.lane.b32.xlu0 %v468, 8
    %v471 = vpop.permute.xlu0 %470
    %473 = vst.msk [vmem:[#allocation4 + $0xc] sm:$0xf] %vm451, %v471
    %s474 = scalar_lea.vmem [#allocation2], 101
    %v475 = vld [vmem:[%s474] ss:$2 sm:$0xf]
    %477 = vrot.lane.b32.xlu0 %v475, 8
    %v478 = vpop.permute.xlu0 %477
    %480 = vst.msk [vmem:[#allocation4 + $0x10] sm:$0xf] %vm451, %v478
    %s481 = scalar_lea.vmem [#allocation2], 121
    %v482 = vld [vmem:[%s481] ss:$2 sm:$0xf]
    %484 = vrot.lane.b32.xlu0 %v482, 8
    %v485 = vpop.permute.xlu0 %484
    %487 = vst.msk [vmem:[#allocation4 + $0x14] sm:$0xf] %vm451, %v485
    %s488 = scalar_lea.vmem [#allocation2], 141
    %v489 = vld [vmem:[%s488] ss:$2 sm:$0xf]
    %491 = vrot.lane.b32.xlu0 %v489, 8
    %v492 = vpop.permute.xlu0 %491
    %494 = vst.msk [vmem:[#allocation4 + $0x18] sm:$0xf] %vm451, %v492
    %s495 = scalar_lea.vmem [#allocation2], 161
    %v496 = vld [vmem:[%s495] ss:$2 sm:$0xf]
    %498 = vrot.lane.b32.xlu0 %v496, 8
    %v499 = vpop.permute.xlu0 %498
    %501 = vst.msk [vmem:[#allocation4 + $0x1c] sm:$0xf] %vm451, %v499
    %s502 = scalar_lea.vmem [#allocation2], 2
    %v503 = vld [vmem:[%s502] ss:$2 sm:$0xf]
    %505 = vrot.lane.b32.xlu0 %v503, 16
    %v506 = vpop.permute.xlu0 %505
    %vm508 = vcmask 191616
    %509 = vst.msk [vmem:[#allocation4] sm:$0xf] %vm508, %v506
    %s510 = scalar_lea.vmem [#allocation2], 22
    %v511 = vld [vmem:[%s510] ss:$2 sm:$0xf]
    %513 = vrot.lane.b32.xlu0 %v511, 16
    %v514 = vpop.permute.xlu0 %513
    %516 = vst.msk [vmem:[#allocation4 + $0x4] sm:$0xf] %vm508, %v514
    %s517 = scalar_lea.vmem [#allocation2], 42
    %v518 = vld [vmem:[%s517] ss:$2 sm:$0xf]
    %520 = vrot.lane.b32.xlu0 %v518, 16
    %v521 = vpop.permute.xlu0 %520
    %523 = vst.msk [vmem:[#allocation4 + $0x8] sm:$0xf] %vm508, %v521
    %s524 = scalar_lea.vmem [#allocation2], 62
    %v525 = vld [vmem:[%s524] ss:$2 sm:$0xf]
    %527 = vrot.lane.b32.xlu0 %v525, 16
    %v528 = vpop.permute.xlu0 %527
    %530 = vst.msk [vmem:[#allocation4 + $0xc] sm:$0xf] %vm508, %v528
    %s531 = scalar_lea.vmem [#allocation2], 102
    %v532 = vld [vmem:[%s531] ss:$2 sm:$0xf]
    %534 = vrot.lane.b32.xlu0 %v532, 16
    %v535 = vpop.permute.xlu0 %534
    %537 = vst.msk [vmem:[#allocation4 + $0x10] sm:$0xf] %vm508, %v535
    %s538 = scalar_lea.vmem [#allocation2], 122
    %v539 = vld [vmem:[%s538] ss:$2 sm:$0xf]
    %541 = vrot.lane.b32.xlu0 %v539, 16
    %v542 = vpop.permute.xlu0 %541
    %544 = vst.msk [vmem:[#allocation4 + $0x14] sm:$0xf] %vm508, %v542
    %s545 = scalar_lea.vmem [#allocation2], 142
    %v546 = vld [vmem:[%s545] ss:$2 sm:$0xf]
    %548 = vrot.lane.b32.xlu0 %v546, 16
    %v549 = vpop.permute.xlu0 %548
    %551 = vst.msk [vmem:[#allocation4 + $0x18] sm:$0xf] %vm508, %v549
    %s552 = scalar_lea.vmem [#allocation2], 162
    %v553 = vld [vmem:[%s552] ss:$2 sm:$0xf]
    %555 = vrot.lane.b32.xlu0 %v553, 16
    %v556 = vpop.permute.xlu0 %555
    %558 = vst.msk [vmem:[#allocation4 + $0x1c] sm:$0xf] %vm508, %v556
    %s559 = scalar_lea.vmem [#allocation2], 3
    %v560 = vld [vmem:[%s559] ss:$2 sm:$0xf]
    %562 = vrot.lane.b32.xlu0 %v560, 24
    %v563 = vpop.permute.xlu0 %562
    %vm565 = vcmask 257216
    %566 = vst.msk [vmem:[#allocation4] sm:$0xf] %vm565, %v563
    %s567 = scalar_lea.vmem [#allocation2], 23
    %v568 = vld [vmem:[%s567] ss:$2 sm:$0xf]
    %570 = vrot.lane.b32.xlu0 %v568, 24
    %v571 = vpop.permute.xlu0 %570
    %573 = vst.msk [vmem:[#allocation4 + $0x4] sm:$0xf] %vm565, %v571
    %s574 = scalar_lea.vmem [#allocation2], 43
    %v575 = vld [vmem:[%s574] ss:$2 sm:$0xf]
    %577 = vrot.lane.b32.xlu0 %v575, 24
    %v578 = vpop.permute.xlu0 %577
    %580 = vst.msk [vmem:[#allocation4 + $0x8] sm:$0xf] %vm565, %v578
    %s581 = scalar_lea.vmem [#allocation2], 63
    %v582 = vld [vmem:[%s581] ss:$2 sm:$0xf]
    %584 = vrot.lane.b32.xlu0 %v582, 24
    %v585 = vpop.permute.xlu0 %584
    %587 = vst.msk [vmem:[#allocation4 + $0xc] sm:$0xf] %vm565, %v585
    %s588 = scalar_lea.vmem [#allocation2], 103
    %v589 = vld [vmem:[%s588] ss:$2 sm:$0xf]
    %591 = vrot.lane.b32.xlu0 %v589, 24
    %v592 = vpop.permute.xlu0 %591
    %594 = vst.msk [vmem:[#allocation4 + $0x10] sm:$0xf] %vm565, %v592
    %s595 = scalar_lea.vmem [#allocation2], 123
    %v596 = vld [vmem:[%s595] ss:$2 sm:$0xf]
    %598 = vrot.lane.b32.xlu0 %v596, 24
    %v599 = vpop.permute.xlu0 %598
    %601 = vst.msk [vmem:[#allocation4 + $0x14] sm:$0xf] %vm565, %v599
    %s602 = scalar_lea.vmem [#allocation2], 143
    %v603 = vld [vmem:[%s602] ss:$2 sm:$0xf]
    %605 = vrot.lane.b32.xlu0 %v603, 24
    %v606 = vpop.permute.xlu0 %605
    %608 = vst.msk [vmem:[#allocation4 + $0x18] sm:$0xf] %vm565, %v606
    %s609 = scalar_lea.vmem [#allocation2], 163
    %v610 = vld [vmem:[%s609] ss:$2 sm:$0xf]
    %612 = vrot.lane.b32.xlu0 %v610, 24
    %v613 = vpop.permute.xlu0 %612
    %615 = vst.msk [vmem:[#allocation4 + $0x1c] sm:$0xf] %vm565, %v613
    %s616 = scalar_lea.vmem [#allocation2], 10
    %v617 = vld [vmem:[%s616] ss:$2 sm:$0xf]
    %619 = vrot.lane.b32.xlu0 %v617, 32
    %v620 = vpop.permute.xlu0 %619
    %vm622 = vcmask 322816
    %623 = vst.msk [vmem:[#allocation4] sm:$0xf] %vm622, %v620
    %s624 = scalar_lea.vmem [#allocation2], 30
    %v625 = vld [vmem:[%s624] ss:$2 sm:$0xf]
    %627 = vrot.lane.b32.xlu0 %v625, 32
    %v628 = vpop.permute.xlu0 %627
    %630 = vst.msk [vmem:[#allocation4 + $0x4] sm:$0xf] %vm622, %v628
    %s631 = scalar_lea.vmem [#allocation2], 50
    %v632 = vld [vmem:[%s631] ss:$2 sm:$0xf]
    %634 = vrot.lane.b32.xlu0 %v632, 32
    %v635 = vpop.permute.xlu0 %634
    %637 = vst.msk [vmem:[#allocation4 + $0x8] sm:$0xf] %vm622, %v635
    %s638 = scalar_lea.vmem [#allocation2], 70
    %v639 = vld [vmem:[%s638] ss:$2 sm:$0xf]
    %641 = vrot.lane.b32.xlu0 %v639, 32
    %v642 = vpop.permute.xlu0 %641
    %644 = vst.msk [vmem:[#allocation4 + $0xc] sm:$0xf] %vm622, %v642
    %s645 = scalar_lea.vmem [#allocation2], 110
    %v646 = vld [vmem:[%s645] ss:$2 sm:$0xf]
    %648 = vrot.lane.b32.xlu0 %v646, 32
    %v649 = vpop.permute.xlu0 %648
    %651 = vst.msk [vmem:[#allocation4 + $0x10] sm:$0xf] %vm622, %v649
    %s652 = scalar_lea.vmem [#allocation2], 130
    %v653 = vld [vmem:[%s652] ss:$2 sm:$0xf]
    %655 = vrot.lane.b32.xlu0 %v653, 32
    %v656 = vpop.permute.xlu0 %655
    %658 = vst.msk [vmem:[#allocation4 + $0x14] sm:$0xf] %vm622, %v656
    %s659 = scalar_lea.vmem [#allocation2], 150
    %v660 = vld [vmem:[%s659] ss:$2 sm:$0xf]
    %662 = vrot.lane.b32.xlu0 %v660, 32
    %v663 = vpop.permute.xlu0 %662
    %665 = vst.msk [vmem:[#allocation4 + $0x18] sm:$0xf] %vm622, %v663
    %s666 = scalar_lea.vmem [#allocation2], 170
    %v667 = vld [vmem:[%s666] ss:$2 sm:$0xf]
    %669 = vrot.lane.b32.xlu0 %v667, 32
    %v670 = vpop.permute.xlu0 %669
    %672 = vst.msk [vmem:[#allocation4 + $0x1c] sm:$0xf] %vm622, %v670
    %s673 = scalar_lea.vmem [#allocation2], 11
    %v674 = vld [vmem:[%s673] ss:$2 sm:$0xf]
    %676 = vrot.lane.b32.xlu0 %v674, 40
    %v677 = vpop.permute.xlu0 %676
    %vm679 = vcmask 388416
    %680 = vst.msk [vmem:[#allocation4] sm:$0xf] %vm679, %v677
    %s681 = scalar_lea.vmem [#allocation2], 31
    %v682 = vld [vmem:[%s681] ss:$2 sm:$0xf]
    %684 = vrot.lane.b32.xlu0 %v682, 40
    %v685 = vpop.permute.xlu0 %684
    %687 = vst.msk [vmem:[#allocation4 + $0x4] sm:$0xf] %vm679, %v685
    %s688 = scalar_lea.vmem [#allocation2], 51
    %v689 = vld [vmem:[%s688] ss:$2 sm:$0xf]
    %691 = vrot.lane.b32.xlu0 %v689, 40
    %v692 = vpop.permute.xlu0 %691
    %694 = vst.msk [vmem:[#allocation4 + $0x8] sm:$0xf] %vm679, %v692
    %s695 = scalar_lea.vmem [#allocation2], 71
    %v696 = vld [vmem:[%s695] ss:$2 sm:$0xf]
    %698 = vrot.lane.b32.xlu0 %v696, 40
    %v699 = vpop.permute.xlu0 %698
    %701 = vst.msk [vmem:[#allocation4 + $0xc] sm:$0xf] %vm679, %v699
    %s702 = scalar_lea.vmem [#allocation2], 111
    %v703 = vld [vmem:[%s702] ss:$2 sm:$0xf]
    %705 = vrot.lane.b32.xlu0 %v703, 40
    %v706 = vpop.permute.xlu0 %705
    %708 = vst.msk [vmem:[#allocation4 + $0x10] sm:$0xf] %vm679, %v706
    %s709 = scalar_lea.vmem [#allocation2], 131
    %v710 = vld [vmem:[%s709] ss:$2 sm:$0xf]
    %712 = vrot.lane.b32.xlu0 %v710, 40
    %v713 = vpop.permute.xlu0 %712
    %715 = vst.msk [vmem:[#allocation4 + $0x14] sm:$0xf] %vm679, %v713
    %s716 = scalar_lea.vmem [#allocation2], 151
    %v717 = vld [vmem:[%s716] ss:$2 sm:$0xf]
    %719 = vrot.lane.b32.xlu0 %v717, 40
    %v720 = vpop.permute.xlu0 %719
    %722 = vst.msk [vmem:[#allocation4 + $0x18] sm:$0xf] %vm679, %v720
    %s723 = scalar_lea.vmem [#allocation2], 171
    %v724 = vld [vmem:[%s723] ss:$2 sm:$0xf]
    %726 = vrot.lane.b32.xlu0 %v724, 40
    %v727 = vpop.permute.xlu0 %726
    %729 = vst.msk [vmem:[#allocation4 + $0x1c] sm:$0xf] %vm679, %v727
    %s730 = scalar_lea.vmem [#allocation2], 12
    %v731 = vld [vmem:[%s730] ss:$2 sm:$0xf]
    %733 = vrot.lane.b32.xlu0 %v731, 48
    %v734 = vpop.permute.xlu0 %733
    %vm736 = vcmask 454016
    %737 = vst.msk [vmem:[#allocation4] sm:$0xf] %vm736, %v734
    %s738 = scalar_lea.vmem [#allocation2], 32
    %v739 = vld [vmem:[%s738] ss:$2 sm:$0xf]
    %741 = vrot.lane.b32.xlu0 %v739, 48
    %v742 = vpop.permute.xlu0 %741
    %744 = vst.msk [vmem:[#allocation4 + $0x4] sm:$0xf] %vm736, %v742
    %s745 = scalar_lea.vmem [#allocation2], 52
    %v746 = vld [vmem:[%s745] ss:$2 sm:$0xf]
    %748 = vrot.lane.b32.xlu0 %v746, 48
    %v749 = vpop.permute.xlu0 %748
    %751 = vst.msk [vmem:[#allocation4 + $0x8] sm:$0xf] %vm736, %v749
    %s752 = scalar_lea.vmem [#allocation2], 72
    %v753 = vld [vmem:[%s752] ss:$2 sm:$0xf]
    %755 = vrot.lane.b32.xlu0 %v753, 48
    %v756 = vpop.permute.xlu0 %755
    %758 = vst.msk [vmem:[#allocation4 + $0xc] sm:$0xf] %vm736, %v756
    %s759 = scalar_lea.vmem [#allocation2], 112
    %v760 = vld [vmem:[%s759] ss:$2 sm:$0xf]
    %762 = vrot.lane.b32.xlu0 %v760, 48
    %v763 = vpop.permute.xlu0 %762
    %765 = vst.msk [vmem:[#allocation4 + $0x10] sm:$0xf] %vm736, %v763
    %s766 = scalar_lea.vmem [#allocation2], 132
    %v767 = vld [vmem:[%s766] ss:$2 sm:$0xf]
    %769 = vrot.lane.b32.xlu0 %v767, 48
    %v770 = vpop.permute.xlu0 %769
    %772 = vst.msk [vmem:[#allocation4 + $0x14] sm:$0xf] %vm736, %v770
    %s773 = scalar_lea.vmem [#allocation2], 152
    %v774 = vld [vmem:[%s773] ss:$2 sm:$0xf]
    %776 = vrot.lane.b32.xlu0 %v774, 48
    %v777 = vpop.permute.xlu0 %776
    %779 = vst.msk [vmem:[#allocation4 + $0x18] sm:$0xf] %vm736, %v777
    %s780 = scalar_lea.vmem [#allocation2], 172
    %v781 = vld [vmem:[%s780] ss:$2 sm:$0xf]
    %783 = vrot.lane.b32.xlu0 %v781, 48
    %v784 = vpop.permute.xlu0 %783
    %786 = vst.msk [vmem:[#allocation4 + $0x1c] sm:$0xf] %vm736, %v784
    %s787 = scalar_lea.vmem [#allocation2], 13
    %v788 = vld [vmem:[%s787] ss:$2 sm:$0xf]
    %790 = vrot.lane.b32.xlu0 %v788, 56
    %v791 = vpop.permute.xlu0 %790
    %vm793 = vcmask 519616
    %794 = vst.msk [vmem:[#allocation4] sm:$0xf] %vm793, %v791
    %s795 = scalar_lea.vmem [#allocation2], 33
    %v796 = vld [vmem:[%s795] ss:$2 sm:$0xf]
    %798 = vrot.lane.b32.xlu0 %v796, 56
    %v799 = vpop.permute.xlu0 %798
    %801 = vst.msk [vmem:[#allocation4 + $0x4] sm:$0xf] %vm793, %v799
    %s802 = scalar_lea.vmem [#allocation2], 53
    %v803 = vld [vmem:[%s802] ss:$2 sm:$0xf]
    %805 = vrot.lane.b32.xlu0 %v803, 56
    %v806 = vpop.permute.xlu0 %805
    %808 = vst.msk [vmem:[#allocation4 + $0x8] sm:$0xf] %vm793, %v806
    %s809 = scalar_lea.vmem [#allocation2], 73
    %v810 = vld [vmem:[%s809] ss:$2 sm:$0xf]
    %812 = vrot.lane.b32.xlu0 %v810, 56
    %v813 = vpop.permute.xlu0 %812
    %815 = vst.msk [vmem:[#allocation4 + $0xc] sm:$0xf] %vm793, %v813
    %s816 = scalar_lea.vmem [#allocation2], 113
    %v817 = vld [vmem:[%s816] ss:$2 sm:$0xf]
    %819 = vrot.lane.b32.xlu0 %v817, 56
    %v820 = vpop.permute.xlu0 %819
    %822 = vst.msk [vmem:[#allocation4 + $0x10] sm:$0xf] %vm793, %v820
    %s823 = scalar_lea.vmem [#allocation2], 133
    %v824 = vld [vmem:[%s823] ss:$2 sm:$0xf]
    %826 = vrot.lane.b32.xlu0 %v824, 56
    %v827 = vpop.permute.xlu0 %826
    %829 = vst.msk [vmem:[#allocation4 + $0x14] sm:$0xf] %vm793, %v827
    %s830 = scalar_lea.vmem [#allocation2], 153
    %v831 = vld [vmem:[%s830] ss:$2 sm:$0xf]
    %833 = vrot.lane.b32.xlu0 %v831, 56
    %v834 = vpop.permute.xlu0 %833
    %836 = vst.msk [vmem:[#allocation4 + $0x18] sm:$0xf] %vm793, %v834
    %s837 = scalar_lea.vmem [#allocation2], 173
    %v838 = vld [vmem:[%s837] ss:$2 sm:$0xf]
    %840 = vrot.lane.b32.xlu0 %v838, 56
    %v841 = vpop.permute.xlu0 %840
    %843 = vst.msk [vmem:[#allocation4 + $0x1c] sm:$0xf] %vm793, %v841
    %v844 = vld [vmem:[%s424] ss:$2 sm:$0xf]
    %846 = vrot.lane.b32.xlu0 %v844, 64
    %v847 = vpop.permute.xlu0 %846
    %vm849 = vcmask 585216
    %850 = vst.msk [vmem:[#allocation4] sm:$0xf] %vm849, %v847
    %v851 = vld [vmem:[%s427] ss:$2 sm:$0xf]
    %853 = vrot.lane.b32.xlu0 %v851, 64
    %v854 = vpop.permute.xlu0 %853
    %856 = vst.msk [vmem:[#allocation4 + $0x4] sm:$0xf] %vm849, %v854
    %v857 = vld [vmem:[%s430] ss:$2 sm:$0xf]
    %859 = vrot.lane.b32.xlu0 %v857, 64
    %v860 = vpop.permute.xlu0 %859
    %862 = vst.msk [vmem:[#allocation4 + $0x8] sm:$0xf] %vm849, %v860
    %s863 = scalar_lea.vmem [#allocation2], 80
    %v864 = vld [vmem:[%s863] ss:$2 sm:$0xf]
    %866 = vrot.lane.b32.xlu0 %v864, 64
    %v867 = vpop.permute.xlu0 %866
    %869 = vst.msk [vmem:[#allocation4 + $0xc] sm:$0xf] %vm849, %v867
    %v870 = vld [vmem:[%s436] ss:$2 sm:$0xf]
    %872 = vrot.lane.b32.xlu0 %v870, 64
    %v873 = vpop.permute.xlu0 %872
    %875 = vst.msk [vmem:[#allocation4 + $0x10] sm:$0xf] %vm849, %v873
    %v876 = vld [vmem:[%s439] ss:$2 sm:$0xf]
    %878 = vrot.lane.b32.xlu0 %v876, 64
    %v879 = vpop.permute.xlu0 %878
    %881 = vst.msk [vmem:[#allocation4 + $0x14] sm:$0xf] %vm849, %v879
    %v882 = vld [vmem:[%s442] ss:$2 sm:$0xf]
    %884 = vrot.lane.b32.xlu0 %v882, 64
    %v885 = vpop.permute.xlu0 %884
    %887 = vst.msk [vmem:[#allocation4 + $0x18] sm:$0xf] %vm849, %v885
    %s888 = scalar_lea.vmem [#allocation2], 180
    %v889 = vld [vmem:[%s888] ss:$2 sm:$0xf]
    %891 = vrot.lane.b32.xlu0 %v889, 64
    %v892 = vpop.permute.xlu0 %891
    %894 = vst.msk [vmem:[#allocation4 + $0x1c] sm:$0xf] %vm849, %v892
    %v895 = vld [vmem:[%s453] ss:$2 sm:$0xf]
    %897 = vrot.lane.b32.xlu0 %v895, 72
    %v898 = vpop.permute.xlu0 %897
    %vm900 = vcmask 650816
    %901 = vst.msk [vmem:[#allocation4] sm:$0xf] %vm900, %v898
    %v902 = vld [vmem:[%s460] ss:$2 sm:$0xf]
    %904 = vrot.lane.b32.xlu0 %v902, 72
    %v905 = vpop.permute.xlu0 %904
    %907 = vst.msk [vmem:[#allocation4 + $0x4] sm:$0xf] %vm900, %v905
    %v908 = vld [vmem:[%s467] ss:$2 sm:$0xf]
    %910 = vrot.lane.b32.xlu0 %v908, 72
    %v911 = vpop.permute.xlu0 %910
    %913 = vst.msk [vmem:[#allocation4 + $0x8] sm:$0xf] %vm900, %v911
    %s914 = scalar_lea.vmem [#allocation2], 81
    %v915 = vld [vmem:[%s914] ss:$2 sm:$0xf]
    %917 = vrot.lane.b32.xlu0 %v915, 72
    %v918 = vpop.permute.xlu0 %917
    %920 = vst.msk [vmem:[#allocation4 + $0xc] sm:$0xf] %vm900, %v918
    %v921 = vld [vmem:[%s481] ss:$2 sm:$0xf]
    %923 = vrot.lane.b32.xlu0 %v921, 72
    %v924 = vpop.permute.xlu0 %923
    %926 = vst.msk [vmem:[#allocation4 + $0x10] sm:$0xf] %vm900, %v924
    %v927 = vld [vmem:[%s488] ss:$2 sm:$0xf]
    %929 = vrot.lane.b32.xlu0 %v927, 72
    %v930 = vpop.permute.xlu0 %929
    %932 = vst.msk [vmem:[#allocation4 + $0x14] sm:$0xf] %vm900, %v930
    %v933 = vld [vmem:[%s495] ss:$2 sm:$0xf]
    %935 = vrot.lane.b32.xlu0 %v933, 72
    %v936 = vpop.permute.xlu0 %935
    %938 = vst.msk [vmem:[#allocation4 + $0x18] sm:$0xf] %vm900, %v936
    %s939 = scalar_lea.vmem [#allocation2], 181
    %v940 = vld [vmem:[%s939] ss:$2 sm:$0xf]
    %942 = vrot.lane.b32.xlu0 %v940, 72
    %v943 = vpop.permute.xlu0 %942
    %945 = vst.msk [vmem:[#allocation4 + $0x1c] sm:$0xf] %vm900, %v943
    %v946 = vld [vmem:[%s510] ss:$2 sm:$0xf]
    %948 = vrot.lane.b32.xlu0 %v946, 80
    %v949 = vpop.permute.xlu0 %948
    %vm951 = vcmask 716416
    %952 = vst.msk [vmem:[#allocation4] sm:$0xf] %vm951, %v949
    %v953 = vld [vmem:[%s517] ss:$2 sm:$0xf]
    %955 = vrot.lane.b32.xlu0 %v953, 80
    %v956 = vpop.permute.xlu0 %955
    %958 = vst.msk [vmem:[#allocation4 + $0x4] sm:$0xf] %vm951, %v956
    %v959 = vld [vmem:[%s524] ss:$2 sm:$0xf]
    %961 = vrot.lane.b32.xlu0 %v959, 80
    %v962 = vpop.permute.xlu0 %961
    %964 = vst.msk [vmem:[#allocation4 + $0x8] sm:$0xf] %vm951, %v962
    %s965 = scalar_lea.vmem [#allocation2], 82
    %v966 = vld [vmem:[%s965] ss:$2 sm:$0xf]
    %968 = vrot.lane.b32.xlu0 %v966, 80
    %v969 = vpop.permute.xlu0 %968
    %971 = vst.msk [vmem:[#allocation4 + $0xc] sm:$0xf] %vm951, %v969
    %v972 = vld [vmem:[%s538] ss:$2 sm:$0xf]
    %974 = vrot.lane.b32.xlu0 %v972, 80
    %v975 = vpop.permute.xlu0 %974
    %977 = vst.msk [vmem:[#allocation4 + $0x10] sm:$0xf] %vm951, %v975
    %v978 = vld [vmem:[%s545] ss:$2 sm:$0xf]
    %980 = vrot.lane.b32.xlu0 %v978, 80
    %v981 = vpop.permute.xlu0 %980
    %983 = vst.msk [vmem:[#allocation4 + $0x14] sm:$0xf] %vm951, %v981
    %v984 = vld [vmem:[%s552] ss:$2 sm:$0xf]
    %986 = vrot.lane.b32.xlu0 %v984, 80
    %v987 = vpop.permute.xlu0 %986
    %989 = vst.msk [vmem:[#allocation4 + $0x18] sm:$0xf] %vm951, %v987
    %s990 = scalar_lea.vmem [#allocation2], 182
    %v991 = vld [vmem:[%s990] ss:$2 sm:$0xf]
    %993 = vrot.lane.b32.xlu0 %v991, 80
    %v994 = vpop.permute.xlu0 %993
    %996 = vst.msk [vmem:[#allocation4 + $0x1c] sm:$0xf] %vm951, %v994
    %v997 = vld [vmem:[%s567] ss:$2 sm:$0xf]
    %999 = vrot.lane.b32.xlu0 %v997, 88
    %v1000 = vpop.permute.xlu0 %999
    %vm1002 = vcmask 782016
    %1003 = vst.msk [vmem:[#allocation4] sm:$0xf] %vm1002, %v1000
    %v1004 = vld [vmem:[%s574] ss:$2 sm:$0xf]
    %1006 = vrot.lane.b32.xlu0 %v1004, 88
    %v1007 = vpop.permute.xlu0 %1006
    %1009 = vst.msk [vmem:[#allocation4 + $0x4] sm:$0xf] %vm1002, %v1007
    %v1010 = vld [vmem:[%s581] ss:$2 sm:$0xf]
    %1012 = vrot.lane.b32.xlu0 %v1010, 88
    %v1013 = vpop.permute.xlu0 %1012
    %1015 = vst.msk [vmem:[#allocation4 + $0x8] sm:$0xf] %vm1002, %v1013
    %s1016 = scalar_lea.vmem [#allocation2], 83
    %v1017 = vld [vmem:[%s1016] ss:$2 sm:$0xf]
    %1019 = vrot.lane.b32.xlu0 %v1017, 88
    %v1020 = vpop.permute.xlu0 %1019
    %1022 = vst.msk [vmem:[#allocation4 + $0xc] sm:$0xf] %vm1002, %v1020
    %v1023 = vld [vmem:[%s595] ss:$2 sm:$0xf]
    %1025 = vrot.lane.b32.xlu0 %v1023, 88
    %v1026 = vpop.permute.xlu0 %1025
    %1028 = vst.msk [vmem:[#allocation4 + $0x10] sm:$0xf] %vm1002, %v1026
    %v1029 = vld [vmem:[%s602] ss:$2 sm:$0xf]
    %1031 = vrot.lane.b32.xlu0 %v1029, 88
    %v1032 = vpop.permute.xlu0 %1031
    %1034 = vst.msk [vmem:[#allocation4 + $0x14] sm:$0xf] %vm1002, %v1032
    %v1035 = vld [vmem:[%s609] ss:$2 sm:$0xf]
    %1037 = vrot.lane.b32.xlu0 %v1035, 88
    %v1038 = vpop.permute.xlu0 %1037
    %1040 = vst.msk [vmem:[#allocation4 + $0x18] sm:$0xf] %vm1002, %v1038
    %s1041 = scalar_lea.vmem [#allocation2], 183
    %v1042 = vld [vmem:[%s1041] ss:$2 sm:$0xf]
    %1044 = vrot.lane.b32.xlu0 %v1042, 88
    %v1045 = vpop.permute.xlu0 %1044
    %1047 = vst.msk [vmem:[#allocation4 + $0x1c] sm:$0xf] %vm1002, %v1045
    %v1048 = vld [vmem:[%s624] ss:$2 sm:$0xf]
    %1050 = vrot.lane.b32.xlu0 %v1048, 96
    %v1051 = vpop.permute.xlu0 %1050
    %vm1053 = vcmask 847616
    %1054 = vst.msk [vmem:[#allocation4] sm:$0xf] %vm1053, %v1051
    %v1055 = vld [vmem:[%s631] ss:$2 sm:$0xf]
    %1057 = vrot.lane.b32.xlu0 %v1055, 96
    %v1058 = vpop.permute.xlu0 %1057
    %1060 = vst.msk [vmem:[#allocation4 + $0x4] sm:$0xf] %vm1053, %v1058
    %v1061 = vld [vmem:[%s638] ss:$2 sm:$0xf]
    %1063 = vrot.lane.b32.xlu0 %v1061, 96
    %v1064 = vpop.permute.xlu0 %1063
    %1066 = vst.msk [vmem:[#allocation4 + $0x8] sm:$0xf] %vm1053, %v1064
    %s1067 = scalar_lea.vmem [#allocation2], 90
    %v1068 = vld [vmem:[%s1067] ss:$2 sm:$0xf]
    %1070 = vrot.lane.b32.xlu0 %v1068, 96
    %v1071 = vpop.permute.xlu0 %1070
    %1073 = vst.msk [vmem:[#allocation4 + $0xc] sm:$0xf] %vm1053, %v1071
    %v1074 = vld [vmem:[%s652] ss:$2 sm:$0xf]
    %1076 = vrot.lane.b32.xlu0 %v1074, 96
    %v1077 = vpop.permute.xlu0 %1076
    %1079 = vst.msk [vmem:[#allocation4 + $0x10] sm:$0xf] %vm1053, %v1077
    %v1080 = vld [vmem:[%s659] ss:$2 sm:$0xf]
    %1082 = vrot.lane.b32.xlu0 %v1080, 96
    %v1083 = vpop.permute.xlu0 %1082
    %1085 = vst.msk [vmem:[#allocation4 + $0x14] sm:$0xf] %vm1053, %v1083
    %v1086 = vld [vmem:[%s666] ss:$2 sm:$0xf]
    %1088 = vrot.lane.b32.xlu0 %v1086, 96
    %v1089 = vpop.permute.xlu0 %1088
    %1091 = vst.msk [vmem:[#allocation4 + $0x18] sm:$0xf] %vm1053, %v1089
    %s1092 = scalar_lea.vmem [#allocation2], 190
    %v1093 = vld [vmem:[%s1092] ss:$2 sm:$0xf]
    %1095 = vrot.lane.b32.xlu0 %v1093, 96
    %v1096 = vpop.permute.xlu0 %1095
    %1098 = vst.msk [vmem:[#allocation4 + $0x1c] sm:$0xf] %vm1053, %v1096
    %v1099 = vld [vmem:[%s681] ss:$2 sm:$0xf]
    %1101 = vrot.lane.b32.xlu0 %v1099, 104
    %v1102 = vpop.permute.xlu0 %1101
    %vm1104 = vcmask 913216
    %1105 = vst.msk [vmem:[#allocation4] sm:$0xf] %vm1104, %v1102
    %v1106 = vld [vmem:[%s688] ss:$2 sm:$0xf]
    %1108 = vrot.lane.b32.xlu0 %v1106, 104
    %v1109 = vpop.permute.xlu0 %1108
    %1111 = vst.msk [vmem:[#allocation4 + $0x4] sm:$0xf] %vm1104, %v1109
    %v1112 = vld [vmem:[%s695] ss:$2 sm:$0xf]
    %1114 = vrot.lane.b32.xlu0 %v1112, 104
    %v1115 = vpop.permute.xlu0 %1114
    %1117 = vst.msk [vmem:[#allocation4 + $0x8] sm:$0xf] %vm1104, %v1115
    %s1118 = scalar_lea.vmem [#allocation2], 91
    %v1119 = vld [vmem:[%s1118] ss:$2 sm:$0xf]
    %1121 = vrot.lane.b32.xlu0 %v1119, 104
    %v1122 = vpop.permute.xlu0 %1121
    %1124 = vst.msk [vmem:[#allocation4 + $0xc] sm:$0xf] %vm1104, %v1122
    %v1125 = vld [vmem:[%s709] ss:$2 sm:$0xf]
    %1127 = vrot.lane.b32.xlu0 %v1125, 104
    %v1128 = vpop.permute.xlu0 %1127
    %1130 = vst.msk [vmem:[#allocation4 + $0x10] sm:$0xf] %vm1104, %v1128
    %v1131 = vld [vmem:[%s716] ss:$2 sm:$0xf]
    %1133 = vrot.lane.b32.xlu0 %v1131, 104
    %v1134 = vpop.permute.xlu0 %1133
    %1136 = vst.msk [vmem:[#allocation4 + $0x14] sm:$0xf] %vm1104, %v1134
    %v1137 = vld [vmem:[%s723] ss:$2 sm:$0xf]
    %1139 = vrot.lane.b32.xlu0 %v1137, 104
    %v1140 = vpop.permute.xlu0 %1139
    %1142 = vst.msk [vmem:[#allocation4 + $0x18] sm:$0xf] %vm1104, %v1140
    %s1143 = scalar_lea.vmem [#allocation2], 191
    %v1144 = vld [vmem:[%s1143] ss:$2 sm:$0xf]
    %1146 = vrot.lane.b32.xlu0 %v1144, 104
    %v1147 = vpop.permute.xlu0 %1146
    %1149 = vst.msk [vmem:[#allocation4 + $0x1c] sm:$0xf] %vm1104, %v1147
    %v1150 = vld [vmem:[%s738] ss:$2 sm:$0xf]
    %1152 = vrot.lane.b32.xlu0 %v1150, 112
    %v1153 = vpop.permute.xlu0 %1152
    %vm1155 = vcmask 978816
    %1156 = vst.msk [vmem:[#allocation4] sm:$0xf] %vm1155, %v1153
    %v1157 = vld [vmem:[%s745] ss:$2 sm:$0xf]
    %1159 = vrot.lane.b32.xlu0 %v1157, 112
    %v1160 = vpop.permute.xlu0 %1159
    %1162 = vst.msk [vmem:[#allocation4 + $0x4] sm:$0xf] %vm1155, %v1160
    %v1163 = vld [vmem:[%s752] ss:$2 sm:$0xf]
    %1165 = vrot.lane.b32.xlu0 %v1163, 112
    %v1166 = vpop.permute.xlu0 %1165
    %1168 = vst.msk [vmem:[#allocation4 + $0x8] sm:$0xf] %vm1155, %v1166
    %s1169 = scalar_lea.vmem [#allocation2], 92
    %v1170 = vld [vmem:[%s1169] ss:$2 sm:$0xf]
    %1172 = vrot.lane.b32.xlu0 %v1170, 112
    %v1173 = vpop.permute.xlu0 %1172
    %1175 = vst.msk [vmem:[#allocation4 + $0xc] sm:$0xf] %vm1155, %v1173
    %v1176 = vld [vmem:[%s766] ss:$2 sm:$0xf]
    %1178 = vrot.lane.b32.xlu0 %v1176, 112
    %v1179 = vpop.permute.xlu0 %1178
    %1181 = vst.msk [vmem:[#allocation4 + $0x10] sm:$0xf] %vm1155, %v1179
    %v1182 = vld [vmem:[%s773] ss:$2 sm:$0xf]
    %1184 = vrot.lane.b32.xlu0 %v1182, 112
    %v1185 = vpop.permute.xlu0 %1184
    %1187 = vst.msk [vmem:[#allocation4 + $0x14] sm:$0xf] %vm1155, %v1185
    %v1188 = vld [vmem:[%s780] ss:$2 sm:$0xf]
    %1190 = vrot.lane.b32.xlu0 %v1188, 112
    %v1191 = vpop.permute.xlu0 %1190
    %1193 = vst.msk [vmem:[#allocation4 + $0x18] sm:$0xf] %vm1155, %v1191
    %s1194 = scalar_lea.vmem [#allocation2], 192
    %v1195 = vld [vmem:[%s1194] ss:$2 sm:$0xf]
    %1197 = vrot.lane.b32.xlu0 %v1195, 112
    %v1198 = vpop.permute.xlu0 %1197
    %1200 = vst.msk [vmem:[#allocation4 + $0x1c] sm:$0xf] %vm1155, %v1198
    %v1201 = vld [vmem:[%s795] ss:$2 sm:$0xf]
    %1203 = vrot.lane.b32.xlu0 %v1201, 120
    %v1204 = vpop.permute.xlu0 %1203
    %vm1206 = vcmask 1044416
    %1207 = vst.msk [vmem:[#allocation4] sm:$0xf] %vm1206, %v1204
    %v1208 = vld [vmem:[%s802] ss:$2 sm:$0xf]
    %1210 = vrot.lane.b32.xlu0 %v1208, 120
    %v1211 = vpop.permute.xlu0 %1210
    %1213 = vst.msk [vmem:[#allocation4 + $0x4] sm:$0xf] %vm1206, %v1211
    %v1214 = vld [vmem:[%s809] ss:$2 sm:$0xf]
    %1216 = vrot.lane.b32.xlu0 %v1214, 120
    %v1217 = vpop.permute.xlu0 %1216
    %1219 = vst.msk [vmem:[#allocation4 + $0x8] sm:$0xf] %vm1206, %v1217
    %s1220 = scalar_lea.vmem [#allocation2], 93
    %v1221 = vld [vmem:[%s1220] ss:$2 sm:$0xf]
    %1223 = vrot.lane.b32.xlu0 %v1221, 120
    %v1224 = vpop.permute.xlu0 %1223
    %1226 = vst.msk [vmem:[#allocation4 + $0xc] sm:$0xf] %vm1206, %v1224
    %v1227 = vld [vmem:[%s823] ss:$2 sm:$0xf]
    %1229 = vrot.lane.b32.xlu0 %v1227, 120
    %v1230 = vpop.permute.xlu0 %1229
    %1232 = vst.msk [vmem:[#allocation4 + $0x10] sm:$0xf] %vm1206, %v1230
    %v1233 = vld [vmem:[%s830] ss:$2 sm:$0xf]
    %1235 = vrot.lane.b32.xlu0 %v1233, 120
    %v1236 = vpop.permute.xlu0 %1235
    %1238 = vst.msk [vmem:[#allocation4 + $0x14] sm:$0xf] %vm1206, %v1236
    %v1239 = vld [vmem:[%s837] ss:$2 sm:$0xf]
    %1241 = vrot.lane.b32.xlu0 %v1239, 120
    %v1242 = vpop.permute.xlu0 %1241
    %1244 = vst.msk [vmem:[#allocation4 + $0x18] sm:$0xf] %vm1206, %v1242
    %s1245 = scalar_lea.vmem [#allocation2], 193
    %v1246 = vld [vmem:[%s1245] ss:$2 sm:$0xf]
    %1248 = vrot.lane.b32.xlu0 %v1246, 120
    %v1249 = vpop.permute.xlu0 %1248
    %1251 = vst.msk [vmem:[#allocation4 + $0x1c] sm:$0xf] %vm1206, %v1249
    %v1252 = vld [vmem:[#allocation4] sm:$0xff]
    %v1253 = vld [vmem:[#allocation4 + $0x8] sm:$0xff]
    %v1254 = vld [vmem:[#allocation4 + $0x10] sm:$0xff]
    %v1255 = vld [vmem:[#allocation4 + $0x18] sm:$0xff]
    %v1256 = vpack.c.bf16 %v1253, %v1252
    %v1257 = vpack.c.bf16 %v1255, %v1254
    %v1258 = vld [vmem:[%s2] sm:$0xf]
    %v1259 = vld [vmem:[%s2 + $0x4] sm:$0xf]
    %v1260 = vld [vmem:[%s2 + $0x8] sm:$0xf]
    %v1261 = vld [vmem:[%s2 + $0xc] sm:$0xf]
    %v1262 = vld [vmem:[%s2 + $0x10] sm:$0xf]
    %v1263 = vld [vmem:[%s2 + $0x14] sm:$0xf]
    %v1264 = vld [vmem:[%s2 + $0x18] sm:$0xf]
    %v1265 = vld [vmem:[%s2 + $0x1c] sm:$0xf]
    %v1266 = vld [vmem:[%s2 + $0x20] sm:$0xf]
    %v1267 = vld [vmem:[%s2 + $0x24] sm:$0xf]
    %v1268 = vld [vmem:[%s2 + $0x28] sm:$0xf]
    %v1269 = vld [vmem:[%s2 + $0x2c] sm:$0xf]
    %v1270 = vld [vmem:[%s2 + $0x30] sm:$0xf]
    %v1271 = vld [vmem:[%s2 + $0x34] sm:$0xf]
    %v1272 = vld [vmem:[%s2 + $0x38] sm:$0xf]
    %v1273 = vld [vmem:[%s2 + $0x3c] sm:$0xf]
    %v1290 = vunpack.c.l.b16 %v1258
    %v1291 = vunpack.c.l.b16 %v1259
    %v1292 = vunpack.c.l.b16 %v1260
    %v1293 = vunpack.c.l.b16 %v1261
    %v1294 = vunpack.c.l.b16 %v1262
    %v1295 = vunpack.c.l.b16 %v1263
    %v1296 = vunpack.c.l.b16 %v1264
    %v1297 = vunpack.c.l.b16 %v1265
    %v1298 = vunpack.c.l.b16 %v1266
    %v1299 = vunpack.c.l.b16 %v1267
    %v1300 = vunpack.c.l.b16 %v1268
    %v1301 = vunpack.c.l.b16 %v1269
    %v1302 = vunpack.c.l.b16 %v1270
    %v1303 = vunpack.c.l.b16 %v1271
    %v1304 = vunpack.c.l.b16 %v1272
    %v1305 = vunpack.c.l.b16 %v1273
    %v1306 = vpack.c.b16 %v1291, %v1290
    %v1307 = vpack.c.b16 %v1293, %v1292
    %v1308 = vpack.c.b16 %v1295, %v1294
    %v1309 = vpack.c.b16 %v1297, %v1296
    %v1310 = vpack.c.b16 %v1299, %v1298
    %v1311 = vpack.c.b16 %v1301, %v1300
    %v1312 = vpack.c.b16 %v1303, %v1302
    %v1313 = vpack.c.b16 %v1305, %v1304
    %1322 = vmatprep.subr.bf16.mxu0 0
    %1323 = vmatpush1.bf16.msra.mxu0 %v1306
    %1324 = vmatprep.subr.bf16.mxu0 0
    %1325 = vmatpush1.bf16.msra.mxu0 %v1307
    %1326 = vmatprep.subr.bf16.mxu0 0
    %1327 = vmatpush1.bf16.msra.mxu0 %v1308
    %1328 = vmatprep.subr.bf16.mxu0 0
    %1329 = vmatpush1.bf16.msra.mxu0 %v1309
    %1330 = vmatprep.subr.bf16.mxu0 0
    %1331 = vmatpush1.bf16.msra.mxu0 %v1310
    %1332 = vmatprep.subr.bf16.mxu0 0
    %1333 = vmatpush1.bf16.msra.mxu0 %v1311
    %1334 = vmatprep.subr.bf16.mxu0 0
    %1335 = vmatpush1.bf16.msra.mxu0 %v1312
    %1336 = vmatprep.subr.bf16.mxu0 0
    %1337 = vmatpush1.bf16.msra.mxu0 %v1313
    %1338 = vmatprep.subr.bf16.mxu0 0
    %1339 = vmatpush1.bf16.msra.mxu0 0
    %1340 = vmatprep.subr.bf16.mxu0 0
    %1341 = vmatpush1.bf16.msra.mxu0 0
    %1342 = vmatprep.subr.bf16.mxu0 0
    %1343 = vmatpush1.bf16.msra.mxu0 0
    %1344 = vmatprep.subr.bf16.mxu0 0
    %1345 = vmatpush1.bf16.msra.mxu0 0
    %1346 = vmatprep.subr.bf16.mxu0 0
    %1347 = vmatpush1.bf16.msra.mxu0 0
    %1348 = vmatprep.subr.bf16.mxu0 0
    %1349 = vmatpush1.bf16.msra.mxu0 0
    %1350 = vmatprep.subr.bf16.mxu0 0
    %1351 = vmatpush1.bf16.msra.mxu0 0
    %1352 = vmatprep.subr.bf16.mxu0 0
    %1353 = vmatpush1.bf16.msra.mxu0 0
    %1354 = vmatprep.mubr.bf16.mxu0 0
    %1355 = vmatmul.mubr.bf16.gmra.mrb[0].mxu0 %v1256
    %v1356 = vpop.f32.mrb[0].mxu0
    %v1357 = vadd.f32 0.0, %v1356
    %v1358 = vpop.f32.mrb[0].mxu0
    %v1359 = vpop.f32.mrb[0].mxu0
    %v1360 = vadd.f32 0.0, %v1359
    %v1361 = vpop.f32.mrb[0].mxu0
    %1362 = vmatprep.mubr.bf16.mxu0 0
    %1363 = vmatmul.mubr.bf16.gmra.mrb[0].mxu0 %v1257
    %v1364 = vpop.f32.mrb[0].mxu0
    %v1365 = vadd.f32 0.0, %v1364
    %v1366 = vpop.f32.mrb[0].mxu0
    %v1367 = vpop.f32.mrb[0].mxu0
    %v1368 = vadd.f32 0.0, %v1367
    %v1369 = vpop.f32.mrb[0].mxu0
    %1370 = vdwg.mxu0
    %vm1371 = vcmask 130048
    %v1372 = vsel %vm1371, %v1357, 0.0
    %v1373 = vsel %vm1371, %v1360, 0.0
    %v1374 = vadd.f32 %v1372, %v1373
    %v1375 = vsel %vm1371, %v1365, 0.0
    %v1376 = vadd.f32 %v1374, %v1375
    %v1377 = vsel %vm1371, %v1368, 0.0
    %v1378 = vadd.f32 %v1376, %v1377
    %v1379 = vrot.slane %v1378, 4
    %v1380 = vadd.f32 %v1378, %v1379
    %v1381 = vrot.slane %v1380, 2
    %v1382 = vadd.f32 %v1380, %v1381
    %v1383 = vrot.slane %v1382, 1
    %v1384 = vadd.f32 %v1382, %v1383
    %v1385 = vrcp.pop 32.0
    %v1386 = vmul.f32 %v1384, %v1385
    %v1387 = vsub.f32 %v1357, %v1386
    %v1388 = vsub.f32 %v1360, %v1386
    %v1389 = vsub.f32 %v1365, %v1386
    %v1390 = vsub.f32 %v1368, %v1386
    %v1391 = vmul.f32 %v1387, %v1387
    %v1392 = vmul.f32 %v1388, %v1388
    %v1393 = vmul.f32 %v1389, %v1389
    %v1394 = vmul.f32 %v1390, %v1390
    %v1395 = vsel %vm1371, %v1391, 0.0
    %v1396 = vsel %vm1371, %v1392, 0.0
    %v1397 = vadd.f32 %v1395, %v1396
    %v1398 = vsel %vm1371, %v1393, 0.0
    %v1399 = vadd.f32 %v1397, %v1398
    %v1400 = vsel %vm1371, %v1394, 0.0
    %v1401 = vadd.f32 %v1399, %v1400
    %v1402 = vrot.slane %v1401, 4
    %v1403 = vadd.f32 %v1401, %v1402
    %v1404 = vrot.slane %v1403, 2
    %v1405 = vadd.f32 %v1403, %v1404
    %v1406 = vrot.slane %v1405, 1
    %v1407 = vadd.f32 %v1405, %v1406
    %v1408 = vmul.f32 %v1407, %v1385
    %v1409 = vadd.f32 %v1408, 1e-05
    %v1410 = vrsqrt.pop %v1409
    %v1411 = vmul.f32 %v1387, %v1410
    %v1412 = vmul.f32 %v1388, %v1410
    %v1413 = vmul.f32 %v1389, %v1410
    %v1414 = vmul.f32 %v1390, %v1410
    %v1415 = vld [vmem:[%s4] sm:$0x1]
    %v1416 = vlaneseq
    %v1417 = vshrl.u32 %v1416, 7
    %v1418 = vsub.s32 0, %v1417
    %v1419 = vrot.slane %v1415, %v1418
    %v1420 = vmul.f32 %v1411, %v1419
    %v1421 = vmul.f32 %v1412, %v1419
    %v1422 = vmul.f32 %v1413, %v1419
    %v1423 = vmul.f32 %v1414, %v1419
    %v1424 = vld [vmem:[%s4 + $0x1] sm:$0x1]
    %v1425 = vlaneseq
    %v1426 = vshrl.u32 %v1425, 7
    %v1427 = vsub.s32 0, %v1426
    %v1428 = vrot.slane %v1424, %v1427
    %v1429 = vadd.f32 %v1420, %v1428
    %v1430 = vadd.f32 %v1421, %v1428
    %v1431 = vadd.f32 %v1422, %v1428
    %v1432 = vadd.f32 %v1423, %v1428
    %vm1433 = vcmp.ge.f32.partialorder %v1429, 0.0
    %vm1434 = vcmp.ge.f32.partialorder %v1430, 0.0
    %vm1435 = vcmp.ge.f32.partialorder %v1431, 0.0
    %vm1436 = vcmp.ge.f32.partialorder %v1432, 0.0
    %v1437 = vmul.f32 %v1429, 0.1
    %v1438 = vmul.f32 %v1430, 0.1
    %v1439 = vmul.f32 %v1431, 0.1
    %v1440 = vmul.f32 %v1432, 0.1
    %v1441 = vsel %vm1433, %v1429, %v1437
    %v1442 = vsel %vm1434, %v1430, %v1438
    %v1443 = vsel %vm1435, %v1431, %v1439
    %v1444 = vsel %vm1436, %v1432, %v1440
    %1445 = vst.msk [vmem:[#allocation3] sm:$0xff] %vm1371, 0.0
    %1446 = vst.msk [vmem:[#allocation3 + $0x8] sm:$0xff] %vm1371, 0.0
    %1447 = vst.msk [vmem:[#allocation3 + $0x10] sm:$0xff] %vm1371, 0.0
    %1448 = vst.msk [vmem:[#allocation3 + $0x18] sm:$0xff] %vm1371, 0.0
    %1449 = vst.msk [vmem:[#allocation3 + $0x20] sm:$0xff] %vm1371, 0.0
    %1450 = vst.msk [vmem:[#allocation3 + $0x28] sm:$0xff] %vm1371, 0.0
    %1451 = vst.msk [vmem:[#allocation3 + $0x30] sm:$0xff] %vm1371, 0.0
    %1452 = vst.msk [vmem:[#allocation3 + $0x38] sm:$0xff] %vm1371, 0.0
    %1453 = vst.msk [vmem:[#allocation3 + $0x40] sm:$0xff] %vm1371, 0.0
    %vm1454 = vcmask 125952
    %1455 = vst.msk [vmem:[#allocation3 + $0x7] sm:$0xf] %vm1454, %v1441
    %vm1456 = vcmask 130052
    %1457 = vst.msk [vmem:[#allocation3 + $0x9] sm:$0xf0] %vm1456, %v1441
    %1458 = vst.msk [vmem:[#allocation3 + $0x13] sm:$0xf] %vm1454, %v1442
    %1459 = vst.msk [vmem:[#allocation3 + $0x15] sm:$0xf0] %vm1456, %v1442
    %1460 = vst.msk [vmem:[#allocation3 + $0x2b] sm:$0xf] %vm1454, %v1443
    %1461 = vst.msk [vmem:[#allocation3 + $0x2d] sm:$0xf0] %vm1456, %v1443
    %1462 = vst.msk [vmem:[#allocation3 + $0x37] sm:$0xf] %vm1454, %v1444
    %1463 = vst.msk [vmem:[#allocation3 + $0x39] sm:$0xf0] %vm1456, %v1444
    %v1464 = vld [vmem:[#allocation3] ss:$2 sm:$0x3]
    %vm1465 = vcmask 123904
    %1466 = vst.msk [vmem:[#allocation5] sm:$0x3] %vm1465, %v1464
    %s1467 = scalar_lea.vmem [#allocation3], 12
    %v1468 = vld [vmem:[%s1467] ss:$2 sm:$0x3]
    %v1470 = vrot.slane %v1468, 6
    %vm1472 = vcmask 125954
    %1473 = vst.msk [vmem:[#allocation5] sm:$0xc] %vm1472, %v1470
    %s1474 = scalar_lea.vmem [#allocation3], 36
    %v1475 = vld [vmem:[%s1474] ss:$2 sm:$0x3]
    %v1477 = vrot.slane %v1475, 4
    %vm1479 = vcmask 128004
    %1480 = vst.msk [vmem:[#allocation5] sm:$0x30] %vm1479, %v1477
    %s1481 = scalar_lea.vmem [#allocation3], 48
    %v1482 = vld [vmem:[%s1481] ss:$2 sm:$0x3]
    %v1484 = vrot.slane %v1482, 2
    %vm1486 = vcmask 130054
    %1487 = vst.msk [vmem:[#allocation5] sm:$0xc0] %vm1486, %v1484
    %s1488 = scalar_lea.vmem [#allocation3], 1
    %v1489 = vld [vmem:[%s1488] ss:$2 sm:$0x3]
    %1491 = vrot.lane.b32.xlu0 %v1489, 16
    %v1492 = vpop.permute.xlu0 %1491
    %vm1494 = vcmask 255104
    %1495 = vst.msk [vmem:[#allocation5] sm:$0x3] %vm1494, %v1492
    %s1496 = scalar_lea.vmem [#allocation3], 13
    %v1497 = vld [vmem:[%s1496] ss:$2 sm:$0x3]
    %v1499 = vrot.slane %v1497, 6
    %1500 = vrot.lane.b32.xlu0 %v1499, 16
    %v1501 = vpop.permute.xlu0 %1500
    %vm1503 = vcmask 257154
    %1504 = vst.msk [vmem:[#allocation5] sm:$0xc] %vm1503, %v1501
    %s1505 = scalar_lea.vmem [#allocation3], 37
    %v1506 = vld [vmem:[%s1505] ss:$2 sm:$0x3]
    %v1508 = vrot.slane %v1506, 4
    %1509 = vrot.lane.b32.xlu0 %v1508, 16
    %v1510 = vpop.permute.xlu0 %1509
    %vm1512 = vcmask 259204
    %1513 = vst.msk [vmem:[#allocation5] sm:$0x30] %vm1512, %v1510
    %s1514 = scalar_lea.vmem [#allocation3], 49
    %v1515 = vld [vmem:[%s1514] ss:$2 sm:$0x3]
    %v1517 = vrot.slane %v1515, 2
    %1518 = vrot.lane.b32.xlu0 %v1517, 16
    %v1519 = vpop.permute.xlu0 %1518
    %vm1521 = vcmask 261254
    %1522 = vst.msk [vmem:[#allocation5] sm:$0xc0] %vm1521, %v1519
    %s1523 = scalar_lea.vmem [#allocation3], 2
    %v1524 = vld [vmem:[%s1523] ss:$2 sm:$0x3]
    %1526 = vrot.lane.b32.xlu0 %v1524, 32
    %v1527 = vpop.permute.xlu0 %1526
    %vm1529 = vcmask 386304
    %1530 = vst.msk [vmem:[#allocation5] sm:$0x3] %vm1529, %v1527
    %s1531 = scalar_lea.vmem [#allocation3], 14
    %v1532 = vld [vmem:[%s1531] ss:$2 sm:$0x3]
    %v1534 = vrot.slane %v1532, 6
    %1535 = vrot.lane.b32.xlu0 %v1534, 32
    %v1536 = vpop.permute.xlu0 %1535
    %vm1538 = vcmask 388354
    %1539 = vst.msk [vmem:[#allocation5] sm:$0xc] %vm1538, %v1536
    %s1540 = scalar_lea.vmem [#allocation3], 38
    %v1541 = vld [vmem:[%s1540] ss:$2 sm:$0x3]
    %v1543 = vrot.slane %v1541, 4
    %1544 = vrot.lane.b32.xlu0 %v1543, 32
    %v1545 = vpop.permute.xlu0 %1544
    %vm1547 = vcmask 390404
    %1548 = vst.msk [vmem:[#allocation5] sm:$0x30] %vm1547, %v1545
    %s1549 = scalar_lea.vmem [#allocation3], 50
    %v1550 = vld [vmem:[%s1549] ss:$2 sm:$0x3]
    %v1552 = vrot.slane %v1550, 2
    %1553 = vrot.lane.b32.xlu0 %v1552, 32
    %v1554 = vpop.permute.xlu0 %1553
    %vm1556 = vcmask 392454
    %1557 = vst.msk [vmem:[#allocation5] sm:$0xc0] %vm1556, %v1554
    %s1558 = scalar_lea.vmem [#allocation3], 3
    %v1559 = vld [vmem:[%s1558] ss:$2 sm:$0x3]
    %1561 = vrot.lane.b32.xlu0 %v1559, 48
    %v1562 = vpop.permute.xlu0 %1561
    %vm1564 = vcmask 517504
    %1565 = vst.msk [vmem:[#allocation5] sm:$0x3] %vm1564, %v1562
    %s1566 = scalar_lea.vmem [#allocation3], 15
    %v1567 = vld [vmem:[%s1566] ss:$2 sm:$0x3]
    %v1569 = vrot.slane %v1567, 6
    %1570 = vrot.lane.b32.xlu0 %v1569, 48
    %v1571 = vpop.permute.xlu0 %1570
    %vm1573 = vcmask 519554
    %1574 = vst.msk [vmem:[#allocation5] sm:$0xc] %vm1573, %v1571
    %s1575 = scalar_lea.vmem [#allocation3], 39
    %v1576 = vld [vmem:[%s1575] ss:$2 sm:$0x3]
    %v1578 = vrot.slane %v1576, 4
    %1579 = vrot.lane.b32.xlu0 %v1578, 48
    %v1580 = vpop.permute.xlu0 %1579
    %vm1582 = vcmask 521604
    %1583 = vst.msk [vmem:[#allocation5] sm:$0x30] %vm1582, %v1580
    %s1584 = scalar_lea.vmem [#allocation3], 51
    %v1585 = vld [vmem:[%s1584] ss:$2 sm:$0x3]
    %v1587 = vrot.slane %v1585, 2
    %1588 = vrot.lane.b32.xlu0 %v1587, 48
    %v1589 = vpop.permute.xlu0 %1588
    %vm1591 = vcmask 523654
    %1592 = vst.msk [vmem:[#allocation5] sm:$0xc0] %vm1591, %v1589
    %s1593 = scalar_lea.vmem [#allocation3], 6
    %v1594 = vld [vmem:[%s1593] ss:$2 sm:$0x3]
    %1596 = vrot.lane.b32.xlu0 %v1594, 64
    %v1597 = vpop.permute.xlu0 %1596
    %vm1599 = vcmask 648704
    %1600 = vst.msk [vmem:[#allocation5] sm:$0x3] %vm1599, %v1597
    %s1601 = scalar_lea.vmem [#allocation3], 18
    %v1602 = vld [vmem:[%s1601] ss:$2 sm:$0x3]
    %v1604 = vrot.slane %v1602, 6
    %1605 = vrot.lane.b32.xlu0 %v1604, 64
    %v1606 = vpop.permute.xlu0 %1605
    %vm1608 = vcmask 650754
    %1609 = vst.msk [vmem:[#allocation5] sm:$0xc] %vm1608, %v1606
    %s1610 = scalar_lea.vmem [#allocation3], 42
    %v1611 = vld [vmem:[%s1610] ss:$2 sm:$0x3]
    %v1613 = vrot.slane %v1611, 4
    %1614 = vrot.lane.b32.xlu0 %v1613, 64
    %v1615 = vpop.permute.xlu0 %1614
    %vm1617 = vcmask 652804
    %1618 = vst.msk [vmem:[#allocation5] sm:$0x30] %vm1617, %v1615
    %s1619 = scalar_lea.vmem [#allocation3], 54
    %v1620 = vld [vmem:[%s1619] ss:$2 sm:$0x3]
    %v1622 = vrot.slane %v1620, 2
    %1623 = vrot.lane.b32.xlu0 %v1622, 64
    %v1624 = vpop.permute.xlu0 %1623
    %vm1626 = vcmask 654854
    %1627 = vst.msk [vmem:[#allocation5] sm:$0xc0] %vm1626, %v1624
    %s1628 = scalar_lea.vmem [#allocation3], 7
    %v1629 = vld [vmem:[%s1628] ss:$2 sm:$0x3]
    %1631 = vrot.lane.b32.xlu0 %v1629, 80
    %v1632 = vpop.permute.xlu0 %1631
    %vm1634 = vcmask 779904
    %1635 = vst.msk [vmem:[#allocation5] sm:$0x3] %vm1634, %v1632
    %s1636 = scalar_lea.vmem [#allocation3], 19
    %v1637 = vld [vmem:[%s1636] ss:$2 sm:$0x3]
    %v1639 = vrot.slane %v1637, 6
    %1640 = vrot.lane.b32.xlu0 %v1639, 80
    %v1641 = vpop.permute.xlu0 %1640
    %vm1643 = vcmask 781954
    %1644 = vst.msk [vmem:[#allocation5] sm:$0xc] %vm1643, %v1641
    %s1645 = scalar_lea.vmem [#allocation3], 43
    %v1646 = vld [vmem:[%s1645] ss:$2 sm:$0x3]
    %v1648 = vrot.slane %v1646, 4
    %1649 = vrot.lane.b32.xlu0 %v1648, 80
    %v1650 = vpop.permute.xlu0 %1649
    %vm1652 = vcmask 784004
    %1653 = vst.msk [vmem:[#allocation5] sm:$0x30] %vm1652, %v1650
    %s1654 = scalar_lea.vmem [#allocation3], 55
    %v1655 = vld [vmem:[%s1654] ss:$2 sm:$0x3]
    %v1657 = vrot.slane %v1655, 2
    %1658 = vrot.lane.b32.xlu0 %v1657, 80
    %v1659 = vpop.permute.xlu0 %1658
    %vm1661 = vcmask 786054
    %1662 = vst.msk [vmem:[#allocation5] sm:$0xc0] %vm1661, %v1659
    %s1663 = scalar_lea.vmem [#allocation3], 8
    %v1664 = vld [vmem:[%s1663] ss:$2 sm:$0x3]
    %1666 = vrot.lane.b32.xlu0 %v1664, 96
    %v1667 = vpop.permute.xlu0 %1666
    %vm1669 = vcmask 911104
    %1670 = vst.msk [vmem:[#allocation5] sm:$0x3] %vm1669, %v1667
    %s1671 = scalar_lea.vmem [#allocation3], 20
    %v1672 = vld [vmem:[%s1671] ss:$2 sm:$0x3]
    %v1674 = vrot.slane %v1672, 6
    %1675 = vrot.lane.b32.xlu0 %v1674, 96
    %v1676 = vpop.permute.xlu0 %1675
    %vm1678 = vcmask 913154
    %1679 = vst.msk [vmem:[#allocation5] sm:$0xc] %vm1678, %v1676
    %s1680 = scalar_lea.vmem [#allocation3], 44
    %v1681 = vld [vmem:[%s1680] ss:$2 sm:$0x3]
    %v1683 = vrot.slane %v1681, 4
    %1684 = vrot.lane.b32.xlu0 %v1683, 96
    %v1685 = vpop.permute.xlu0 %1684
    %vm1687 = vcmask 915204
    %1688 = vst.msk [vmem:[#allocation5] sm:$0x30] %vm1687, %v1685
    %s1689 = scalar_lea.vmem [#allocation3], 56
    %v1690 = vld [vmem:[%s1689] ss:$2 sm:$0x3]
    %v1692 = vrot.slane %v1690, 2
    %1693 = vrot.lane.b32.xlu0 %v1692, 96
    %v1694 = vpop.permute.xlu0 %1693
    %vm1696 = vcmask 917254
    %1697 = vst.msk [vmem:[#allocation5] sm:$0xc0] %vm1696, %v1694
    %s1698 = scalar_lea.vmem [#allocation3], 9
    %v1699 = vld [vmem:[%s1698] ss:$2 sm:$0x3]
    %1701 = vrot.lane.b32.xlu0 %v1699, 112
    %v1702 = vpop.permute.xlu0 %1701
    %vm1704 = vcmask 1042304
    %1705 = vst.msk [vmem:[#allocation5] sm:$0x3] %vm1704, %v1702
    %s1706 = scalar_lea.vmem [#allocation3], 21
    %v1707 = vld [vmem:[%s1706] ss:$2 sm:$0x3]
    %v1709 = vrot.slane %v1707, 6
    %1710 = vrot.lane.b32.xlu0 %v1709, 112
    %v1711 = vpop.permute.xlu0 %1710
    %vm1713 = vcmask 1044354
    %1714 = vst.msk [vmem:[#allocation5] sm:$0xc] %vm1713, %v1711
    %s1715 = scalar_lea.vmem [#allocation3], 45
    %v1716 = vld [vmem:[%s1715] ss:$2 sm:$0x3]
    %v1718 = vrot.slane %v1716, 4
    %1719 = vrot.lane.b32.xlu0 %v1718, 112
    %v1720 = vpop.permute.xlu0 %1719
    %vm1722 = vcmask 1046404
    %1723 = vst.msk [vmem:[#allocation5] sm:$0x30] %vm1722, %v1720
    %s1724 = scalar_lea.vmem [#allocation3], 57
    %v1725 = vld [vmem:[%s1724] ss:$2 sm:$0x3]
    %v1727 = vrot.slane %v1725, 2
    %1728 = vrot.lane.b32.xlu0 %v1727, 112
    %v1729 = vpop.permute.xlu0 %1728
    %vm1731 = vcmask 1048454
    %1732 = vst.msk [vmem:[#allocation5] sm:$0xc0] %vm1731, %v1729
    %v1733 = vld [vmem:[%s1467] ss:$2 sm:$0x3]
    %1734 = vst.msk [vmem:[#allocation5 + $0x8] sm:$0x3] %vm1465, %v1733
    %s1735 = scalar_lea.vmem [#allocation3], 24
    %v1736 = vld [vmem:[%s1735] ss:$2 sm:$0x3]
    %v1738 = vrot.slane %v1736, 6
    %1740 = vst.msk [vmem:[#allocation5 + $0x8] sm:$0xc] %vm1472, %v1738
    %v1741 = vld [vmem:[%s1481] ss:$2 sm:$0x3]
    %v1743 = vrot.slane %v1741, 4
    %1745 = vst.msk [vmem:[#allocation5 + $0x8] sm:$0x30] %vm1479, %v1743
    %s1746 = scalar_lea.vmem [#allocation3], 60
    %v1747 = vld [vmem:[%s1746] ss:$2 sm:$0x3]
    %v1749 = vrot.slane %v1747, 2
    %1751 = vst.msk [vmem:[#allocation5 + $0x8] sm:$0xc0] %vm1486, %v1749
    %v1752 = vld [vmem:[%s1496] ss:$2 sm:$0x3]
    %1754 = vrot.lane.b32.xlu0 %v1752, 16
    %v1755 = vpop.permute.xlu0 %1754
    %1757 = vst.msk [vmem:[#allocation5 + $0x8] sm:$0x3] %vm1494, %v1755
    %s1758 = scalar_lea.vmem [#allocation3], 25
    %v1759 = vld [vmem:[%s1758] ss:$2 sm:$0x3]
    %v1761 = vrot.slane %v1759, 6
    %1762 = vrot.lane.b32.xlu0 %v1761, 16
    %v1763 = vpop.permute.xlu0 %1762
    %1765 = vst.msk [vmem:[#allocation5 + $0x8] sm:$0xc] %vm1503, %v1763
    %v1766 = vld [vmem:[%s1514] ss:$2 sm:$0x3]
    %v1768 = vrot.slane %v1766, 4
    %1769 = vrot.lane.b32.xlu0 %v1768, 16
    %v1770 = vpop.permute.xlu0 %1769
    %1772 = vst.msk [vmem:[#allocation5 + $0x8] sm:$0x30] %vm1512, %v1770
    %s1773 = scalar_lea.vmem [#allocation3], 61
    %v1774 = vld [vmem:[%s1773] ss:$2 sm:$0x3]
    %v1776 = vrot.slane %v1774, 2
    %1777 = vrot.lane.b32.xlu0 %v1776, 16
    %v1778 = vpop.permute.xlu0 %1777
    %1780 = vst.msk [vmem:[#allocation5 + $0x8] sm:$0xc0] %vm1521, %v1778
    %v1781 = vld [vmem:[%s1531] ss:$2 sm:$0x3]
    %1783 = vrot.lane.b32.xlu0 %v1781, 32
    %v1784 = vpop.permute.xlu0 %1783
    %1786 = vst.msk [vmem:[#allocation5 + $0x8] sm:$0x3] %vm1529, %v1784
    %s1787 = scalar_lea.vmem [#allocation3], 26
    %v1788 = vld [vmem:[%s1787] ss:$2 sm:$0x3]
    %v1790 = vrot.slane %v1788, 6
    %1791 = vrot.lane.b32.xlu0 %v1790, 32
    %v1792 = vpop.permute.xlu0 %1791
    %1794 = vst.msk [vmem:[#allocation5 + $0x8] sm:$0xc] %vm1538, %v1792
    %v1795 = vld [vmem:[%s1549] ss:$2 sm:$0x3]
    %v1797 = vrot.slane %v1795, 4
    %1798 = vrot.lane.b32.xlu0 %v1797, 32
    %v1799 = vpop.permute.xlu0 %1798
    %1801 = vst.msk [vmem:[#allocation5 + $0x8] sm:$0x30] %vm1547, %v1799
    %s1802 = scalar_lea.vmem [#allocation3], 62
    %v1803 = vld [vmem:[%s1802] ss:$2 sm:$0x3]
    %v1805 = vrot.slane %v1803, 2
    %1806 = vrot.lane.b32.xlu0 %v1805, 32
    %v1807 = vpop.permute.xlu0 %1806
    %1809 = vst.msk [vmem:[#allocation5 + $0x8] sm:$0xc0] %vm1556, %v1807
    %v1810 = vld [vmem:[%s1566] ss:$2 sm:$0x3]
    %1812 = vrot.lane.b32.xlu0 %v1810, 48
    %v1813 = vpop.permute.xlu0 %1812
    %1815 = vst.msk [vmem:[#allocation5 + $0x8] sm:$0x3] %vm1564, %v1813
    %s1816 = scalar_lea.vmem [#allocation3], 27
    %v1817 = vld [vmem:[%s1816] ss:$2 sm:$0x3]
    %v1819 = vrot.slane %v1817, 6
    %1820 = vrot.lane.b32.xlu0 %v1819, 48
    %v1821 = vpop.permute.xlu0 %1820
    %1823 = vst.msk [vmem:[#allocation5 + $0x8] sm:$0xc] %vm1573, %v1821
    %v1824 = vld [vmem:[%s1584] ss:$2 sm:$0x3]
    %v1826 = vrot.slane %v1824, 4
    %1827 = vrot.lane.b32.xlu0 %v1826, 48
    %v1828 = vpop.permute.xlu0 %1827
    %1830 = vst.msk [vmem:[#allocation5 + $0x8] sm:$0x30] %vm1582, %v1828
    %s1831 = scalar_lea.vmem [#allocation3], 63
    %v1832 = vld [vmem:[%s1831] ss:$2 sm:$0x3]
    %v1834 = vrot.slane %v1832, 2
    %1835 = vrot.lane.b32.xlu0 %v1834, 48
    %v1836 = vpop.permute.xlu0 %1835
    %1838 = vst.msk [vmem:[#allocation5 + $0x8] sm:$0xc0] %vm1591, %v1836
    %v1839 = vld [vmem:[%s1601] ss:$2 sm:$0x3]
    %1841 = vrot.lane.b32.xlu0 %v1839, 64
    %v1842 = vpop.permute.xlu0 %1841
    %1844 = vst.msk [vmem:[#allocation5 + $0x8] sm:$0x3] %vm1599, %v1842
    %s1845 = scalar_lea.vmem [#allocation3], 30
    %v1846 = vld [vmem:[%s1845] ss:$2 sm:$0x3]
    %v1848 = vrot.slane %v1846, 6
    %1849 = vrot.lane.b32.xlu0 %v1848, 64
    %v1850 = vpop.permute.xlu0 %1849
    %1852 = vst.msk [vmem:[#allocation5 + $0x8] sm:$0xc] %vm1608, %v1850
    %v1853 = vld [vmem:[%s1619] ss:$2 sm:$0x3]
    %v1855 = vrot.slane %v1853, 4
    %1856 = vrot.lane.b32.xlu0 %v1855, 64
    %v1857 = vpop.permute.xlu0 %1856
    %1859 = vst.msk [vmem:[#allocation5 + $0x8] sm:$0x30] %vm1617, %v1857
    %s1860 = scalar_lea.vmem [#allocation3], 66
    %v1861 = vld [vmem:[%s1860] ss:$2 sm:$0x3]
    %v1863 = vrot.slane %v1861, 2
    %1864 = vrot.lane.b32.xlu0 %v1863, 64
    %v1865 = vpop.permute.xlu0 %1864
    %1867 = vst.msk [vmem:[#allocation5 + $0x8] sm:$0xc0] %vm1626, %v1865
    %v1868 = vld [vmem:[%s1636] ss:$2 sm:$0x3]
    %1870 = vrot.lane.b32.xlu0 %v1868, 80
    %v1871 = vpop.permute.xlu0 %1870
    %1873 = vst.msk [vmem:[#allocation5 + $0x8] sm:$0x3] %vm1634, %v1871
    %s1874 = scalar_lea.vmem [#allocation3], 31
    %v1875 = vld [vmem:[%s1874] ss:$2 sm:$0x3]
    %v1877 = vrot.slane %v1875, 6
    %1878 = vrot.lane.b32.xlu0 %v1877, 80
    %v1879 = vpop.permute.xlu0 %1878
    %1881 = vst.msk [vmem:[#allocation5 + $0x8] sm:$0xc] %vm1643, %v1879
    %v1882 = vld [vmem:[%s1654] ss:$2 sm:$0x3]
    %v1884 = vrot.slane %v1882, 4
    %1885 = vrot.lane.b32.xlu0 %v1884, 80
    %v1886 = vpop.permute.xlu0 %1885
    %1888 = vst.msk [vmem:[#allocation5 + $0x8] sm:$0x30] %vm1652, %v1886
    %s1889 = scalar_lea.vmem [#allocation3], 67
    %v1890 = vld [vmem:[%s1889] ss:$2 sm:$0x3]
    %v1892 = vrot.slane %v1890, 2
    %1893 = vrot.lane.b32.xlu0 %v1892, 80
    %v1894 = vpop.permute.xlu0 %1893
    %1896 = vst.msk [vmem:[#allocation5 + $0x8] sm:$0xc0] %vm1661, %v1894
    %v1897 = vld [vmem:[%s1671] ss:$2 sm:$0x3]
    %1899 = vrot.lane.b32.xlu0 %v1897, 96
    %v1900 = vpop.permute.xlu0 %1899
    %1902 = vst.msk [vmem:[#allocation5 + $0x8] sm:$0x3] %vm1669, %v1900
    %s1903 = scalar_lea.vmem [#allocation3], 32
    %v1904 = vld [vmem:[%s1903] ss:$2 sm:$0x3]
    %v1906 = vrot.slane %v1904, 6
    %1907 = vrot.lane.b32.xlu0 %v1906, 96
    %v1908 = vpop.permute.xlu0 %1907
    %1910 = vst.msk [vmem:[#allocation5 + $0x8] sm:$0xc] %vm1678, %v1908
    %v1911 = vld [vmem:[%s1689] ss:$2 sm:$0x3]
    %v1913 = vrot.slane %v1911, 4
    %1914 = vrot.lane.b32.xlu0 %v1913, 96
    %v1915 = vpop.permute.xlu0 %1914
    %1917 = vst.msk [vmem:[#allocation5 + $0x8] sm:$0x30] %vm1687, %v1915
    %s1918 = scalar_lea.vmem [#allocation3], 68
    %v1919 = vld [vmem:[%s1918] ss:$2 sm:$0x3]
    %v1921 = vrot.slane %v1919, 2
    %1922 = vrot.lane.b32.xlu0 %v1921, 96
    %v1923 = vpop.permute.xlu0 %1922
    %1925 = vst.msk [vmem:[#allocation5 + $0x8] sm:$0xc0] %vm1696, %v1923
    %v1926 = vld [vmem:[%s1706] ss:$2 sm:$0x3]
    %1928 = vrot.lane.b32.xlu0 %v1926, 112
    %v1929 = vpop.permute.xlu0 %1928
    %1931 = vst.msk [vmem:[#allocation5 + $0x8] sm:$0x3] %vm1704, %v1929
    %s1932 = scalar_lea.vmem [#allocation3], 33
    %v1933 = vld [vmem:[%s1932] ss:$2 sm:$0x3]
    %v1935 = vrot.slane %v1933, 6
    %1936 = vrot.lane.b32.xlu0 %v1935, 112
    %v1937 = vpop.permute.xlu0 %1936
    %1939 = vst.msk [vmem:[#allocation5 + $0x8] sm:$0xc] %vm1713, %v1937
    %v1940 = vld [vmem:[%s1724] ss:$2 sm:$0x3]
    %v1942 = vrot.slane %v1940, 4
    %1943 = vrot.lane.b32.xlu0 %v1942, 112
    %v1944 = vpop.permute.xlu0 %1943
    %1946 = vst.msk [vmem:[#allocation5 + $0x8] sm:$0x30] %vm1722, %v1944
    %s1947 = scalar_lea.vmem [#allocation3], 69
    %v1948 = vld [vmem:[%s1947] ss:$2 sm:$0x3]
    %v1950 = vrot.slane %v1948, 2
    %1951 = vrot.lane.b32.xlu0 %v1950, 112
    %v1952 = vpop.permute.xlu0 %1951
    %1954 = vst.msk [vmem:[#allocation5 + $0x8] sm:$0xc0] %vm1731, %v1952
    %v1955 = vld [vmem:[#allocation5] sm:$0xff]
    %v1956 = vld [vmem:[#allocation5 + $0x8] sm:$0xff]
    %v1957 = vpack.c.bf16 %v1955, %v1955
    %v1958 = vpack.c.bf16 %v1956, %v1956
    %v1959 = vld [vmem:[%s3] sm:$0xf]
    %v1960 = vld [vmem:[%s3 + $0x4] sm:$0xf]
    %v1961 = vld [vmem:[%s3 + $0x8] sm:$0xf]
    %v1962 = vld [vmem:[%s3 + $0xc] sm:$0xf]
    %v1963 = vld [vmem:[%s3 + $0x10] sm:$0xf]
    %v1964 = vld [vmem:[%s3 + $0x14] sm:$0xf]
    %v1965 = vld [vmem:[%s3 + $0x18] sm:$0xf]
    %v1966 = vld [vmem:[%s3 + $0x1c] sm:$0xf]
    %v1967 = vld [vmem:[%s3 + $0x20] sm:$0xf]
    %v1968 = vld [vmem:[%s3 + $0x24] sm:$0xf]
    %v1969 = vld [vmem:[%s3 + $0x28] sm:$0xf]
    %v1970 = vld [vmem:[%s3 + $0x2c] sm:$0xf]
    %v1971 = vld [vmem:[%s3 + $0x30] sm:$0xf]
    %v1972 = vld [vmem:[%s3 + $0x34] sm:$0xf]
    %v1973 = vld [vmem:[%s3 + $0x38] sm:$0xf]
    %v1974 = vld [vmem:[%s3 + $0x3c] sm:$0xf]
    %v1975 = vld [vmem:[%s3 + $0x40] sm:$0xf]
    %v1976 = vld [vmem:[%s3 + $0x44] sm:$0xf]
    %v1977 = vld [vmem:[%s3 + $0x48] sm:$0xf]
    %v1978 = vld [vmem:[%s3 + $0x4c] sm:$0xf]
    %v1979 = vld [vmem:[%s3 + $0x50] sm:$0xf]
    %v1980 = vld [vmem:[%s3 + $0x54] sm:$0xf]
    %v1981 = vld [vmem:[%s3 + $0x58] sm:$0xf]
    %v1982 = vld [vmem:[%s3 + $0x5c] sm:$0xf]
    %v1983 = vld [vmem:[%s3 + $0x60] sm:$0xf]
    %v1984 = vld [vmem:[%s3 + $0x64] sm:$0xf]
    %v1985 = vld [vmem:[%s3 + $0x68] sm:$0xf]
    %v1986 = vld [vmem:[%s3 + $0x6c] sm:$0xf]
    %v1987 = vld [vmem:[%s3 + $0x70] sm:$0xf]
    %v1988 = vld [vmem:[%s3 + $0x74] sm:$0xf]
    %v1989 = vld [vmem:[%s3 + $0x78] sm:$0xf]
    %v1990 = vld [vmem:[%s3 + $0x7c] sm:$0xf]
    %v2023 = vunpack.c.l.b16 %v1959
    %v2024 = vunpack.c.l.b16 %v1960
    %v2025 = vunpack.c.l.b16 %v1961
    %v2026 = vunpack.c.l.b16 %v1962
    %v2027 = vunpack.c.l.b16 %v1963
    %v2028 = vunpack.c.l.b16 %v1964
    %v2029 = vunpack.c.l.b16 %v1965
    %v2030 = vunpack.c.l.b16 %v1966
    %v2031 = vunpack.c.l.b16 %v1967
    %v2032 = vunpack.c.l.b16 %v1968
    %v2033 = vunpack.c.l.b16 %v1969
    %v2034 = vunpack.c.l.b16 %v1970
    %v2035 = vunpack.c.l.b16 %v1971
    %v2036 = vunpack.c.l.b16 %v1972
    %v2037 = vunpack.c.l.b16 %v1973
    %v2038 = vunpack.c.l.b16 %v1974
    %v2039 = vunpack.c.l.b16 %v1975
    %v2040 = vunpack.c.l.b16 %v1976
    %v2041 = vunpack.c.l.b16 %v1977
    %v2042 = vunpack.c.l.b16 %v1978
    %v2043 = vunpack.c.l.b16 %v1979
    %v2044 = vunpack.c.l.b16 %v1980
    %v2045 = vunpack.c.l.b16 %v1981
    %v2046 = vunpack.c.l.b16 %v1982
    %v2047 = vunpack.c.l.b16 %v1983
    %v2048 = vunpack.c.l.b16 %v1984
    %v2049 = vunpack.c.l.b16 %v1985
    %v2050 = vunpack.c.l.b16 %v1986
    %v2051 = vunpack.c.l.b16 %v1987
    %v2052 = vunpack.c.l.b16 %v1988
    %v2053 = vunpack.c.l.b16 %v1989
    %v2054 = vunpack.c.l.b16 %v1990
    %v2055 = vpack.c.b16 %v2024, %v2023
    %v2056 = vpack.c.b16 %v2026, %v2025
    %v2057 = vpack.c.b16 %v2028, %v2027
    %v2058 = vpack.c.b16 %v2030, %v2029
    %v2059 = vpack.c.b16 %v2032, %v2031
    %v2060 = vpack.c.b16 %v2034, %v2033
    %v2061 = vpack.c.b16 %v2036, %v2035
    %v2062 = vpack.c.b16 %v2038, %v2037
    %v2063 = vpack.c.b16 %v2040, %v2039
    %v2064 = vpack.c.b16 %v2042, %v2041
    %v2065 = vpack.c.b16 %v2044, %v2043
    %v2066 = vpack.c.b16 %v2046, %v2045
    %v2067 = vpack.c.b16 %v2048, %v2047
    %v2068 = vpack.c.b16 %v2050, %v2049
    %v2069 = vpack.c.b16 %v2052, %v2051
    %v2070 = vpack.c.b16 %v2054, %v2053
    %2087 = vmatprep.subr.bf16.mxu0 0
    %2088 = vmatpush1.bf16.msra.mxu0 %v2055
    %2089 = vmatprep.subr.bf16.mxu0 0
    %2090 = vmatpush1.bf16.msra.mxu0 %v2056
    %2091 = vmatprep.subr.bf16.mxu0 0
    %2092 = vmatpush1.bf16.msra.mxu0 %v2057
    %2093 = vmatprep.subr.bf16.mxu0 0
    %2094 = vmatpush1.bf16.msra.mxu0 %v2058
    %2095 = vmatprep.subr.bf16.mxu0 0
    %2096 = vmatpush1.bf16.msra.mxu0 %v2059
    %2097 = vmatprep.subr.bf16.mxu0 0
    %2098 = vmatpush1.bf16.msra.mxu0 %v2060
    %2099 = vmatprep.subr.bf16.mxu0 0
    %2100 = vmatpush1.bf16.msra.mxu0 %v2061
    %2101 = vmatprep.subr.bf16.mxu0 0
    %2102 = vmatpush1.bf16.msra.mxu0 %v2062
    %2103 = vmatprep.subr.bf16.mxu0 0
    %2104 = vmatpush1.bf16.msra.mxu0 %v2063
    %2105 = vmatprep.subr.bf16.mxu0 0
    %2106 = vmatpush1.bf16.msra.mxu0 %v2064
    %2107 = vmatprep.subr.bf16.mxu0 0
    %2108 = vmatpush1.bf16.msra.mxu0 %v2065
    %2109 = vmatprep.subr.bf16.mxu0 0
    %2110 = vmatpush1.bf16.msra.mxu0 %v2066
    %2111 = vmatprep.subr.bf16.mxu0 0
    %2112 = vmatpush1.bf16.msra.mxu0 %v2067
    %2113 = vmatprep.subr.bf16.mxu0 0
    %2114 = vmatpush1.bf16.msra.mxu0 %v2068
    %2115 = vmatprep.subr.bf16.mxu0 0
    %2116 = vmatpush1.bf16.msra.mxu0 %v2069
    %2117 = vmatprep.subr.bf16.mxu0 0
    %2118 = vmatpush1.bf16.msra.mxu0 %v2070
    %2119 = vmatprep.mubr.bf16.mxu0 %v1958
    %2120 = vmatmul.mubr.bf16.gmra.mrb[0].mxu0 %v1957
    %v2121 = vpop.f32.mrb[0].mxu0
    %v2122 = vadd.f32 0.0, %v2121
    %v2123 = vpop.f32.mrb[0].mxu0
    %v2124 = vpop.f32.mrb[0].mxu0
    %v2125 = vpop.f32.mrb[0].mxu0
    %2126 = vdwg.mxu0
    %v2127 = vrot.slane %v2122, 4
    %v2128 = vadd.f32 %v2122, %v2127
    %v2129 = vrot.slane %v2128, 2
    %v2130 = vadd.f32 %v2128, %v2129
    %v2131 = vrot.slane %v2130, 1
    %v2132 = vadd.f32 %v2130, %v2131
    %v2133 = vrcp.pop 8.0
    %v2134 = vmul.f32 %v2132, %v2133
    %v2135 = vsub.f32 %v2122, %v2134
    %v2136 = vmul.f32 %v2135, %v2135
    %v2137 = vrot.slane %v2136, 4
    %v2138 = vadd.f32 %v2136, %v2137
    %v2139 = vrot.slane %v2138, 2
    %v2140 = vadd.f32 %v2138, %v2139
    %v2141 = vrot.slane %v2140, 1
    %v2142 = vadd.f32 %v2140, %v2141
    %v2143 = vmul.f32 %v2142, %v2133
    %v2144 = vadd.f32 %v2143, 1e-05
    %v2145 = vrsqrt.pop %v2144
    %v2146 = vmul.f32 %v2135, %v2145
    %v2147 = vld [vmem:[%s4 + $0x2] sm:$0x1]
    %v2148 = vlaneseq
    %v2149 = vshrl.u32 %v2148, 7
    %v2150 = vsub.s32 0, %v2149
    %v2151 = vrot.slane %v2147, %v2150
    %v2152 = vmul.f32 %v2146, %v2151
    %v2153 = vld [vmem:[%s4 + $0x3] sm:$0x1]
    %v2154 = vlaneseq
    %v2155 = vshrl.u32 %v2154, 7
    %v2156 = vsub.s32 0, %v2155
    %v2157 = vrot.slane %v2153, %v2156
    %v2158 = vadd.f32 %v2152, %v2157
    %vm2159 = vcmp.ge.f32.partialorder %v2158, 0.0
    %v2160 = vmul.f32 %v2158, 0.1
    %v2161 = vsel %vm2159, %v2158, %v2160
    %2162 = vst [vmem:[#allocation6] sm:$0xff] %v2161
    // Predicated region
    $region22: #{discriminator_forward.1} parent=1 // pred_check
      _
    $region23: #{discriminator_forward.1} parent=1 // pred_check_branch
      %2164 = sbr.rel (0) target = $region25
    $region24: #{discriminator_forward.1} parent=1 // pred_region
      %s2166 = ssub.s32 128, 128
      %2167 = vsyncadd [#allocation7], %s2166
      %s2169 = sshll.u32 [#allocation6], 4
      %s2170 = int_to_ptr.vmem [resolvable:$true] %s2169
      %2172 = dma.vmem_to_hbm [thread:$0]  %s2170, 128, %s5, [#allocation7]
    $region25: #{discriminator_forward.1} parent=1 // pred_fallthru
      _
    // Predicated region
    $region26: #{discriminator_forward.1} parent=1 // pred_check
      _
    $region27: #{discriminator_forward.1} parent=1 // pred_check_branch
      %2174 = sbr.rel (0) target = $region29
    $region28: #{discriminator_forward.1} parent=1 // pred_region
      %2175 = dma.done [#allocation7], 128
    $region29: #{discriminator_forward.1} parent=1 // pred_fallthru
      _
    %2176 = vsyncpa [#allocation7], 1

</llo_original>
